<compile_context>
chip_gen: v6e
topology: v6e:2x2x1
jax: 0.10.0
libtpu: 0.0.40
codegen_flags: <defaults>
</compile_context>

<pallas_src>
import functools

import jax
import jax.numpy as jnp
from jax import lax
from jax.experimental import pallas as pl
from jax.experimental.pallas import tpu as pltpu


def _object_node_update_kernel(edge_ref, node_ref, w1_ref, w2_ref, out_ref):
    # edge_ref: (B, 2, N, N)     node_ref: (B, N, Din)
    # w1_ref:   (3*Din + 8, C1)  rows [0,3*Din) = W1*bn_scale, row 3*Din = bn_shift
    # w2_ref:   (C1 + 8, C2)     rows [0,C1)    = W2*bn_scale, row C1    = bn_shift
    # out_ref:  (B*N, C2)
    B, _, N, _ = edge_ref.shape
    Din = node_ref.shape[-1]
    C1 = w1_ref.shape[-1]

    # fp32 contract precision only on these dots (no global flag).
    dot = functools.partial(jnp.dot, precision=lax.Precision.HIGHEST,
                            preferred_element_type=jnp.float32)

    e = edge_ref[...]                              # (B, 2, N, N)
    x = node_ref[...]                              # (B, N, Din)

    # 1) zero the diagonal, then L1-normalize along the last dim (clamp 1e-12)
    row = lax.broadcasted_iota(jnp.int32, (N, N), 0)
    col = lax.broadcasted_iota(jnp.int32, (N, N), 1)
    e = jnp.where((row == col)[None, None, :, :], 0.0, e)
    denom = jnp.maximum(jnp.sum(jnp.abs(e), axis=-1, keepdims=True), 1e-12)
    e = e * pl.reciprocal(denom, approx=False)     # EUP reciprocal, exact

    # 2)+3) conv0 with the aggregation commuted past the weight projection:
    #   reference: h = [x | e0@x | e1@x] @ W1 + b1
    #   here:      h = x@W1_self + b1 + e0@(x@W1_a) + e1@(x@W1_b)
    # Weight row-blocks are static ref slices at 8-aligned offsets (zero cost).
    xf = x.reshape(B * N, Din)                                     # (B*N, Din)
    h_self = dot(xf, w1_ref[0:Din, :]) + w1_ref[3 * Din:3 * Din + 1, :]
    yA = dot(xf, w1_ref[Din:2 * Din, :])           # projected slice-0 path
    yB = dot(xf, w1_ref[2 * Din:3 * Din, :])       # projected slice-1 path

    rows_out = []
    for b in range(B):                             # B tiny & static -> unrolled
        lo = b * N                                 # 8-aligned value slices
        rows_out.append(h_self[lo:lo + N, :]
                        + dot(e[b, 0], yA[lo:lo + N, :])
                        + dot(e[b, 1], yB[lo:lo + N, :]))
    h = rows_out[0] if B == 1 else jnp.concatenate(rows_out, axis=0)  # (B*N,C1)
    h = jnp.maximum(h, 0.01 * h)                   # LeakyReLU(0.01)

    # 4) conv1 (+folded BN) + LeakyReLU; single lane-contiguous slab store
    o = dot(h, w2_ref[0:C1, :]) + w2_ref[C1:C1 + 1, :]
    out_ref[...] = jnp.maximum(o, 0.01 * o).astype(out_ref.dtype)


def fold_bn_into_weights(w1, s1, b1, w2, s2, b2):
    """Fold eval-mode BatchNorm scale into the 1x1-conv weights (exact:
    (x@W)*s == x@(W*s)) and pack the per-channel shift as an extra
    8-row-padded block under each weight matrix.  Run once per weight update,
    off the per-call path, so the pallas_call only has 4 input DMAs."""
    c1 = w1.shape[1]
    c2 = w2.shape[1]
    pad1 = jnp.zeros((8, c1), w1.dtype).at[0, :].set(b1.reshape(-1))
    pad2 = jnp.zeros((8, c2), w2.dtype).at[0, :].set(b2.reshape(-1))
    w1_packed = jnp.concatenate([w1 * s1, pad1], axis=0)   # (3*Din + 8, C1)
    w2_packed = jnp.concatenate([w2 * s2, pad2], axis=0)   # (C1 + 8, C2)
    return w1_packed, w2_packed


@jax.jit
def object_node_update(node_feat, edge_feat, w1_packed, w2_packed):
    """node_feat (B,N,Din), edge_feat (B,2,N,N); packed weights from
    fold_bn_into_weights: w1_packed (3*Din+8, C1), w2_packed (C1+8, C2)."""
    B, N, Din = node_feat.shape
    C1 = w1_packed.shape[1]
    C2 = w2_packed.shape[1]

    flops = (3 * 2 * B * N * Din * C1        # three W1-block projections
             + B * 2 * 2 * N * N * C1        # per-batch edge aggregation
             + 2 * B * N * C1 * C2)          # conv1
    bytes_accessed = 4 * (edge_feat.size + node_feat.size
                          + w1_packed.size + w2_packed.size + B * N * C2)

    vmem = pl.BlockSpec(memory_space=pltpu.MemorySpace.VMEM)
    out = pl.pallas_call(
        _object_node_update_kernel,
        out_shape=jax.ShapeDtypeStruct((B * N, C2), node_feat.dtype),
        in_specs=[vmem, vmem, vmem, vmem],
        out_specs=vmem,
        cost_estimate=pl.CostEstimate(flops=flops,
                                      transcendentals=2 * B * N,
                                      bytes_accessed=bytes_accessed),
    )(edge_feat, node_feat, w1_packed, w2_packed)
    return out.reshape(B, N, C2)


def _reference(node_feat, edge_feat, w1, s1, b1, w2, s2, b2):
    """Plain-JAX reference mirroring the PyTorch forward (explicit fp32 dots)."""
    B, N, Din = node_feat.shape
    hp = lax.Precision.HIGHEST
    mask = 1.0 - jnp.eye(N, dtype=edge_feat.dtype)
    e = edge_feat * mask[None, None, :, :]
    e = e / jnp.maximum(jnp.sum(jnp.abs(e), axis=-1, keepdims=True), 1e-12)
    # cat(split(e,1,1),2).squeeze(1) -> (B, 2N, N); bmm with node -> (B, 2N, Din)
    e_cat = jnp.concatenate([e[:, 0], e[:, 1]], axis=1)
    aggr = jnp.einsum('bmn,bnd->bmd', e_cat, node_feat, precision=hp)
    aggr = jnp.concatenate([aggr[:, :N, :], aggr[:, N:, :]], axis=-1)  # (B,N,2D)
    x = jnp.concatenate([node_feat, aggr], axis=-1)                    # (B,N,3D)
    h = jnp.einsum('bnd,dc->bnc', x, w1, precision=hp) * s1 + b1
    h = jnp.where(h >= 0, h, 0.01 * h)
    o = jnp.einsum('bnc,ck->bnk', h, w2, precision=hp) * s2 + b2
    return jnp.where(o >= 0, o, 0.01 * o)


if __name__ == "__main__":
    # small shapes consistent with the module
    B, N = 2, 8                  # num_tasks, num_data
    in_features = 32
    num_features = 32
    ratio = [2, 1]
    c_in0 = in_features * 3            # 96
    c_out0 = num_features * ratio[0]   # 64
    c_out1 = num_features * ratio[1]   # 32
    bn_eps = 1e-5

    key = jax.random.PRNGKey(0)
    keys = jax.random.split(key, 10)

    node_feat = jax.random.normal(keys[0], (B, N, in_features), jnp.float32)
    edge_feat = jax.random.uniform(keys[1], (B, 2, N, N), jnp.float32)

    # conv0: PyTorch weight (c_out0, c_in0, 1, 1) -> matrix (c_in0, c_out0)
    w1 = jax.random.normal(keys[2], (c_in0, c_out0), jnp.float32) * 0.05
    # conv1
    w2 = jax.random.normal(keys[3], (c_out0, c_out1), jnp.float32) * 0.05

    # BatchNorm2d params (eval mode), folded into per-channel scale/shift
    g1 = 1.0 + 0.1 * jax.random.normal(keys[4], (c_out0,), jnp.float32)
    be1 = 0.1 * jax.random.normal(keys[5], (c_out0,), jnp.float32)
    mu1 = 0.1 * jax.random.normal(keys[6], (c_out0,), jnp.float32)
    var1 = jnp.abs(jax.random.normal(keys[7], (c_out0,), jnp.float32)) + 0.5
    g2 = 1.0 + 0.1 * jax.random.normal(keys[8], (c_out1,), jnp.float32)
    be2 = 0.1 * jax.random.normal(keys[9], (c_out1,), jnp.float32)
    mu2 = jnp.zeros((c_out1,), jnp.float32)
    var2 = jnp.ones((c_out1,), jnp.float32)

    s1 = (g1 / jnp.sqrt(var1 + bn_eps)).reshape(1, c_out0)
    b1 = (be1 - mu1 * g1 / jnp.sqrt(var1 + bn_eps)).reshape(1, c_out0)
    s2 = (g2 / jnp.sqrt(var2 + bn_eps)).reshape(1, c_out1)
    b2 = (be2 - mu2 * g2 / jnp.sqrt(var2 + bn_eps)).reshape(1, c_out1)

    # one-time folding + packing, off the per-call path
    w1_packed, w2_packed = fold_bn_into_weights(w1, s1, b1, w2, s2, b2)

    out = object_node_update(node_feat, edge_feat, w1_packed, w2_packed)
    out = jax.block_until_ready(out)

    ref = _reference(node_feat, edge_feat, w1, s1, b1, w2, s2, b2)
    assert out.shape == (B, N, c_out1), out.shape
    assert jnp.allclose(out, ref, atol=1e-4, rtol=1e-4), float(
        jnp.max(jnp.abs(out - ref)))

    print("KERNEL_OK")
</pallas_src>

<mosaic_0001>
module attributes {stable_mosaic.version = 11 : i64} {
  func.func @_object_node_update_kernel(%arg0: memref<2x2x8x8xf32, #tpu.memory_space<vmem>>, %arg1: memref<2x8x32xf32, #tpu.memory_space<vmem>>, %arg2: memref<104x64xf32, #tpu.memory_space<vmem>>, %arg3: memref<72x32xf32, #tpu.memory_space<vmem>>, %arg4: memref<16x32xf32, #tpu.memory_space<vmem>>) attributes {dimension_semantics = [], scalar_prefetch = 0 : i64, scratch_operands = 0 : i64, tpu.core_type = #tpu.core_type<tc>} {
    %c0 = arith.constant 0 : index
    %c0_0 = arith.constant 0 : index
    %c0_1 = arith.constant 0 : index
    %c0_2 = arith.constant 0 : index
    %0 = vector.load %arg0[%c0, %c0_0, %c0_1, %c0_2] : memref<2x2x8x8xf32, #tpu.memory_space<vmem>>, vector<2x2x8x8xf32>
    %c0_3 = arith.constant 0 : index
    %c0_4 = arith.constant 0 : index
    %c0_5 = arith.constant 0 : index
    %1 = vector.load %arg1[%c0_3, %c0_4, %c0_5] : memref<2x8x32xf32, #tpu.memory_space<vmem>>, vector<2x8x32xf32>
    %2 = tpu.iota {dimensions = array<i32: 0>} : vector<8x8xi32>
    %3 = tpu.iota {dimensions = array<i32: 1>} : vector<8x8xi32>
    %4 = arith.cmpi eq, %2, %3 : vector<8x8xi32>
    %5 = vector.shape_cast %4 : vector<8x8xi1> to vector<1x1x8x8xi1>
    %cst = arith.constant 0.000000e+00 : f32
    %6 = vector.shape_cast %5 : vector<1x1x8x8xi1> to vector<1x1x8x8xi1>
    %7 = vector.broadcast %6 : vector<1x1x8x8xi1> to vector<2x2x8x8xi1>
    %8 = vector.broadcast %cst : f32 to vector<2x2x8x8xf32>
    %9 = arith.select %7, %8, %0 : vector<2x2x8x8xi1>, vector<2x2x8x8xf32>
    %10 = math.absf %9 : vector<2x2x8x8xf32>
    %cst_6 = arith.constant dense<0.000000e+00> : vector<2x2x8xf32>
    %11 = vector.multi_reduction <add>, %10, %cst_6 [3] : vector<2x2x8x8xf32> to vector<2x2x8xf32>
    %12 = vector.shape_cast %11 : vector<2x2x8xf32> to vector<2x2x8x1xf32>
    %cst_7 = arith.constant 9.99999996E-13 : f32
    %13 = vector.broadcast %cst_7 : f32 to vector<2x2x8x1xf32>
    %14 = arith.maximumf %12, %13 : vector<2x2x8x1xf32>
    %15 = tpu.reciprocal %14 : vector<2x2x8x1xf32> -> vector<2x2x8x1xf32>
    %16 = vector.broadcast %15 : vector<2x2x8x1xf32> to vector<2x2x8x8xf32>
    %17 = arith.mulf %9, %16 : vector<2x2x8x8xf32>
    %18 = vector.shape_cast %1 : vector<2x8x32xf32> to vector<16x32xf32>
    %c0_8 = arith.constant 0 : index
    %c0_9 = arith.constant 0 : index
    %19 = vector.load %arg2[%c0_8, %c0_9] : memref<104x64xf32, #tpu.memory_space<vmem>>, vector<32x64xf32>
    %cst_10 = arith.constant dense<0.000000e+00> : vector<16x64xf32>
    %20 = tpu.matmul %18, %19, %cst_10 {dimension_numbers = #tpu.dot_dimension_numbers<[1], [0], [0], [1], [0, 0, 1, 1], [], []>, precision = #tpu.contract_precision<fp32>} : vector<16x32xf32>, vector<32x64xf32>, vector<16x64xf32> -> vector<16x64xf32>
    %c96 = arith.constant 96 : index
    %c0_11 = arith.constant 0 : index
    %21 = vector.load %arg2[%c96, %c0_11] : memref<104x64xf32, #tpu.memory_space<vmem>>, vector<1x64xf32>
    %22 = vector.broadcast %21 : vector<1x64xf32> to vector<16x64xf32>
    %23 = arith.addf %20, %22 : vector<16x64xf32>
    %c32 = arith.constant 32 : index
    %c0_12 = arith.constant 0 : index
    %24 = vector.load %arg2[%c32, %c0_12] : memref<104x64xf32, #tpu.memory_space<vmem>>, vector<32x64xf32>
    %cst_13 = arith.constant dense<0.000000e+00> : vector<16x64xf32>
    %25 = tpu.matmul %18, %24, %cst_13 {dimension_numbers = #tpu.dot_dimension_numbers<[1], [0], [0], [1], [0, 0, 1, 1], [], []>, precision = #tpu.contract_precision<fp32>} : vector<16x32xf32>, vector<32x64xf32>, vector<16x64xf32> -> vector<16x64xf32>
    %c64 = arith.constant 64 : index
    %c0_14 = arith.constant 0 : index
    %26 = vector.load %arg2[%c64, %c0_14] : memref<104x64xf32, #tpu.memory_space<vmem>>, vector<32x64xf32>
    %cst_15 = arith.constant dense<0.000000e+00> : vector<16x64xf32>
    %27 = tpu.matmul %18, %26, %cst_15 {dimension_numbers = #tpu.dot_dimension_numbers<[1], [0], [0], [1], [0, 0, 1, 1], [], []>, precision = #tpu.contract_precision<fp32>} : vector<16x32xf32>, vector<32x64xf32>, vector<16x64xf32> -> vector<16x64xf32>
    %28 = vector.extract_strided_slice %23 {offsets = [0, 0], sizes = [8, 64], strides = [1, 1]} : vector<16x64xf32> to vector<8x64xf32>
    %29 = vector.extract_strided_slice %17 {offsets = [0, 0, 0, 0], sizes = [1, 1, 8, 8], strides = [1, 1, 1, 1]} : vector<2x2x8x8xf32> to vector<1x1x8x8xf32>
    %30 = vector.shape_cast %29 : vector<1x1x8x8xf32> to vector<8x8xf32>
    %31 = vector.extract_strided_slice %25 {offsets = [0, 0], sizes = [8, 64], strides = [1, 1]} : vector<16x64xf32> to vector<8x64xf32>
    %cst_16 = arith.constant dense<0.000000e+00> : vector<8x64xf32>
    %32 = tpu.matmul %30, %31, %cst_16 {dimension_numbers = #tpu.dot_dimension_numbers<[1], [0], [0], [1], [0, 0, 1, 1], [], []>, precision = #tpu.contract_precision<fp32>} : vector<8x8xf32>, vector<8x64xf32>, vector<8x64xf32> -> vector<8x64xf32>
    %33 = arith.addf %28, %32 : vector<8x64xf32>
    %34 = vector.extract_strided_slice %17 {offsets = [0, 1, 0, 0], sizes = [1, 1, 8, 8], strides = [1, 1, 1, 1]} : vector<2x2x8x8xf32> to vector<1x1x8x8xf32>
    %35 = vector.shape_cast %34 : vector<1x1x8x8xf32> to vector<8x8xf32>
    %36 = vector.extract_strided_slice %27 {offsets = [0, 0], sizes = [8, 64], strides = [1, 1]} : vector<16x64xf32> to vector<8x64xf32>
    %cst_17 = arith.constant dense<0.000000e+00> : vector<8x64xf32>
    %37 = tpu.matmul %35, %36, %cst_17 {dimension_numbers = #tpu.dot_dimension_numbers<[1], [0], [0], [1], [0, 0, 1, 1], [], []>, precision = #tpu.contract_precision<fp32>} : vector<8x8xf32>, vector<8x64xf32>, vector<8x64xf32> -> vector<8x64xf32>
    %38 = arith.addf %33, %37 : vector<8x64xf32>
    %39 = vector.extract_strided_slice %23 {offsets = [8, 0], sizes = [8, 64], strides = [1, 1]} : vector<16x64xf32> to vector<8x64xf32>
    %40 = vector.extract_strided_slice %17 {offsets = [1, 0, 0, 0], sizes = [1, 1, 8, 8], strides = [1, 1, 1, 1]} : vector<2x2x8x8xf32> to vector<1x1x8x8xf32>
    %41 = vector.shape_cast %40 : vector<1x1x8x8xf32> to vector<8x8xf32>
    %42 = vector.extract_strided_slice %25 {offsets = [8, 0], sizes = [8, 64], strides = [1, 1]} : vector<16x64xf32> to vector<8x64xf32>
    %cst_18 = arith.constant dense<0.000000e+00> : vector<8x64xf32>
    %43 = tpu.matmul %41, %42, %cst_18 {dimension_numbers = #tpu.dot_dimension_numbers<[1], [0], [0], [1], [0, 0, 1, 1], [], []>, precision = #tpu.contract_precision<fp32>} : vector<8x8xf32>, vector<8x64xf32>, vector<8x64xf32> -> vector<8x64xf32>
    %44 = arith.addf %39, %43 : vector<8x64xf32>
    %45 = vector.extract_strided_slice %17 {offsets = [1, 1, 0, 0], sizes = [1, 1, 8, 8], strides = [1, 1, 1, 1]} : vector<2x2x8x8xf32> to vector<1x1x8x8xf32>
    %46 = vector.shape_cast %45 : vector<1x1x8x8xf32> to vector<8x8xf32>
    %47 = vector.extract_strided_slice %27 {offsets = [8, 0], sizes = [8, 64], strides = [1, 1]} : vector<16x64xf32> to vector<8x64xf32>
    %cst_19 = arith.constant dense<0.000000e+00> : vector<8x64xf32>
    %48 = tpu.matmul %46, %47, %cst_19 {dimension_numbers = #tpu.dot_dimension_numbers<[1], [0], [0], [1], [0, 0, 1, 1], [], []>, precision = #tpu.contract_precision<fp32>} : vector<8x8xf32>, vector<8x64xf32>, vector<8x64xf32> -> vector<8x64xf32>
    %49 = arith.addf %44, %48 : vector<8x64xf32>
    %50 = tpu.concatenate %38, %49 in 0 : vector<8x64xf32>, vector<8x64xf32> -> vector<16x64xf32>
    %cst_20 = arith.constant 0.00999999977 : f32
    %51 = vector.broadcast %cst_20 : f32 to vector<16x64xf32>
    %52 = arith.mulf %51, %50 : vector<16x64xf32>
    %53 = arith.maximumf %50, %52 : vector<16x64xf32>
    %c0_21 = arith.constant 0 : index
    %c0_22 = arith.constant 0 : index
    %54 = vector.load %arg3[%c0_21, %c0_22] : memref<72x32xf32, #tpu.memory_space<vmem>>, vector<64x32xf32>
    %cst_23 = arith.constant dense<0.000000e+00> : vector<16x32xf32>
    %55 = tpu.matmul %53, %54, %cst_23 {dimension_numbers = #tpu.dot_dimension_numbers<[1], [0], [0], [1], [0, 0, 1, 1], [], []>, precision = #tpu.contract_precision<fp32>} : vector<16x64xf32>, vector<64x32xf32>, vector<16x32xf32> -> vector<16x32xf32>
    %c64_24 = arith.constant 64 : index
    %c0_25 = arith.constant 0 : index
    %56 = vector.load %arg3[%c64_24, %c0_25] : memref<72x32xf32, #tpu.memory_space<vmem>>, vector<1x32xf32>
    %57 = vector.broadcast %56 : vector<1x32xf32> to vector<16x32xf32>
    %58 = arith.addf %55, %57 : vector<16x32xf32>
    %cst_26 = arith.constant 0.00999999977 : f32
    %59 = vector.broadcast %cst_26 : f32 to vector<16x32xf32>
    %60 = arith.mulf %59, %58 : vector<16x32xf32>
    %61 = arith.maximumf %58, %60 : vector<16x32xf32>
    %c0_27 = arith.constant 0 : index
    %c0_28 = arith.constant 0 : index
    %62 = vector.load %arg4[%c0_27, %c0_28] : memref<16x32xf32, #tpu.memory_space<vmem>>, vector<16x32xf32>
    tpu.vector_store %arg4[%c0_27, %c0_28], %61 {strides = array<i32>} : memref<16x32xf32, #tpu.memory_space<vmem>>, vector<16x32xf32>,
    return
  }
}

</mosaic_0001>

<llo_original>
// kernel: object_node_update.1
$region0: #{object_node_update.1}
  #allocation0 [shape = 'u32[]', space=smem, size = 0x4, offset = 0x4, fixed_abs, tag = 'smem constant byte address 0x4 - core index']
  #allocation1 [shape = 'u32[144,128]{1,0:T(1,128)}', space=vmem, size = 0x12000, scoped, tag = 'internal scratch']
  %s0 = inlined_call_operand.vmem [shape: f32[2,2,8,8], index: 0, kind: input, shape index: {}]
  %s1 = inlined_call_operand.vmem [shape: f32[2,8,32], index: 1, kind: input, shape index: {}]
  %s2 = inlined_call_operand.vmem [shape: f32[104,64], index: 2, kind: input, shape index: {}]
  %s3 = inlined_call_operand.vmem [shape: f32[72,32], index: 3, kind: input, shape index: {}]
  %s4 = inlined_call_operand.hbm [shape: f32[16,32], index: 4, kind: output, shape index: {}]
  %s5 = sld [smem:[#allocation0]]
  $region26: #{object_node_update.1} parent=0
    _
  %s7 = ssub.s32 1, %s5
  %s8 = scalar_select 0, %s7, %s5
  $region1: #{object_node_update.1} parent=0
    #allocation2 [shape = 'u8[8192]{0}', space=vmem, size = 0x2000, scoped, tag = 'output window, operand 0, single buffered']
    #allocation3 [shape = 's32[1]{0}', space=sflag, size = 0x4, scoped, tag = 'scoped memory for object_node_update.1']
    %9 = vsyncpa [#allocation3], 0
    // Predicated region
    $region2: #{object_node_update.1} parent=1 // pred_check
      _
    $region3: #{object_node_update.1} parent=1 // pred_check_branch
      %11 = sbr.rel (0) target = $region5
    $region4: #{object_node_update.1} parent=1 // pred_region
      _
    $region5: #{object_node_update.1} parent=1 // pred_fallthru
      _
    // Predicated region
    $region6: #{object_node_update.1} parent=1 // pred_check
      _
    $region7: #{object_node_update.1} parent=1 // pred_check_branch
      %13 = sbr.rel (0) target = $region9
    $region8: #{object_node_update.1} parent=1 // pred_region
      _
    $region9: #{object_node_update.1} parent=1 // pred_fallthru
      _
    // Predicated region
    $region10: #{object_node_update.1} parent=1 // pred_check
      _
    $region11: #{object_node_update.1} parent=1 // pred_check_branch
      %15 = sbr.rel (0) target = $region13
    $region12: #{object_node_update.1} parent=1 // pred_region
      _
    $region13: #{object_node_update.1} parent=1 // pred_fallthru
      _
    // Predicated region
    $region14: #{object_node_update.1} parent=1 // pred_check
      _
    $region15: #{object_node_update.1} parent=1 // pred_check_branch
      %17 = sbr.rel (0) target = $region17
    $region16: #{object_node_update.1} parent=1 // pred_region
      _
    $region17: #{object_node_update.1} parent=1 // pred_fallthru
      _
    %v18 = vld [vmem:[%s0] sm:$0xff]
    %v19 = vld [vmem:[%s0 + $0x8] sm:$0xff]
    %v20 = vld [vmem:[%s0 + $0x10] sm:$0xff]
    %v21 = vld [vmem:[%s0 + $0x18] sm:$0xff]
    %v22 = vld [vmem:[%s1] sm:$0xff]
    %v23 = vld [vmem:[%s1 + $0x8] sm:$0xff]
    %v24 = vlaneseq
    %v25 = vshrl.u32 %v24, 7
    %v26 = vlaneseq
    %v27 = vand.u32 %v26, 127
    %vm28 = vcmp.eq.s32.totalorder %v25, %v27
    %v29 = vsel %vm28, 1, 0
    %vm30 = vcmp.eq.s32.totalorder %v29, 1
    %v31 = vsel %vm30, 0.0, %v18
    %v32 = vsel %vm30, 0.0, %v19
    %v33 = vsel %vm30, 0.0, %v20
    %v34 = vsel %vm30, 0.0, %v21
    %v35 = vand.u32 2147483647, %v31
    %v36 = vand.u32 2147483647, %v32
    %v37 = vand.u32 2147483647, %v33
    %v38 = vand.u32 2147483647, %v34
    %vm39 = vcmask 64512
    %v40 = vsel %vm39, %v35, 0.0
    %41 = vadd.xlane.f32.xlu0 %v40
    %v42 = vpop.xlane.xlu0 %41
    %v43 = vsel %vm39, %v36, 0.0
    %44 = vadd.xlane.f32.xlu0 %v43
    %v45 = vpop.xlane.xlu0 %44
    %v46 = vsel %vm39, %v37, 0.0
    %47 = vadd.xlane.f32.xlu0 %v46
    %v48 = vpop.xlane.xlu0 %47
    %v49 = vsel %vm39, %v38, 0.0
    %50 = vadd.xlane.f32.xlu0 %v49
    %v51 = vpop.xlane.xlu0 %50
    %v52 = vmax.f32 %v42, 1e-12
    %v53 = vmax.f32 %v45, 1e-12
    %v54 = vmax.f32 %v48, 1e-12
    %v55 = vmax.f32 %v51, 1e-12
    %v56 = vrcp.pop %v52
    %v57 = vrcp.pop %v53
    %v58 = vrcp.pop %v54
    %v59 = vrcp.pop %v55
    %v60 = vmul.f32 %v31, %v56
    %v61 = vmul.f32 %v32, %v57
    %v62 = vmul.f32 %v33, %v58
    %v63 = vmul.f32 %v34, %v59
    %v64 = vld [vmem:[%s2] sm:$0xff]
    %v65 = vld [vmem:[%s2 + $0x8] sm:$0xff]
    %v66 = vld [vmem:[%s2 + $0x10] sm:$0xff]
    %v67 = vld [vmem:[%s2 + $0x18] sm:$0xff]
    %v68 = vld [vmem:[%s2 + $0x60] sm:$0x1]
    %v69 = vlaneseq
    %v70 = vshrl.u32 %v69, 7
    %v71 = vsub.s32 0, %v70
    %v72 = vrot.slane %v68, %v71
    %vm73 = vcmask 261120
    %v75 = vsel %vm73, %v22, 0
    %v78 = vsel %vm73, %v23, 0
    %80 = vmatprep.subr.mxu0 0.0
    %81 = vmatpush1.msra.mxu0 0.0
    %82 = vmatprep.subr.mxu0 0.0
    %83 = vmatpush1.msra.mxu0 0.0
    %84 = vmatprep.subr.mxu0 0.0
    %85 = vmatpush1.msra.mxu0 0.0
    %86 = vmatprep.subr.mxu0 0.0
    %87 = vmatpush1.msra.mxu0 0.0
    %88 = vmatprep.subr.mxu0 0.0
    %89 = vmatpush1.msra.mxu0 0.0
    %90 = vmatprep.subr.mxu0 0.0
    %91 = vmatpush1.msra.mxu0 0.0
    %92 = vmatprep.subr.mxu0 0.0
    %93 = vmatpush1.msra.mxu0 0.0
    %94 = vmatprep.subr.mxu0 0.0
    %95 = vmatpush1.msra.mxu0 0.0
    %96 = vmatprep.subr.mxu0 0.0
    %97 = vmatpush1.msra.mxu0 0.0
    %98 = vmatprep.subr.mxu0 0.0
    %99 = vmatpush1.msra.mxu0 0.0
    %100 = vmatprep.subr.mxu0 0.0
    %101 = vmatpush1.msra.mxu0 0.0
    %102 = vmatprep.subr.mxu0 0.0
    %103 = vmatpush1.msra.mxu0 0.0
    %104 = vmatprep.subr.mxu0 0.0
    %v105 = vand.u32 %v67, 4294901760
    %106 = vmatpush1.msra.mxu0 %v105
    %107 = vmatprep.subr.mxu0 0.0
    %v108 = vand.u32 %v66, 4294901760
    %109 = vmatpush1.msra.mxu0 %v108
    %110 = vmatprep.subr.mxu0 0.0
    %v111 = vand.u32 %v65, 4294901760
    %112 = vmatpush1.msra.mxu0 %v111
    %113 = vmatprep.subr.mxu0 0.0
    %v114 = vand.u32 %v64, 4294901760
    %115 = vmatpush1.msra.mxu0 %v114
    %116 = vmatprep.subr.mxu0 0.0
    %117 = vmatpush2.msra.mxu0 0.0
    %118 = vmatprep.subr.mxu0 0.0
    %119 = vmatpush2.msra.mxu0 0.0
    %120 = vmatprep.subr.mxu0 0.0
    %121 = vmatpush2.msra.mxu0 0.0
    %122 = vmatprep.subr.mxu0 0.0
    %123 = vmatpush2.msra.mxu0 0.0
    %124 = vmatprep.subr.mxu0 0.0
    %125 = vmatpush2.msra.mxu0 0.0
    %126 = vmatprep.subr.mxu0 0.0
    %127 = vmatpush2.msra.mxu0 0.0
    %128 = vmatprep.subr.mxu0 0.0
    %129 = vmatpush2.msra.mxu0 0.0
    %130 = vmatprep.subr.mxu0 0.0
    %131 = vmatpush2.msra.mxu0 0.0
    %132 = vmatprep.subr.mxu0 0.0
    %133 = vmatpush2.msra.mxu0 0.0
    %134 = vmatprep.subr.mxu0 0.0
    %135 = vmatpush2.msra.mxu0 0.0
    %136 = vmatprep.subr.mxu0 0.0
    %137 = vmatpush2.msra.mxu0 0.0
    %138 = vmatprep.subr.mxu0 0.0
    %139 = vmatpush2.msra.mxu0 0.0
    %140 = vmatprep.subr.mxu0 0.0
    %141 = vmatpush2.msra.mxu0 0.0
    %142 = vmatprep.subr.mxu0 0.0
    %143 = vmatpush2.msra.mxu0 0.0
    %144 = vmatprep.subr.mxu0 0.0
    %145 = vmatpush2.msra.mxu0 0.0
    %146 = vmatprep.subr.mxu0 0.0
    %147 = vmatpush2.msra.mxu0 0.0
    %148 = vmatprep.mubr.f32.mxu0 0.0
    %v149 = vand.u32 %v75, 4294901760
    %v150 = vsub.f32 %v75, %v149
    %v151 = vand.u32 %v150, 4294901760
    %v152 = vsub.f32 %v150, %v151
    %v153 = vand.u32 %v152, 4294901760
    %154 = vmatmul.mubr.f32.gmra.mxu0 %v153
    %v155 = vpop.f32.mrf.mxu0
    %v156 = vadd.f32 %v72, %v155
    %v157 = vpop.f32.mrf.mxu0
    %158 = vmatprep.mubr.f32.mxu0 0.0
    %v159 = vand.u32 %v78, 4294901760
    %v160 = vsub.f32 %v78, %v159
    %v161 = vand.u32 %v160, 4294901760
    %v162 = vsub.f32 %v160, %v161
    %v163 = vand.u32 %v162, 4294901760
    %164 = vmatmul.mubr.f32.gmra.mxu0 %v163
    %v165 = vpop.f32.mrf.mxu0
    %v166 = vadd.f32 %v72, %v165
    %v167 = vpop.f32.mrf.mxu0
    %168 = vdwg.mxu0
    %169 = vmatprep.subr.mxu0 0.0
    %170 = vmatpush1.msra.mxu0 0.0
    %171 = vmatprep.subr.mxu0 0.0
    %172 = vmatpush1.msra.mxu0 0.0
    %173 = vmatprep.subr.mxu0 0.0
    %174 = vmatpush1.msra.mxu0 0.0
    %175 = vmatprep.subr.mxu0 0.0
    %176 = vmatpush1.msra.mxu0 0.0
    %177 = vmatprep.subr.mxu0 0.0
    %178 = vmatpush1.msra.mxu0 0.0
    %179 = vmatprep.subr.mxu0 0.0
    %180 = vmatpush1.msra.mxu0 0.0
    %181 = vmatprep.subr.mxu0 0.0
    %182 = vmatpush1.msra.mxu0 0.0
    %183 = vmatprep.subr.mxu0 0.0
    %184 = vmatpush1.msra.mxu0 0.0
    %185 = vmatprep.subr.mxu0 0.0
    %186 = vmatpush1.msra.mxu0 0.0
    %187 = vmatprep.subr.mxu0 0.0
    %188 = vmatpush1.msra.mxu0 0.0
    %189 = vmatprep.subr.mxu0 0.0
    %190 = vmatpush1.msra.mxu0 0.0
    %191 = vmatprep.subr.mxu0 0.0
    %192 = vmatpush1.msra.mxu0 0.0
    %193 = vmatprep.subr.mxu0 0.0
    %v194 = vand.u32 %v67, 4294901760
    %v195 = vsub.f32 %v67, %v194
    %v196 = vand.u32 %v195, 4294901760
    %v197 = vsub.f32 %v195, %v196
    %v198 = vand.u32 %v197, 4294901760
    %199 = vmatpush1.msra.mxu0 %v198
    %200 = vmatprep.subr.mxu0 0.0
    %v201 = vand.u32 %v66, 4294901760
    %v202 = vsub.f32 %v66, %v201
    %v203 = vand.u32 %v202, 4294901760
    %v204 = vsub.f32 %v202, %v203
    %v205 = vand.u32 %v204, 4294901760
    %206 = vmatpush1.msra.mxu0 %v205
    %207 = vmatprep.subr.mxu0 0.0
    %v208 = vand.u32 %v65, 4294901760
    %v209 = vsub.f32 %v65, %v208
    %v210 = vand.u32 %v209, 4294901760
    %v211 = vsub.f32 %v209, %v210
    %v212 = vand.u32 %v211, 4294901760
    %213 = vmatpush1.msra.mxu0 %v212
    %214 = vmatprep.subr.mxu0 0.0
    %v215 = vand.u32 %v64, 4294901760
    %v216 = vsub.f32 %v64, %v215
    %v217 = vand.u32 %v216, 4294901760
    %v218 = vsub.f32 %v216, %v217
    %v219 = vand.u32 %v218, 4294901760
    %220 = vmatpush1.msra.mxu0 %v219
    %221 = vmatprep.subr.mxu0 0.0
    %222 = vmatpush2.msra.mxu0 0.0
    %223 = vmatprep.subr.mxu0 0.0
    %224 = vmatpush2.msra.mxu0 0.0
    %225 = vmatprep.subr.mxu0 0.0
    %226 = vmatpush2.msra.mxu0 0.0
    %227 = vmatprep.subr.mxu0 0.0
    %228 = vmatpush2.msra.mxu0 0.0
    %229 = vmatprep.subr.mxu0 0.0
    %230 = vmatpush2.msra.mxu0 0.0
    %231 = vmatprep.subr.mxu0 0.0
    %232 = vmatpush2.msra.mxu0 0.0
    %233 = vmatprep.subr.mxu0 0.0
    %234 = vmatpush2.msra.mxu0 0.0
    %235 = vmatprep.subr.mxu0 0.0
    %236 = vmatpush2.msra.mxu0 0.0
    %237 = vmatprep.subr.mxu0 0.0
    %238 = vmatpush2.msra.mxu0 0.0
    %239 = vmatprep.subr.mxu0 0.0
    %240 = vmatpush2.msra.mxu0 0.0
    %241 = vmatprep.subr.mxu0 0.0
    %242 = vmatpush2.msra.mxu0 0.0
    %243 = vmatprep.subr.mxu0 0.0
    %244 = vmatpush2.msra.mxu0 0.0
    %245 = vmatprep.subr.mxu0 0.0
    %246 = vmatpush2.msra.mxu0 0.0
    %247 = vmatprep.subr.mxu0 0.0
    %248 = vmatpush2.msra.mxu0 0.0
    %249 = vmatprep.subr.mxu0 0.0
    %250 = vmatpush2.msra.mxu0 0.0
    %251 = vmatprep.subr.mxu0 0.0
    %252 = vmatpush2.msra.mxu0 0.0
    %253 = vmatprep.mubr.f32.mxu0 0.0
    %v254 = vand.u32 %v75, 4294901760
    %255 = vmatmul.mubr.f32.gmra.mxu0 %v254
    %v256 = vpop.f32.mrf.mxu0
    %v257 = vadd.f32 %v156, %v256
    %v258 = vpop.f32.mrf.mxu0
    %259 = vmatprep.mubr.f32.mxu0 0.0
    %v260 = vand.u32 %v78, 4294901760
    %261 = vmatmul.mubr.f32.gmra.mxu0 %v260
    %v262 = vpop.f32.mrf.mxu0
    %v263 = vadd.f32 %v166, %v262
    %v264 = vpop.f32.mrf.mxu0
    %265 = vdwg.mxu0
    %266 = vmatprep.subr.mxu0 0.0
    %267 = vmatpush1.msra.mxu0 0.0
    %268 = vmatprep.subr.mxu0 0.0
    %269 = vmatpush1.msra.mxu0 0.0
    %270 = vmatprep.subr.mxu0 0.0
    %271 = vmatpush1.msra.mxu0 0.0
    %272 = vmatprep.subr.mxu0 0.0
    %273 = vmatpush1.msra.mxu0 0.0
    %274 = vmatprep.subr.mxu0 0.0
    %275 = vmatpush1.msra.mxu0 0.0
    %276 = vmatprep.subr.mxu0 0.0
    %277 = vmatpush1.msra.mxu0 0.0
    %278 = vmatprep.subr.mxu0 0.0
    %279 = vmatpush1.msra.mxu0 0.0
    %280 = vmatprep.subr.mxu0 0.0
    %281 = vmatpush1.msra.mxu0 0.0
    %282 = vmatprep.subr.mxu0 0.0
    %283 = vmatpush1.msra.mxu0 0.0
    %284 = vmatprep.subr.mxu0 0.0
    %285 = vmatpush1.msra.mxu0 0.0
    %286 = vmatprep.subr.mxu0 0.0
    %287 = vmatpush1.msra.mxu0 0.0
    %288 = vmatprep.subr.mxu0 0.0
    %289 = vmatpush1.msra.mxu0 0.0
    %290 = vmatprep.subr.mxu0 0.0
    %v291 = vand.u32 %v67, 4294901760
    %v292 = vsub.f32 %v67, %v291
    %293 = vmatpush1.msra.mxu0 %v292
    %294 = vmatprep.subr.mxu0 0.0
    %v295 = vand.u32 %v66, 4294901760
    %v296 = vsub.f32 %v66, %v295
    %297 = vmatpush1.msra.mxu0 %v296
    %298 = vmatprep.subr.mxu0 0.0
    %v299 = vand.u32 %v65, 4294901760
    %v300 = vsub.f32 %v65, %v299
    %301 = vmatpush1.msra.mxu0 %v300
    %302 = vmatprep.subr.mxu0 0.0
    %v303 = vand.u32 %v64, 4294901760
    %v304 = vsub.f32 %v64, %v303
    %305 = vmatpush1.msra.mxu0 %v304
    %306 = vmatprep.subr.mxu0 0.0
    %307 = vmatpush2.msra.mxu0 0.0
    %308 = vmatprep.subr.mxu0 0.0
    %309 = vmatpush2.msra.mxu0 0.0
    %310 = vmatprep.subr.mxu0 0.0
    %311 = vmatpush2.msra.mxu0 0.0
    %312 = vmatprep.subr.mxu0 0.0
    %313 = vmatpush2.msra.mxu0 0.0
    %314 = vmatprep.subr.mxu0 0.0
    %315 = vmatpush2.msra.mxu0 0.0
    %316 = vmatprep.subr.mxu0 0.0
    %317 = vmatpush2.msra.mxu0 0.0
    %318 = vmatprep.subr.mxu0 0.0
    %319 = vmatpush2.msra.mxu0 0.0
    %320 = vmatprep.subr.mxu0 0.0
    %321 = vmatpush2.msra.mxu0 0.0
    %322 = vmatprep.subr.mxu0 0.0
    %323 = vmatpush2.msra.mxu0 0.0
    %324 = vmatprep.subr.mxu0 0.0
    %325 = vmatpush2.msra.mxu0 0.0
    %326 = vmatprep.subr.mxu0 0.0
    %327 = vmatpush2.msra.mxu0 0.0
    %328 = vmatprep.subr.mxu0 0.0
    %329 = vmatpush2.msra.mxu0 0.0
    %330 = vmatprep.subr.mxu0 0.0
    %331 = vmatpush2.msra.mxu0 0.0
    %332 = vmatprep.subr.mxu0 0.0
    %333 = vmatpush2.msra.mxu0 0.0
    %334 = vmatprep.subr.mxu0 0.0
    %335 = vmatpush2.msra.mxu0 0.0
    %336 = vmatprep.subr.mxu0 0.0
    %337 = vmatpush2.msra.mxu0 0.0
    %338 = vmatprep.mubr.f32.mxu0 0.0
    %v339 = vand.u32 %v75, 4294901760
    %v340 = vsub.f32 %v75, %v339
    %341 = vmatmul.mubr.f32.gmra.mxu0 %v340
    %v342 = vpop.f32.mrf.mxu0
    %v343 = vadd.f32 %v257, %v342
    %v344 = vpop.f32.mrf.mxu0
    %345 = vmatprep.mubr.f32.mxu0 0.0
    %v346 = vand.u32 %v78, 4294901760
    %v347 = vsub.f32 %v78, %v346
    %348 = vmatmul.mubr.f32.gmra.mxu0 %v347
    %v349 = vpop.f32.mrf.mxu0
    %v350 = vadd.f32 %v263, %v349
    %v351 = vpop.f32.mrf.mxu0
    %352 = vdwg.mxu0
    %353 = vmatprep.subr.mxu0 0.0
    %354 = vmatpush1.msra.mxu0 0.0
    %355 = vmatprep.subr.mxu0 0.0
    %356 = vmatpush1.msra.mxu0 0.0
    %357 = vmatprep.subr.mxu0 0.0
    %358 = vmatpush1.msra.mxu0 0.0
    %359 = vmatprep.subr.mxu0 0.0
    %360 = vmatpush1.msra.mxu0 0.0
    %361 = vmatprep.subr.mxu0 0.0
    %362 = vmatpush1.msra.mxu0 0.0
    %363 = vmatprep.subr.mxu0 0.0
    %364 = vmatpush1.msra.mxu0 0.0
    %365 = vmatprep.subr.mxu0 0.0
    %366 = vmatpush1.msra.mxu0 0.0
    %367 = vmatprep.subr.mxu0 0.0
    %368 = vmatpush1.msra.mxu0 0.0
    %369 = vmatprep.subr.mxu0 0.0
    %370 = vmatpush1.msra.mxu0 0.0
    %371 = vmatprep.subr.mxu0 0.0
    %372 = vmatpush1.msra.mxu0 0.0
    %373 = vmatprep.subr.mxu0 0.0
    %374 = vmatpush1.msra.mxu0 0.0
    %375 = vmatprep.subr.mxu0 0.0
    %376 = vmatpush1.msra.mxu0 0.0
    %377 = vmatprep.subr.mxu0 0.0
    %v378 = vand.u32 %v67, 4294901760
    %379 = vmatpush1.msra.mxu0 %v378
    %380 = vmatprep.subr.mxu0 0.0
    %v381 = vand.u32 %v66, 4294901760
    %382 = vmatpush1.msra.mxu0 %v381
    %383 = vmatprep.subr.mxu0 0.0
    %v384 = vand.u32 %v65, 4294901760
    %385 = vmatpush1.msra.mxu0 %v384
    %386 = vmatprep.subr.mxu0 0.0
    %v387 = vand.u32 %v64, 4294901760
    %388 = vmatpush1.msra.mxu0 %v387
    %389 = vmatprep.subr.mxu0 0.0
    %390 = vmatpush2.msra.mxu0 0.0
    %391 = vmatprep.subr.mxu0 0.0
    %392 = vmatpush2.msra.mxu0 0.0
    %393 = vmatprep.subr.mxu0 0.0
    %394 = vmatpush2.msra.mxu0 0.0
    %395 = vmatprep.subr.mxu0 0.0
    %396 = vmatpush2.msra.mxu0 0.0
    %397 = vmatprep.subr.mxu0 0.0
    %398 = vmatpush2.msra.mxu0 0.0
    %399 = vmatprep.subr.mxu0 0.0
    %400 = vmatpush2.msra.mxu0 0.0
    %401 = vmatprep.subr.mxu0 0.0
    %402 = vmatpush2.msra.mxu0 0.0
    %403 = vmatprep.subr.mxu0 0.0
    %404 = vmatpush2.msra.mxu0 0.0
    %405 = vmatprep.subr.mxu0 0.0
    %406 = vmatpush2.msra.mxu0 0.0
    %407 = vmatprep.subr.mxu0 0.0
    %408 = vmatpush2.msra.mxu0 0.0
    %409 = vmatprep.subr.mxu0 0.0
    %410 = vmatpush2.msra.mxu0 0.0
    %411 = vmatprep.subr.mxu0 0.0
    %412 = vmatpush2.msra.mxu0 0.0
    %413 = vmatprep.subr.mxu0 0.0
    %414 = vmatpush2.msra.mxu0 0.0
    %415 = vmatprep.subr.mxu0 0.0
    %416 = vmatpush2.msra.mxu0 0.0
    %417 = vmatprep.subr.mxu0 0.0
    %418 = vmatpush2.msra.mxu0 0.0
    %419 = vmatprep.subr.mxu0 0.0
    %420 = vmatpush2.msra.mxu0 0.0
    %421 = vmatprep.mubr.f32.mxu0 0.0
    %v422 = vand.u32 %v75, 4294901760
    %v423 = vsub.f32 %v75, %v422
    %v424 = vand.u32 %v423, 4294901760
    %425 = vmatmul.mubr.f32.gmra.mxu0 %v424
    %v426 = vpop.f32.mrf.mxu0
    %v427 = vadd.f32 %v343, %v426
    %v428 = vpop.f32.mrf.mxu0
    %429 = vmatprep.mubr.f32.mxu0 0.0
    %v430 = vand.u32 %v78, 4294901760
    %v431 = vsub.f32 %v78, %v430
    %v432 = vand.u32 %v431, 4294901760
    %433 = vmatmul.mubr.f32.gmra.mxu0 %v432
    %v434 = vpop.f32.mrf.mxu0
    %v435 = vadd.f32 %v350, %v434
    %v436 = vpop.f32.mrf.mxu0
    %437 = vdwg.mxu0
    %438 = vmatprep.subr.mxu0 0.0
    %439 = vmatpush1.msra.mxu0 0.0
    %440 = vmatprep.subr.mxu0 0.0
    %441 = vmatpush1.msra.mxu0 0.0
    %442 = vmatprep.subr.mxu0 0.0
    %443 = vmatpush1.msra.mxu0 0.0
    %444 = vmatprep.subr.mxu0 0.0
    %445 = vmatpush1.msra.mxu0 0.0
    %446 = vmatprep.subr.mxu0 0.0
    %447 = vmatpush1.msra.mxu0 0.0
    %448 = vmatprep.subr.mxu0 0.0
    %449 = vmatpush1.msra.mxu0 0.0
    %450 = vmatprep.subr.mxu0 0.0
    %451 = vmatpush1.msra.mxu0 0.0
    %452 = vmatprep.subr.mxu0 0.0
    %453 = vmatpush1.msra.mxu0 0.0
    %454 = vmatprep.subr.mxu0 0.0
    %455 = vmatpush1.msra.mxu0 0.0
    %456 = vmatprep.subr.mxu0 0.0
    %457 = vmatpush1.msra.mxu0 0.0
    %458 = vmatprep.subr.mxu0 0.0
    %459 = vmatpush1.msra.mxu0 0.0
    %460 = vmatprep.subr.mxu0 0.0
    %461 = vmatpush1.msra.mxu0 0.0
    %462 = vmatprep.subr.mxu0 0.0
    %v463 = vand.u32 %v67, 4294901760
    %v464 = vsub.f32 %v67, %v463
    %v465 = vand.u32 %v464, 4294901760
    %466 = vmatpush1.msra.mxu0 %v465
    %467 = vmatprep.subr.mxu0 0.0
    %v468 = vand.u32 %v66, 4294901760
    %v469 = vsub.f32 %v66, %v468
    %v470 = vand.u32 %v469, 4294901760
    %471 = vmatpush1.msra.mxu0 %v470
    %472 = vmatprep.subr.mxu0 0.0
    %v473 = vand.u32 %v65, 4294901760
    %v474 = vsub.f32 %v65, %v473
    %v475 = vand.u32 %v474, 4294901760
    %476 = vmatpush1.msra.mxu0 %v475
    %477 = vmatprep.subr.mxu0 0.0
    %v478 = vand.u32 %v64, 4294901760
    %v479 = vsub.f32 %v64, %v478
    %v480 = vand.u32 %v479, 4294901760
    %481 = vmatpush1.msra.mxu0 %v480
    %482 = vmatprep.subr.mxu0 0.0
    %483 = vmatpush2.msra.mxu0 0.0
    %484 = vmatprep.subr.mxu0 0.0
    %485 = vmatpush2.msra.mxu0 0.0
    %486 = vmatprep.subr.mxu0 0.0
    %487 = vmatpush2.msra.mxu0 0.0
    %488 = vmatprep.subr.mxu0 0.0
    %489 = vmatpush2.msra.mxu0 0.0
    %490 = vmatprep.subr.mxu0 0.0
    %491 = vmatpush2.msra.mxu0 0.0
    %492 = vmatprep.subr.mxu0 0.0
    %493 = vmatpush2.msra.mxu0 0.0
    %494 = vmatprep.subr.mxu0 0.0
    %495 = vmatpush2.msra.mxu0 0.0
    %496 = vmatprep.subr.mxu0 0.0
    %497 = vmatpush2.msra.mxu0 0.0
    %498 = vmatprep.subr.mxu0 0.0
    %499 = vmatpush2.msra.mxu0 0.0
    %500 = vmatprep.subr.mxu0 0.0
    %501 = vmatpush2.msra.mxu0 0.0
    %502 = vmatprep.subr.mxu0 0.0
    %503 = vmatpush2.msra.mxu0 0.0
    %504 = vmatprep.subr.mxu0 0.0
    %505 = vmatpush2.msra.mxu0 0.0
    %506 = vmatprep.subr.mxu0 0.0
    %507 = vmatpush2.msra.mxu0 0.0
    %508 = vmatprep.subr.mxu0 0.0
    %509 = vmatpush2.msra.mxu0 0.0
    %510 = vmatprep.subr.mxu0 0.0
    %511 = vmatpush2.msra.mxu0 0.0
    %512 = vmatprep.subr.mxu0 0.0
    %513 = vmatpush2.msra.mxu0 0.0
    %514 = vmatprep.mubr.f32.mxu0 0.0
    %v515 = vand.u32 %v75, 4294901760
    %516 = vmatmul.mubr.f32.gmra.mxu0 %v515
    %v517 = vpop.f32.mrf.mxu0
    %v518 = vadd.f32 %v427, %v517
    %v519 = vpop.f32.mrf.mxu0
    %520 = vmatprep.mubr.f32.mxu0 0.0
    %v521 = vand.u32 %v78, 4294901760
    %522 = vmatmul.mubr.f32.gmra.mxu0 %v521
    %v523 = vpop.f32.mrf.mxu0
    %v524 = vadd.f32 %v435, %v523
    %v525 = vpop.f32.mrf.mxu0
    %526 = vdwg.mxu0
    %527 = vmatprep.subr.mxu0 0.0
    %528 = vmatpush1.msra.mxu0 0.0
    %529 = vmatprep.subr.mxu0 0.0
    %530 = vmatpush1.msra.mxu0 0.0
    %531 = vmatprep.subr.mxu0 0.0
    %532 = vmatpush1.msra.mxu0 0.0
    %533 = vmatprep.subr.mxu0 0.0
    %534 = vmatpush1.msra.mxu0 0.0
    %535 = vmatprep.subr.mxu0 0.0
    %536 = vmatpush1.msra.mxu0 0.0
    %537 = vmatprep.subr.mxu0 0.0
    %538 = vmatpush1.msra.mxu0 0.0
    %539 = vmatprep.subr.mxu0 0.0
    %540 = vmatpush1.msra.mxu0 0.0
    %541 = vmatprep.subr.mxu0 0.0
    %542 = vmatpush1.msra.mxu0 0.0
    %543 = vmatprep.subr.mxu0 0.0
    %544 = vmatpush1.msra.mxu0 0.0
    %545 = vmatprep.subr.mxu0 0.0
    %546 = vmatpush1.msra.mxu0 0.0
    %547 = vmatprep.subr.mxu0 0.0
    %548 = vmatpush1.msra.mxu0 0.0
    %549 = vmatprep.subr.mxu0 0.0
    %550 = vmatpush1.msra.mxu0 0.0
    %551 = vmatprep.subr.mxu0 0.0
    %v552 = vand.u32 %v67, 4294901760
    %553 = vmatpush1.msra.mxu0 %v552
    %554 = vmatprep.subr.mxu0 0.0
    %v555 = vand.u32 %v66, 4294901760
    %556 = vmatpush1.msra.mxu0 %v555
    %557 = vmatprep.subr.mxu0 0.0
    %v558 = vand.u32 %v65, 4294901760
    %559 = vmatpush1.msra.mxu0 %v558
    %560 = vmatprep.subr.mxu0 0.0
    %v561 = vand.u32 %v64, 4294901760
    %562 = vmatpush1.msra.mxu0 %v561
    %563 = vmatprep.subr.mxu0 0.0
    %564 = vmatpush2.msra.mxu0 0.0
    %565 = vmatprep.subr.mxu0 0.0
    %566 = vmatpush2.msra.mxu0 0.0
    %567 = vmatprep.subr.mxu0 0.0
    %568 = vmatpush2.msra.mxu0 0.0
    %569 = vmatprep.subr.mxu0 0.0
    %570 = vmatpush2.msra.mxu0 0.0
    %571 = vmatprep.subr.mxu0 0.0
    %572 = vmatpush2.msra.mxu0 0.0
    %573 = vmatprep.subr.mxu0 0.0
    %574 = vmatpush2.msra.mxu0 0.0
    %575 = vmatprep.subr.mxu0 0.0
    %576 = vmatpush2.msra.mxu0 0.0
    %577 = vmatprep.subr.mxu0 0.0
    %578 = vmatpush2.msra.mxu0 0.0
    %579 = vmatprep.subr.mxu0 0.0
    %580 = vmatpush2.msra.mxu0 0.0
    %581 = vmatprep.subr.mxu0 0.0
    %582 = vmatpush2.msra.mxu0 0.0
    %583 = vmatprep.subr.mxu0 0.0
    %584 = vmatpush2.msra.mxu0 0.0
    %585 = vmatprep.subr.mxu0 0.0
    %586 = vmatpush2.msra.mxu0 0.0
    %587 = vmatprep.subr.mxu0 0.0
    %588 = vmatpush2.msra.mxu0 0.0
    %589 = vmatprep.subr.mxu0 0.0
    %590 = vmatpush2.msra.mxu0 0.0
    %591 = vmatprep.subr.mxu0 0.0
    %592 = vmatpush2.msra.mxu0 0.0
    %593 = vmatprep.subr.mxu0 0.0
    %594 = vmatpush2.msra.mxu0 0.0
    %595 = vmatprep.mubr.f32.mxu0 0.0
    %v596 = vand.u32 %v75, 4294901760
    %597 = vmatmul.mubr.f32.gmra.mxu0 %v596
    %v598 = vpop.f32.mrf.mxu0
    %v599 = vadd.f32 %v518, %v598
    %v600 = vpop.f32.mrf.mxu0
    %601 = vmatprep.mubr.f32.mxu0 0.0
    %v602 = vand.u32 %v78, 4294901760
    %603 = vmatmul.mubr.f32.gmra.mxu0 %v602
    %v604 = vpop.f32.mrf.mxu0
    %v605 = vadd.f32 %v524, %v604
    %v606 = vpop.f32.mrf.mxu0
    %607 = vdwg.mxu0
    %v608 = vld [vmem:[%s2 + $0x20] sm:$0xff]
    %v609 = vld [vmem:[%s2 + $0x28] sm:$0xff]
    %v610 = vld [vmem:[%s2 + $0x30] sm:$0xff]
    %v611 = vld [vmem:[%s2 + $0x38] sm:$0xff]
    %612 = vmatprep.subr.mxu0 0.0
    %613 = vmatpush1.msra.mxu0 0.0
    %614 = vmatprep.subr.mxu0 0.0
    %615 = vmatpush1.msra.mxu0 0.0
    %616 = vmatprep.subr.mxu0 0.0
    %617 = vmatpush1.msra.mxu0 0.0
    %618 = vmatprep.subr.mxu0 0.0
    %619 = vmatpush1.msra.mxu0 0.0
    %620 = vmatprep.subr.mxu0 0.0
    %621 = vmatpush1.msra.mxu0 0.0
    %622 = vmatprep.subr.mxu0 0.0
    %623 = vmatpush1.msra.mxu0 0.0
    %624 = vmatprep.subr.mxu0 0.0
    %625 = vmatpush1.msra.mxu0 0.0
    %626 = vmatprep.subr.mxu0 0.0
    %627 = vmatpush1.msra.mxu0 0.0
    %628 = vmatprep.subr.mxu0 0.0
    %629 = vmatpush1.msra.mxu0 0.0
    %630 = vmatprep.subr.mxu0 0.0
    %631 = vmatpush1.msra.mxu0 0.0
    %632 = vmatprep.subr.mxu0 0.0
    %633 = vmatpush1.msra.mxu0 0.0
    %634 = vmatprep.subr.mxu0 0.0
    %635 = vmatpush1.msra.mxu0 0.0
    %636 = vmatprep.subr.mxu0 0.0
    %v637 = vand.u32 %v611, 4294901760
    %638 = vmatpush1.msra.mxu0 %v637
    %639 = vmatprep.subr.mxu0 0.0
    %v640 = vand.u32 %v610, 4294901760
    %641 = vmatpush1.msra.mxu0 %v640
    %642 = vmatprep.subr.mxu0 0.0
    %v643 = vand.u32 %v609, 4294901760
    %644 = vmatpush1.msra.mxu0 %v643
    %645 = vmatprep.subr.mxu0 0.0
    %v646 = vand.u32 %v608, 4294901760
    %647 = vmatpush1.msra.mxu0 %v646
    %648 = vmatprep.subr.mxu0 0.0
    %649 = vmatpush2.msra.mxu0 0.0
    %650 = vmatprep.subr.mxu0 0.0
    %651 = vmatpush2.msra.mxu0 0.0
    %652 = vmatprep.subr.mxu0 0.0
    %653 = vmatpush2.msra.mxu0 0.0
    %654 = vmatprep.subr.mxu0 0.0
    %655 = vmatpush2.msra.mxu0 0.0
    %656 = vmatprep.subr.mxu0 0.0
    %657 = vmatpush2.msra.mxu0 0.0
    %658 = vmatprep.subr.mxu0 0.0
    %659 = vmatpush2.msra.mxu0 0.0
    %660 = vmatprep.subr.mxu0 0.0
    %661 = vmatpush2.msra.mxu0 0.0
    %662 = vmatprep.subr.mxu0 0.0
    %663 = vmatpush2.msra.mxu0 0.0
    %664 = vmatprep.subr.mxu0 0.0
    %665 = vmatpush2.msra.mxu0 0.0
    %666 = vmatprep.subr.mxu0 0.0
    %667 = vmatpush2.msra.mxu0 0.0
    %668 = vmatprep.subr.mxu0 0.0
    %669 = vmatpush2.msra.mxu0 0.0
    %670 = vmatprep.subr.mxu0 0.0
    %671 = vmatpush2.msra.mxu0 0.0
    %672 = vmatprep.subr.mxu0 0.0
    %673 = vmatpush2.msra.mxu0 0.0
    %674 = vmatprep.subr.mxu0 0.0
    %675 = vmatpush2.msra.mxu0 0.0
    %676 = vmatprep.subr.mxu0 0.0
    %677 = vmatpush2.msra.mxu0 0.0
    %678 = vmatprep.subr.mxu0 0.0
    %679 = vmatpush2.msra.mxu0 0.0
    %680 = vmatprep.mubr.f32.mxu0 0.0
    %v681 = vand.u32 %v75, 4294901760
    %v682 = vsub.f32 %v75, %v681
    %v683 = vand.u32 %v682, 4294901760
    %v684 = vsub.f32 %v682, %v683
    %v685 = vand.u32 %v684, 4294901760
    %686 = vmatmul.mubr.f32.gmra.mxu0 %v685
    %v687 = vpop.f32.mrf.mxu0
    %v688 = vadd.f32 0.0, %v687
    %v689 = vpop.f32.mrf.mxu0
    %690 = vmatprep.mubr.f32.mxu0 0.0
    %v691 = vand.u32 %v78, 4294901760
    %v692 = vsub.f32 %v78, %v691
    %v693 = vand.u32 %v692, 4294901760
    %v694 = vsub.f32 %v692, %v693
    %v695 = vand.u32 %v694, 4294901760
    %696 = vmatmul.mubr.f32.gmra.mxu0 %v695
    %v697 = vpop.f32.mrf.mxu0
    %v698 = vadd.f32 0.0, %v697
    %v699 = vpop.f32.mrf.mxu0
    %700 = vdwg.mxu0
    %701 = vmatprep.subr.mxu0 0.0
    %702 = vmatpush1.msra.mxu0 0.0
    %703 = vmatprep.subr.mxu0 0.0
    %704 = vmatpush1.msra.mxu0 0.0
    %705 = vmatprep.subr.mxu0 0.0
    %706 = vmatpush1.msra.mxu0 0.0
    %707 = vmatprep.subr.mxu0 0.0
    %708 = vmatpush1.msra.mxu0 0.0
    %709 = vmatprep.subr.mxu0 0.0
    %710 = vmatpush1.msra.mxu0 0.0
    %711 = vmatprep.subr.mxu0 0.0
    %712 = vmatpush1.msra.mxu0 0.0
    %713 = vmatprep.subr.mxu0 0.0
    %714 = vmatpush1.msra.mxu0 0.0
    %715 = vmatprep.subr.mxu0 0.0
    %716 = vmatpush1.msra.mxu0 0.0
    %717 = vmatprep.subr.mxu0 0.0
    %718 = vmatpush1.msra.mxu0 0.0
    %719 = vmatprep.subr.mxu0 0.0
    %720 = vmatpush1.msra.mxu0 0.0
    %721 = vmatprep.subr.mxu0 0.0
    %722 = vmatpush1.msra.mxu0 0.0
    %723 = vmatprep.subr.mxu0 0.0
    %724 = vmatpush1.msra.mxu0 0.0
    %725 = vmatprep.subr.mxu0 0.0
    %v726 = vand.u32 %v611, 4294901760
    %v727 = vsub.f32 %v611, %v726
    %v728 = vand.u32 %v727, 4294901760
    %v729 = vsub.f32 %v727, %v728
    %v730 = vand.u32 %v729, 4294901760
    %731 = vmatpush1.msra.mxu0 %v730
    %732 = vmatprep.subr.mxu0 0.0
    %v733 = vand.u32 %v610, 4294901760
    %v734 = vsub.f32 %v610, %v733
    %v735 = vand.u32 %v734, 4294901760
    %v736 = vsub.f32 %v734, %v735
    %v737 = vand.u32 %v736, 4294901760
    %738 = vmatpush1.msra.mxu0 %v737
    %739 = vmatprep.subr.mxu0 0.0
    %v740 = vand.u32 %v609, 4294901760
    %v741 = vsub.f32 %v609, %v740
    %v742 = vand.u32 %v741, 4294901760
    %v743 = vsub.f32 %v741, %v742
    %v744 = vand.u32 %v743, 4294901760
    %745 = vmatpush1.msra.mxu0 %v744
    %746 = vmatprep.subr.mxu0 0.0
    %v747 = vand.u32 %v608, 4294901760
    %v748 = vsub.f32 %v608, %v747
    %v749 = vand.u32 %v748, 4294901760
    %v750 = vsub.f32 %v748, %v749
    %v751 = vand.u32 %v750, 4294901760
    %752 = vmatpush1.msra.mxu0 %v751
    %753 = vmatprep.subr.mxu0 0.0
    %754 = vmatpush2.msra.mxu0 0.0
    %755 = vmatprep.subr.mxu0 0.0
    %756 = vmatpush2.msra.mxu0 0.0
    %757 = vmatprep.subr.mxu0 0.0
    %758 = vmatpush2.msra.mxu0 0.0
    %759 = vmatprep.subr.mxu0 0.0
    %760 = vmatpush2.msra.mxu0 0.0
    %761 = vmatprep.subr.mxu0 0.0
    %762 = vmatpush2.msra.mxu0 0.0
    %763 = vmatprep.subr.mxu0 0.0
    %764 = vmatpush2.msra.mxu0 0.0
    %765 = vmatprep.subr.mxu0 0.0
    %766 = vmatpush2.msra.mxu0 0.0
    %767 = vmatprep.subr.mxu0 0.0
    %768 = vmatpush2.msra.mxu0 0.0
    %769 = vmatprep.subr.mxu0 0.0
    %770 = vmatpush2.msra.mxu0 0.0
    %771 = vmatprep.subr.mxu0 0.0
    %772 = vmatpush2.msra.mxu0 0.0
    %773 = vmatprep.subr.mxu0 0.0
    %774 = vmatpush2.msra.mxu0 0.0
    %775 = vmatprep.subr.mxu0 0.0
    %776 = vmatpush2.msra.mxu0 0.0
    %777 = vmatprep.subr.mxu0 0.0
    %778 = vmatpush2.msra.mxu0 0.0
    %779 = vmatprep.subr.mxu0 0.0
    %780 = vmatpush2.msra.mxu0 0.0
    %781 = vmatprep.subr.mxu0 0.0
    %782 = vmatpush2.msra.mxu0 0.0
    %783 = vmatprep.subr.mxu0 0.0
    %784 = vmatpush2.msra.mxu0 0.0
    %785 = vmatprep.mubr.f32.mxu0 0.0
    %v786 = vand.u32 %v75, 4294901760
    %787 = vmatmul.mubr.f32.gmra.mxu0 %v786
    %v788 = vpop.f32.mrf.mxu0
    %v789 = vadd.f32 %v688, %v788
    %v790 = vpop.f32.mrf.mxu0
    %791 = vmatprep.mubr.f32.mxu0 0.0
    %v792 = vand.u32 %v78, 4294901760
    %793 = vmatmul.mubr.f32.gmra.mxu0 %v792
    %v794 = vpop.f32.mrf.mxu0
    %v795 = vadd.f32 %v698, %v794
    %v796 = vpop.f32.mrf.mxu0
    %797 = vdwg.mxu0
    %798 = vmatprep.subr.mxu0 0.0
    %799 = vmatpush1.msra.mxu0 0.0
    %800 = vmatprep.subr.mxu0 0.0
    %801 = vmatpush1.msra.mxu0 0.0
    %802 = vmatprep.subr.mxu0 0.0
    %803 = vmatpush1.msra.mxu0 0.0
    %804 = vmatprep.subr.mxu0 0.0
    %805 = vmatpush1.msra.mxu0 0.0
    %806 = vmatprep.subr.mxu0 0.0
    %807 = vmatpush1.msra.mxu0 0.0
    %808 = vmatprep.subr.mxu0 0.0
    %809 = vmatpush1.msra.mxu0 0.0
    %810 = vmatprep.subr.mxu0 0.0
    %811 = vmatpush1.msra.mxu0 0.0
    %812 = vmatprep.subr.mxu0 0.0
    %813 = vmatpush1.msra.mxu0 0.0
    %814 = vmatprep.subr.mxu0 0.0
    %815 = vmatpush1.msra.mxu0 0.0
    %816 = vmatprep.subr.mxu0 0.0
    %817 = vmatpush1.msra.mxu0 0.0
    %818 = vmatprep.subr.mxu0 0.0
    %819 = vmatpush1.msra.mxu0 0.0
    %820 = vmatprep.subr.mxu0 0.0
    %821 = vmatpush1.msra.mxu0 0.0
    %822 = vmatprep.subr.mxu0 0.0
    %v823 = vand.u32 %v611, 4294901760
    %v824 = vsub.f32 %v611, %v823
    %825 = vmatpush1.msra.mxu0 %v824
    %826 = vmatprep.subr.mxu0 0.0
    %v827 = vand.u32 %v610, 4294901760
    %v828 = vsub.f32 %v610, %v827
    %829 = vmatpush1.msra.mxu0 %v828
    %830 = vmatprep.subr.mxu0 0.0
    %v831 = vand.u32 %v609, 4294901760
    %v832 = vsub.f32 %v609, %v831
    %833 = vmatpush1.msra.mxu0 %v832
    %834 = vmatprep.subr.mxu0 0.0
    %v835 = vand.u32 %v608, 4294901760
    %v836 = vsub.f32 %v608, %v835
    %837 = vmatpush1.msra.mxu0 %v836
    %838 = vmatprep.subr.mxu0 0.0
    %839 = vmatpush2.msra.mxu0 0.0
    %840 = vmatprep.subr.mxu0 0.0
    %841 = vmatpush2.msra.mxu0 0.0
    %842 = vmatprep.subr.mxu0 0.0
    %843 = vmatpush2.msra.mxu0 0.0
    %844 = vmatprep.subr.mxu0 0.0
    %845 = vmatpush2.msra.mxu0 0.0
    %846 = vmatprep.subr.mxu0 0.0
    %847 = vmatpush2.msra.mxu0 0.0
    %848 = vmatprep.subr.mxu0 0.0
    %849 = vmatpush2.msra.mxu0 0.0
    %850 = vmatprep.subr.mxu0 0.0
    %851 = vmatpush2.msra.mxu0 0.0
    %852 = vmatprep.subr.mxu0 0.0
    %853 = vmatpush2.msra.mxu0 0.0
    %854 = vmatprep.subr.mxu0 0.0
    %855 = vmatpush2.msra.mxu0 0.0
    %856 = vmatprep.subr.mxu0 0.0
    %857 = vmatpush2.msra.mxu0 0.0
    %858 = vmatprep.subr.mxu0 0.0
    %859 = vmatpush2.msra.mxu0 0.0
    %860 = vmatprep.subr.mxu0 0.0
    %861 = vmatpush2.msra.mxu0 0.0
    %862 = vmatprep.subr.mxu0 0.0
    %863 = vmatpush2.msra.mxu0 0.0
    %864 = vmatprep.subr.mxu0 0.0
    %865 = vmatpush2.msra.mxu0 0.0
    %866 = vmatprep.subr.mxu0 0.0
    %867 = vmatpush2.msra.mxu0 0.0
    %868 = vmatprep.subr.mxu0 0.0
    %869 = vmatpush2.msra.mxu0 0.0
    %870 = vmatprep.mubr.f32.mxu0 0.0
    %v871 = vand.u32 %v75, 4294901760
    %v872 = vsub.f32 %v75, %v871
    %873 = vmatmul.mubr.f32.gmra.mxu0 %v872
    %v874 = vpop.f32.mrf.mxu0
    %v875 = vadd.f32 %v789, %v874
    %v876 = vpop.f32.mrf.mxu0
    %877 = vmatprep.mubr.f32.mxu0 0.0
    %v878 = vand.u32 %v78, 4294901760
    %v879 = vsub.f32 %v78, %v878
    %880 = vmatmul.mubr.f32.gmra.mxu0 %v879
    %v881 = vpop.f32.mrf.mxu0
    %v882 = vadd.f32 %v795, %v881
    %v883 = vpop.f32.mrf.mxu0
    %884 = vdwg.mxu0
    %885 = vmatprep.subr.mxu0 0.0
    %886 = vmatpush1.msra.mxu0 0.0
    %887 = vmatprep.subr.mxu0 0.0
    %888 = vmatpush1.msra.mxu0 0.0
    %889 = vmatprep.subr.mxu0 0.0
    %890 = vmatpush1.msra.mxu0 0.0
    %891 = vmatprep.subr.mxu0 0.0
    %892 = vmatpush1.msra.mxu0 0.0
    %893 = vmatprep.subr.mxu0 0.0
    %894 = vmatpush1.msra.mxu0 0.0
    %895 = vmatprep.subr.mxu0 0.0
    %896 = vmatpush1.msra.mxu0 0.0
    %897 = vmatprep.subr.mxu0 0.0
    %898 = vmatpush1.msra.mxu0 0.0
    %899 = vmatprep.subr.mxu0 0.0
    %900 = vmatpush1.msra.mxu0 0.0
    %901 = vmatprep.subr.mxu0 0.0
    %902 = vmatpush1.msra.mxu0 0.0
    %903 = vmatprep.subr.mxu0 0.0
    %904 = vmatpush1.msra.mxu0 0.0
    %905 = vmatprep.subr.mxu0 0.0
    %906 = vmatpush1.msra.mxu0 0.0
    %907 = vmatprep.subr.mxu0 0.0
    %908 = vmatpush1.msra.mxu0 0.0
    %909 = vmatprep.subr.mxu0 0.0
    %v910 = vand.u32 %v611, 4294901760
    %911 = vmatpush1.msra.mxu0 %v910
    %912 = vmatprep.subr.mxu0 0.0
    %v913 = vand.u32 %v610, 4294901760
    %914 = vmatpush1.msra.mxu0 %v913
    %915 = vmatprep.subr.mxu0 0.0
    %v916 = vand.u32 %v609, 4294901760
    %917 = vmatpush1.msra.mxu0 %v916
    %918 = vmatprep.subr.mxu0 0.0
    %v919 = vand.u32 %v608, 4294901760
    %920 = vmatpush1.msra.mxu0 %v919
    %921 = vmatprep.subr.mxu0 0.0
    %922 = vmatpush2.msra.mxu0 0.0
    %923 = vmatprep.subr.mxu0 0.0
    %924 = vmatpush2.msra.mxu0 0.0
    %925 = vmatprep.subr.mxu0 0.0
    %926 = vmatpush2.msra.mxu0 0.0
    %927 = vmatprep.subr.mxu0 0.0
    %928 = vmatpush2.msra.mxu0 0.0
    %929 = vmatprep.subr.mxu0 0.0
    %930 = vmatpush2.msra.mxu0 0.0
    %931 = vmatprep.subr.mxu0 0.0
    %932 = vmatpush2.msra.mxu0 0.0
    %933 = vmatprep.subr.mxu0 0.0
    %934 = vmatpush2.msra.mxu0 0.0
    %935 = vmatprep.subr.mxu0 0.0
    %936 = vmatpush2.msra.mxu0 0.0
    %937 = vmatprep.subr.mxu0 0.0
    %938 = vmatpush2.msra.mxu0 0.0
    %939 = vmatprep.subr.mxu0 0.0
    %940 = vmatpush2.msra.mxu0 0.0
    %941 = vmatprep.subr.mxu0 0.0
    %942 = vmatpush2.msra.mxu0 0.0
    %943 = vmatprep.subr.mxu0 0.0
    %944 = vmatpush2.msra.mxu0 0.0
    %945 = vmatprep.subr.mxu0 0.0
    %946 = vmatpush2.msra.mxu0 0.0
    %947 = vmatprep.subr.mxu0 0.0
    %948 = vmatpush2.msra.mxu0 0.0
    %949 = vmatprep.subr.mxu0 0.0
    %950 = vmatpush2.msra.mxu0 0.0
    %951 = vmatprep.subr.mxu0 0.0
    %952 = vmatpush2.msra.mxu0 0.0
    %953 = vmatprep.mubr.f32.mxu0 0.0
    %v954 = vand.u32 %v75, 4294901760
    %v955 = vsub.f32 %v75, %v954
    %v956 = vand.u32 %v955, 4294901760
    %957 = vmatmul.mubr.f32.gmra.mxu0 %v956
    %v958 = vpop.f32.mrf.mxu0
    %v959 = vadd.f32 %v875, %v958
    %v960 = vpop.f32.mrf.mxu0
    %961 = vmatprep.mubr.f32.mxu0 0.0
    %v962 = vand.u32 %v78, 4294901760
    %v963 = vsub.f32 %v78, %v962
    %v964 = vand.u32 %v963, 4294901760
    %965 = vmatmul.mubr.f32.gmra.mxu0 %v964
    %v966 = vpop.f32.mrf.mxu0
    %v967 = vadd.f32 %v882, %v966
    %v968 = vpop.f32.mrf.mxu0
    %969 = vdwg.mxu0
    %970 = vmatprep.subr.mxu0 0.0
    %971 = vmatpush1.msra.mxu0 0.0
    %972 = vmatprep.subr.mxu0 0.0
    %973 = vmatpush1.msra.mxu0 0.0
    %974 = vmatprep.subr.mxu0 0.0
    %975 = vmatpush1.msra.mxu0 0.0
    %976 = vmatprep.subr.mxu0 0.0
    %977 = vmatpush1.msra.mxu0 0.0
    %978 = vmatprep.subr.mxu0 0.0
    %979 = vmatpush1.msra.mxu0 0.0
    %980 = vmatprep.subr.mxu0 0.0
    %981 = vmatpush1.msra.mxu0 0.0
    %982 = vmatprep.subr.mxu0 0.0
    %983 = vmatpush1.msra.mxu0 0.0
    %984 = vmatprep.subr.mxu0 0.0
    %985 = vmatpush1.msra.mxu0 0.0
    %986 = vmatprep.subr.mxu0 0.0
    %987 = vmatpush1.msra.mxu0 0.0
    %988 = vmatprep.subr.mxu0 0.0
    %989 = vmatpush1.msra.mxu0 0.0
    %990 = vmatprep.subr.mxu0 0.0
    %991 = vmatpush1.msra.mxu0 0.0
    %992 = vmatprep.subr.mxu0 0.0
    %993 = vmatpush1.msra.mxu0 0.0
    %994 = vmatprep.subr.mxu0 0.0
    %v995 = vand.u32 %v611, 4294901760
    %v996 = vsub.f32 %v611, %v995
    %v997 = vand.u32 %v996, 4294901760
    %998 = vmatpush1.msra.mxu0 %v997
    %999 = vmatprep.subr.mxu0 0.0
    %v1000 = vand.u32 %v610, 4294901760
    %v1001 = vsub.f32 %v610, %v1000
    %v1002 = vand.u32 %v1001, 4294901760
    %1003 = vmatpush1.msra.mxu0 %v1002
    %1004 = vmatprep.subr.mxu0 0.0
    %v1005 = vand.u32 %v609, 4294901760
    %v1006 = vsub.f32 %v609, %v1005
    %v1007 = vand.u32 %v1006, 4294901760
    %1008 = vmatpush1.msra.mxu0 %v1007
    %1009 = vmatprep.subr.mxu0 0.0
    %v1010 = vand.u32 %v608, 4294901760
    %v1011 = vsub.f32 %v608, %v1010
    %v1012 = vand.u32 %v1011, 4294901760
    %1013 = vmatpush1.msra.mxu0 %v1012
    %1014 = vmatprep.subr.mxu0 0.0
    %1015 = vmatpush2.msra.mxu0 0.0
    %1016 = vmatprep.subr.mxu0 0.0
    %1017 = vmatpush2.msra.mxu0 0.0
    %1018 = vmatprep.subr.mxu0 0.0
    %1019 = vmatpush2.msra.mxu0 0.0
    %1020 = vmatprep.subr.mxu0 0.0
    %1021 = vmatpush2.msra.mxu0 0.0
    %1022 = vmatprep.subr.mxu0 0.0
    %1023 = vmatpush2.msra.mxu0 0.0
    %1024 = vmatprep.subr.mxu0 0.0
    %1025 = vmatpush2.msra.mxu0 0.0
    %1026 = vmatprep.subr.mxu0 0.0
    %1027 = vmatpush2.msra.mxu0 0.0
    %1028 = vmatprep.subr.mxu0 0.0
    %1029 = vmatpush2.msra.mxu0 0.0
    %1030 = vmatprep.subr.mxu0 0.0
    %1031 = vmatpush2.msra.mxu0 0.0
    %1032 = vmatprep.subr.mxu0 0.0
    %1033 = vmatpush2.msra.mxu0 0.0
    %1034 = vmatprep.subr.mxu0 0.0
    %1035 = vmatpush2.msra.mxu0 0.0
    %1036 = vmatprep.subr.mxu0 0.0
    %1037 = vmatpush2.msra.mxu0 0.0
    %1038 = vmatprep.subr.mxu0 0.0
    %1039 = vmatpush2.msra.mxu0 0.0
    %1040 = vmatprep.subr.mxu0 0.0
    %1041 = vmatpush2.msra.mxu0 0.0
    %1042 = vmatprep.subr.mxu0 0.0
    %1043 = vmatpush2.msra.mxu0 0.0
    %1044 = vmatprep.subr.mxu0 0.0
    %1045 = vmatpush2.msra.mxu0 0.0
    %1046 = vmatprep.mubr.f32.mxu0 0.0
    %v1047 = vand.u32 %v75, 4294901760
    %1048 = vmatmul.mubr.f32.gmra.mxu0 %v1047
    %v1049 = vpop.f32.mrf.mxu0
    %v1050 = vadd.f32 %v959, %v1049
    %v1051 = vpop.f32.mrf.mxu0
    %1052 = vmatprep.mubr.f32.mxu0 0.0
    %v1053 = vand.u32 %v78, 4294901760
    %1054 = vmatmul.mubr.f32.gmra.mxu0 %v1053
    %v1055 = vpop.f32.mrf.mxu0
    %v1056 = vadd.f32 %v967, %v1055
    %v1057 = vpop.f32.mrf.mxu0
    %1058 = vdwg.mxu0
    %1059 = vmatprep.subr.mxu0 0.0
    %1060 = vmatpush1.msra.mxu0 0.0
    %1061 = vmatprep.subr.mxu0 0.0
    %1062 = vmatpush1.msra.mxu0 0.0
    %1063 = vmatprep.subr.mxu0 0.0
    %1064 = vmatpush1.msra.mxu0 0.0
    %1065 = vmatprep.subr.mxu0 0.0
    %1066 = vmatpush1.msra.mxu0 0.0
    %1067 = vmatprep.subr.mxu0 0.0
    %1068 = vmatpush1.msra.mxu0 0.0
    %1069 = vmatprep.subr.mxu0 0.0
    %1070 = vmatpush1.msra.mxu0 0.0
    %1071 = vmatprep.subr.mxu0 0.0
    %1072 = vmatpush1.msra.mxu0 0.0
    %1073 = vmatprep.subr.mxu0 0.0
    %1074 = vmatpush1.msra.mxu0 0.0
    %1075 = vmatprep.subr.mxu0 0.0
    %1076 = vmatpush1.msra.mxu0 0.0
    %1077 = vmatprep.subr.mxu0 0.0
    %1078 = vmatpush1.msra.mxu0 0.0
    %1079 = vmatprep.subr.mxu0 0.0
    %1080 = vmatpush1.msra.mxu0 0.0
    %1081 = vmatprep.subr.mxu0 0.0
    %1082 = vmatpush1.msra.mxu0 0.0
    %1083 = vmatprep.subr.mxu0 0.0
    %v1084 = vand.u32 %v611, 4294901760
    %1085 = vmatpush1.msra.mxu0 %v1084
    %1086 = vmatprep.subr.mxu0 0.0
    %v1087 = vand.u32 %v610, 4294901760
    %1088 = vmatpush1.msra.mxu0 %v1087
    %1089 = vmatprep.subr.mxu0 0.0
    %v1090 = vand.u32 %v609, 4294901760
    %1091 = vmatpush1.msra.mxu0 %v1090
    %1092 = vmatprep.subr.mxu0 0.0
    %v1093 = vand.u32 %v608, 4294901760
    %1094 = vmatpush1.msra.mxu0 %v1093
    %1095 = vmatprep.subr.mxu0 0.0
    %1096 = vmatpush2.msra.mxu0 0.0
    %1097 = vmatprep.subr.mxu0 0.0
    %1098 = vmatpush2.msra.mxu0 0.0
    %1099 = vmatprep.subr.mxu0 0.0
    %1100 = vmatpush2.msra.mxu0 0.0
    %1101 = vmatprep.subr.mxu0 0.0
    %1102 = vmatpush2.msra.mxu0 0.0
    %1103 = vmatprep.subr.mxu0 0.0
    %1104 = vmatpush2.msra.mxu0 0.0
    %1105 = vmatprep.subr.mxu0 0.0
    %1106 = vmatpush2.msra.mxu0 0.0
    %1107 = vmatprep.subr.mxu0 0.0
    %1108 = vmatpush2.msra.mxu0 0.0
    %1109 = vmatprep.subr.mxu0 0.0
    %1110 = vmatpush2.msra.mxu0 0.0
    %1111 = vmatprep.subr.mxu0 0.0
    %1112 = vmatpush2.msra.mxu0 0.0
    %1113 = vmatprep.subr.mxu0 0.0
    %1114 = vmatpush2.msra.mxu0 0.0
    %1115 = vmatprep.subr.mxu0 0.0
    %1116 = vmatpush2.msra.mxu0 0.0
    %1117 = vmatprep.subr.mxu0 0.0
    %1118 = vmatpush2.msra.mxu0 0.0
    %1119 = vmatprep.subr.mxu0 0.0
    %1120 = vmatpush2.msra.mxu0 0.0
    %1121 = vmatprep.subr.mxu0 0.0
    %1122 = vmatpush2.msra.mxu0 0.0
    %1123 = vmatprep.subr.mxu0 0.0
    %1124 = vmatpush2.msra.mxu0 0.0
    %1125 = vmatprep.subr.mxu0 0.0
    %1126 = vmatpush2.msra.mxu0 0.0
    %1127 = vmatprep.mubr.f32.mxu0 0.0
    %v1128 = vand.u32 %v75, 4294901760
    %1129 = vmatmul.mubr.f32.gmra.mxu0 %v1128
    %v1130 = vpop.f32.mrf.mxu0
    %v1131 = vadd.f32 %v1050, %v1130
    %v1132 = vpop.f32.mrf.mxu0
    %1133 = vmatprep.mubr.f32.mxu0 0.0
    %v1134 = vand.u32 %v78, 4294901760
    %1135 = vmatmul.mubr.f32.gmra.mxu0 %v1134
    %v1136 = vpop.f32.mrf.mxu0
    %v1137 = vadd.f32 %v1056, %v1136
    %v1138 = vpop.f32.mrf.mxu0
    %1139 = vdwg.mxu0
    %v1140 = vld [vmem:[%s2 + $0x40] sm:$0xff]
    %v1141 = vld [vmem:[%s2 + $0x48] sm:$0xff]
    %v1142 = vld [vmem:[%s2 + $0x50] sm:$0xff]
    %v1143 = vld [vmem:[%s2 + $0x58] sm:$0xff]
    %1144 = vmatprep.subr.mxu0 0.0
    %1145 = vmatpush1.msra.mxu0 0.0
    %1146 = vmatprep.subr.mxu0 0.0
    %1147 = vmatpush1.msra.mxu0 0.0
    %1148 = vmatprep.subr.mxu0 0.0
    %1149 = vmatpush1.msra.mxu0 0.0
    %1150 = vmatprep.subr.mxu0 0.0
    %1151 = vmatpush1.msra.mxu0 0.0
    %1152 = vmatprep.subr.mxu0 0.0
    %1153 = vmatpush1.msra.mxu0 0.0
    %1154 = vmatprep.subr.mxu0 0.0
    %1155 = vmatpush1.msra.mxu0 0.0
    %1156 = vmatprep.subr.mxu0 0.0
    %1157 = vmatpush1.msra.mxu0 0.0
    %1158 = vmatprep.subr.mxu0 0.0
    %1159 = vmatpush1.msra.mxu0 0.0
    %1160 = vmatprep.subr.mxu0 0.0
    %1161 = vmatpush1.msra.mxu0 0.0
    %1162 = vmatprep.subr.mxu0 0.0
    %1163 = vmatpush1.msra.mxu0 0.0
    %1164 = vmatprep.subr.mxu0 0.0
    %1165 = vmatpush1.msra.mxu0 0.0
    %1166 = vmatprep.subr.mxu0 0.0
    %1167 = vmatpush1.msra.mxu0 0.0
    %1168 = vmatprep.subr.mxu0 0.0
    %v1169 = vand.u32 %v1143, 4294901760
    %1170 = vmatpush1.msra.mxu0 %v1169
    %1171 = vmatprep.subr.mxu0 0.0
    %v1172 = vand.u32 %v1142, 4294901760
    %1173 = vmatpush1.msra.mxu0 %v1172
    %1174 = vmatprep.subr.mxu0 0.0
    %v1175 = vand.u32 %v1141, 4294901760
    %1176 = vmatpush1.msra.mxu0 %v1175
    %1177 = vmatprep.subr.mxu0 0.0
    %v1178 = vand.u32 %v1140, 4294901760
    %1179 = vmatpush1.msra.mxu0 %v1178
    %1180 = vmatprep.subr.mxu0 0.0
    %1181 = vmatpush2.msra.mxu0 0.0
    %1182 = vmatprep.subr.mxu0 0.0
    %1183 = vmatpush2.msra.mxu0 0.0
    %1184 = vmatprep.subr.mxu0 0.0
    %1185 = vmatpush2.msra.mxu0 0.0
    %1186 = vmatprep.subr.mxu0 0.0
    %1187 = vmatpush2.msra.mxu0 0.0
    %1188 = vmatprep.subr.mxu0 0.0
    %1189 = vmatpush2.msra.mxu0 0.0
    %1190 = vmatprep.subr.mxu0 0.0
    %1191 = vmatpush2.msra.mxu0 0.0
    %1192 = vmatprep.subr.mxu0 0.0
    %1193 = vmatpush2.msra.mxu0 0.0
    %1194 = vmatprep.subr.mxu0 0.0
    %1195 = vmatpush2.msra.mxu0 0.0
    %1196 = vmatprep.subr.mxu0 0.0
    %1197 = vmatpush2.msra.mxu0 0.0
    %1198 = vmatprep.subr.mxu0 0.0
    %1199 = vmatpush2.msra.mxu0 0.0
    %1200 = vmatprep.subr.mxu0 0.0
    %1201 = vmatpush2.msra.mxu0 0.0
    %1202 = vmatprep.subr.mxu0 0.0
    %1203 = vmatpush2.msra.mxu0 0.0
    %1204 = vmatprep.subr.mxu0 0.0
    %1205 = vmatpush2.msra.mxu0 0.0
    %1206 = vmatprep.subr.mxu0 0.0
    %1207 = vmatpush2.msra.mxu0 0.0
    %1208 = vmatprep.subr.mxu0 0.0
    %1209 = vmatpush2.msra.mxu0 0.0
    %1210 = vmatprep.subr.mxu0 0.0
    %1211 = vmatpush2.msra.mxu0 0.0
    %1212 = vmatprep.mubr.f32.mxu0 0.0
    %v1213 = vand.u32 %v75, 4294901760
    %v1214 = vsub.f32 %v75, %v1213
    %v1215 = vand.u32 %v1214, 4294901760
    %v1216 = vsub.f32 %v1214, %v1215
    %v1217 = vand.u32 %v1216, 4294901760
    %1218 = vmatmul.mubr.f32.gmra.mxu0 %v1217
    %v1219 = vpop.f32.mrf.mxu0
    %v1220 = vadd.f32 0.0, %v1219
    %v1221 = vpop.f32.mrf.mxu0
    %1222 = vmatprep.mubr.f32.mxu0 0.0
    %v1223 = vand.u32 %v78, 4294901760
    %v1224 = vsub.f32 %v78, %v1223
    %v1225 = vand.u32 %v1224, 4294901760
    %v1226 = vsub.f32 %v1224, %v1225
    %v1227 = vand.u32 %v1226, 4294901760
    %1228 = vmatmul.mubr.f32.gmra.mxu0 %v1227
    %v1229 = vpop.f32.mrf.mxu0
    %v1230 = vadd.f32 0.0, %v1229
    %v1231 = vpop.f32.mrf.mxu0
    %1232 = vdwg.mxu0
    %1233 = vmatprep.subr.mxu0 0.0
    %1234 = vmatpush1.msra.mxu0 0.0
    %1235 = vmatprep.subr.mxu0 0.0
    %1236 = vmatpush1.msra.mxu0 0.0
    %1237 = vmatprep.subr.mxu0 0.0
    %1238 = vmatpush1.msra.mxu0 0.0
    %1239 = vmatprep.subr.mxu0 0.0
    %1240 = vmatpush1.msra.mxu0 0.0
    %1241 = vmatprep.subr.mxu0 0.0
    %1242 = vmatpush1.msra.mxu0 0.0
    %1243 = vmatprep.subr.mxu0 0.0
    %1244 = vmatpush1.msra.mxu0 0.0
    %1245 = vmatprep.subr.mxu0 0.0
    %1246 = vmatpush1.msra.mxu0 0.0
    %1247 = vmatprep.subr.mxu0 0.0
    %1248 = vmatpush1.msra.mxu0 0.0
    %1249 = vmatprep.subr.mxu0 0.0
    %1250 = vmatpush1.msra.mxu0 0.0
    %1251 = vmatprep.subr.mxu0 0.0
    %1252 = vmatpush1.msra.mxu0 0.0
    %1253 = vmatprep.subr.mxu0 0.0
    %1254 = vmatpush1.msra.mxu0 0.0
    %1255 = vmatprep.subr.mxu0 0.0
    %1256 = vmatpush1.msra.mxu0 0.0
    %1257 = vmatprep.subr.mxu0 0.0
    %v1258 = vand.u32 %v1143, 4294901760
    %v1259 = vsub.f32 %v1143, %v1258
    %v1260 = vand.u32 %v1259, 4294901760
    %v1261 = vsub.f32 %v1259, %v1260
    %v1262 = vand.u32 %v1261, 4294901760
    %1263 = vmatpush1.msra.mxu0 %v1262
    %1264 = vmatprep.subr.mxu0 0.0
    %v1265 = vand.u32 %v1142, 4294901760
    %v1266 = vsub.f32 %v1142, %v1265
    %v1267 = vand.u32 %v1266, 4294901760
    %v1268 = vsub.f32 %v1266, %v1267
    %v1269 = vand.u32 %v1268, 4294901760
    %1270 = vmatpush1.msra.mxu0 %v1269
    %1271 = vmatprep.subr.mxu0 0.0
    %v1272 = vand.u32 %v1141, 4294901760
    %v1273 = vsub.f32 %v1141, %v1272
    %v1274 = vand.u32 %v1273, 4294901760
    %v1275 = vsub.f32 %v1273, %v1274
    %v1276 = vand.u32 %v1275, 4294901760
    %1277 = vmatpush1.msra.mxu0 %v1276
    %1278 = vmatprep.subr.mxu0 0.0
    %v1279 = vand.u32 %v1140, 4294901760
    %v1280 = vsub.f32 %v1140, %v1279
    %v1281 = vand.u32 %v1280, 4294901760
    %v1282 = vsub.f32 %v1280, %v1281
    %v1283 = vand.u32 %v1282, 4294901760
    %1284 = vmatpush1.msra.mxu0 %v1283
    %1285 = vmatprep.subr.mxu0 0.0
    %1286 = vmatpush2.msra.mxu0 0.0
    %1287 = vmatprep.subr.mxu0 0.0
    %1288 = vmatpush2.msra.mxu0 0.0
    %1289 = vmatprep.subr.mxu0 0.0
    %1290 = vmatpush2.msra.mxu0 0.0
    %1291 = vmatprep.subr.mxu0 0.0
    %1292 = vmatpush2.msra.mxu0 0.0
    %1293 = vmatprep.subr.mxu0 0.0
    %1294 = vmatpush2.msra.mxu0 0.0
    %1295 = vmatprep.subr.mxu0 0.0
    %1296 = vmatpush2.msra.mxu0 0.0
    %1297 = vmatprep.subr.mxu0 0.0
    %1298 = vmatpush2.msra.mxu0 0.0
    %1299 = vmatprep.subr.mxu0 0.0
    %1300 = vmatpush2.msra.mxu0 0.0
    %1301 = vmatprep.subr.mxu0 0.0
    %1302 = vmatpush2.msra.mxu0 0.0
    %1303 = vmatprep.subr.mxu0 0.0
    %1304 = vmatpush2.msra.mxu0 0.0
    %1305 = vmatprep.subr.mxu0 0.0
    %1306 = vmatpush2.msra.mxu0 0.0
    %1307 = vmatprep.subr.mxu0 0.0
    %1308 = vmatpush2.msra.mxu0 0.0
    %1309 = vmatprep.subr.mxu0 0.0
    %1310 = vmatpush2.msra.mxu0 0.0
    %1311 = vmatprep.subr.mxu0 0.0
    %1312 = vmatpush2.msra.mxu0 0.0
    %1313 = vmatprep.subr.mxu0 0.0
    %1314 = vmatpush2.msra.mxu0 0.0
    %1315 = vmatprep.subr.mxu0 0.0
    %1316 = vmatpush2.msra.mxu0 0.0
    %1317 = vmatprep.mubr.f32.mxu0 0.0
    %v1318 = vand.u32 %v75, 4294901760
    %1319 = vmatmul.mubr.f32.gmra.mxu0 %v1318
    %v1320 = vpop.f32.mrf.mxu0
    %v1321 = vadd.f32 %v1220, %v1320
    %v1322 = vpop.f32.mrf.mxu0
    %1323 = vmatprep.mubr.f32.mxu0 0.0
    %v1324 = vand.u32 %v78, 4294901760
    %1325 = vmatmul.mubr.f32.gmra.mxu0 %v1324
    %v1326 = vpop.f32.mrf.mxu0
    %v1327 = vadd.f32 %v1230, %v1326
    %v1328 = vpop.f32.mrf.mxu0
    %1329 = vdwg.mxu0
    %1330 = vmatprep.subr.mxu0 0.0
    %1331 = vmatpush1.msra.mxu0 0.0
    %1332 = vmatprep.subr.mxu0 0.0
    %1333 = vmatpush1.msra.mxu0 0.0
    %1334 = vmatprep.subr.mxu0 0.0
    %1335 = vmatpush1.msra.mxu0 0.0
    %1336 = vmatprep.subr.mxu0 0.0
    %1337 = vmatpush1.msra.mxu0 0.0
    %1338 = vmatprep.subr.mxu0 0.0
    %1339 = vmatpush1.msra.mxu0 0.0
    %1340 = vmatprep.subr.mxu0 0.0
    %1341 = vmatpush1.msra.mxu0 0.0
    %1342 = vmatprep.subr.mxu0 0.0
    %1343 = vmatpush1.msra.mxu0 0.0
    %1344 = vmatprep.subr.mxu0 0.0
    %1345 = vmatpush1.msra.mxu0 0.0
    %1346 = vmatprep.subr.mxu0 0.0
    %1347 = vmatpush1.msra.mxu0 0.0
    %1348 = vmatprep.subr.mxu0 0.0
    %1349 = vmatpush1.msra.mxu0 0.0
    %1350 = vmatprep.subr.mxu0 0.0
    %1351 = vmatpush1.msra.mxu0 0.0
    %1352 = vmatprep.subr.mxu0 0.0
    %1353 = vmatpush1.msra.mxu0 0.0
    %1354 = vmatprep.subr.mxu0 0.0
    %v1355 = vand.u32 %v1143, 4294901760
    %v1356 = vsub.f32 %v1143, %v1355
    %1357 = vmatpush1.msra.mxu0 %v1356
    %1358 = vmatprep.subr.mxu0 0.0
    %v1359 = vand.u32 %v1142, 4294901760
    %v1360 = vsub.f32 %v1142, %v1359
    %1361 = vmatpush1.msra.mxu0 %v1360
    %1362 = vmatprep.subr.mxu0 0.0
    %v1363 = vand.u32 %v1141, 4294901760
    %v1364 = vsub.f32 %v1141, %v1363
    %1365 = vmatpush1.msra.mxu0 %v1364
    %1366 = vmatprep.subr.mxu0 0.0
    %v1367 = vand.u32 %v1140, 4294901760
    %v1368 = vsub.f32 %v1140, %v1367
    %1369 = vmatpush1.msra.mxu0 %v1368
    %1370 = vmatprep.subr.mxu0 0.0
    %1371 = vmatpush2.msra.mxu0 0.0
    %1372 = vmatprep.subr.mxu0 0.0
    %1373 = vmatpush2.msra.mxu0 0.0
    %1374 = vmatprep.subr.mxu0 0.0
    %1375 = vmatpush2.msra.mxu0 0.0
    %1376 = vmatprep.subr.mxu0 0.0
    %1377 = vmatpush2.msra.mxu0 0.0
    %1378 = vmatprep.subr.mxu0 0.0
    %1379 = vmatpush2.msra.mxu0 0.0
    %1380 = vmatprep.subr.mxu0 0.0
    %1381 = vmatpush2.msra.mxu0 0.0
    %1382 = vmatprep.subr.mxu0 0.0
    %1383 = vmatpush2.msra.mxu0 0.0
    %1384 = vmatprep.subr.mxu0 0.0
    %1385 = vmatpush2.msra.mxu0 0.0
    %1386 = vmatprep.subr.mxu0 0.0
    %1387 = vmatpush2.msra.mxu0 0.0
    %1388 = vmatprep.subr.mxu0 0.0
    %1389 = vmatpush2.msra.mxu0 0.0
    %1390 = vmatprep.subr.mxu0 0.0
    %1391 = vmatpush2.msra.mxu0 0.0
    %1392 = vmatprep.subr.mxu0 0.0
    %1393 = vmatpush2.msra.mxu0 0.0
    %1394 = vmatprep.subr.mxu0 0.0
    %1395 = vmatpush2.msra.mxu0 0.0
    %1396 = vmatprep.subr.mxu0 0.0
    %1397 = vmatpush2.msra.mxu0 0.0
    %1398 = vmatprep.subr.mxu0 0.0
    %1399 = vmatpush2.msra.mxu0 0.0
    %1400 = vmatprep.subr.mxu0 0.0
    %1401 = vmatpush2.msra.mxu0 0.0
    %1402 = vmatprep.mubr.f32.mxu0 0.0
    %v1403 = vand.u32 %v75, 4294901760
    %v1404 = vsub.f32 %v75, %v1403
    %1405 = vmatmul.mubr.f32.gmra.mxu0 %v1404
    %v1406 = vpop.f32.mrf.mxu0
    %v1407 = vadd.f32 %v1321, %v1406
    %v1408 = vpop.f32.mrf.mxu0
    %1409 = vmatprep.mubr.f32.mxu0 0.0
    %v1410 = vand.u32 %v78, 4294901760
    %v1411 = vsub.f32 %v78, %v1410
    %1412 = vmatmul.mubr.f32.gmra.mxu0 %v1411
    %v1413 = vpop.f32.mrf.mxu0
    %v1414 = vadd.f32 %v1327, %v1413
    %v1415 = vpop.f32.mrf.mxu0
    %1416 = vdwg.mxu0
    %1417 = vmatprep.subr.mxu0 0.0
    %1418 = vmatpush1.msra.mxu0 0.0
    %1419 = vmatprep.subr.mxu0 0.0
    %1420 = vmatpush1.msra.mxu0 0.0
    %1421 = vmatprep.subr.mxu0 0.0
    %1422 = vmatpush1.msra.mxu0 0.0
    %1423 = vmatprep.subr.mxu0 0.0
    %1424 = vmatpush1.msra.mxu0 0.0
    %1425 = vmatprep.subr.mxu0 0.0
    %1426 = vmatpush1.msra.mxu0 0.0
    %1427 = vmatprep.subr.mxu0 0.0
    %1428 = vmatpush1.msra.mxu0 0.0
    %1429 = vmatprep.subr.mxu0 0.0
    %1430 = vmatpush1.msra.mxu0 0.0
    %1431 = vmatprep.subr.mxu0 0.0
    %1432 = vmatpush1.msra.mxu0 0.0
    %1433 = vmatprep.subr.mxu0 0.0
    %1434 = vmatpush1.msra.mxu0 0.0
    %1435 = vmatprep.subr.mxu0 0.0
    %1436 = vmatpush1.msra.mxu0 0.0
    %1437 = vmatprep.subr.mxu0 0.0
    %1438 = vmatpush1.msra.mxu0 0.0
    %1439 = vmatprep.subr.mxu0 0.0
    %1440 = vmatpush1.msra.mxu0 0.0
    %1441 = vmatprep.subr.mxu0 0.0
    %v1442 = vand.u32 %v1143, 4294901760
    %1443 = vmatpush1.msra.mxu0 %v1442
    %1444 = vmatprep.subr.mxu0 0.0
    %v1445 = vand.u32 %v1142, 4294901760
    %1446 = vmatpush1.msra.mxu0 %v1445
    %1447 = vmatprep.subr.mxu0 0.0
    %v1448 = vand.u32 %v1141, 4294901760
    %1449 = vmatpush1.msra.mxu0 %v1448
    %1450 = vmatprep.subr.mxu0 0.0
    %v1451 = vand.u32 %v1140, 4294901760
    %1452 = vmatpush1.msra.mxu0 %v1451
    %1453 = vmatprep.subr.mxu0 0.0
    %1454 = vmatpush2.msra.mxu0 0.0
    %1455 = vmatprep.subr.mxu0 0.0
    %1456 = vmatpush2.msra.mxu0 0.0
    %1457 = vmatprep.subr.mxu0 0.0
    %1458 = vmatpush2.msra.mxu0 0.0
    %1459 = vmatprep.subr.mxu0 0.0
    %1460 = vmatpush2.msra.mxu0 0.0
    %1461 = vmatprep.subr.mxu0 0.0
    %1462 = vmatpush2.msra.mxu0 0.0
    %1463 = vmatprep.subr.mxu0 0.0
    %1464 = vmatpush2.msra.mxu0 0.0
    %1465 = vmatprep.subr.mxu0 0.0
    %1466 = vmatpush2.msra.mxu0 0.0
    %1467 = vmatprep.subr.mxu0 0.0
    %1468 = vmatpush2.msra.mxu0 0.0
    %1469 = vmatprep.subr.mxu0 0.0
    %1470 = vmatpush2.msra.mxu0 0.0
    %1471 = vmatprep.subr.mxu0 0.0
    %1472 = vmatpush2.msra.mxu0 0.0
    %1473 = vmatprep.subr.mxu0 0.0
    %1474 = vmatpush2.msra.mxu0 0.0
    %1475 = vmatprep.subr.mxu0 0.0
    %1476 = vmatpush2.msra.mxu0 0.0
    %1477 = vmatprep.subr.mxu0 0.0
    %1478 = vmatpush2.msra.mxu0 0.0
    %1479 = vmatprep.subr.mxu0 0.0
    %1480 = vmatpush2.msra.mxu0 0.0
    %1481 = vmatprep.subr.mxu0 0.0
    %1482 = vmatpush2.msra.mxu0 0.0
    %1483 = vmatprep.subr.mxu0 0.0
    %1484 = vmatpush2.msra.mxu0 0.0
    %1485 = vmatprep.mubr.f32.mxu0 0.0
    %v1486 = vand.u32 %v75, 4294901760
    %v1487 = vsub.f32 %v75, %v1486
    %v1488 = vand.u32 %v1487, 4294901760
    %1489 = vmatmul.mubr.f32.gmra.mxu0 %v1488
    %v1490 = vpop.f32.mrf.mxu0
    %v1491 = vadd.f32 %v1407, %v1490
    %v1492 = vpop.f32.mrf.mxu0
    %1493 = vmatprep.mubr.f32.mxu0 0.0
    %v1494 = vand.u32 %v78, 4294901760
    %v1495 = vsub.f32 %v78, %v1494
    %v1496 = vand.u32 %v1495, 4294901760
    %1497 = vmatmul.mubr.f32.gmra.mxu0 %v1496
    %v1498 = vpop.f32.mrf.mxu0
    %v1499 = vadd.f32 %v1414, %v1498
    %v1500 = vpop.f32.mrf.mxu0
    %1501 = vdwg.mxu0
    %1502 = vmatprep.subr.mxu0 0.0
    %1503 = vmatpush1.msra.mxu0 0.0
    %1504 = vmatprep.subr.mxu0 0.0
    %1505 = vmatpush1.msra.mxu0 0.0
    %1506 = vmatprep.subr.mxu0 0.0
    %1507 = vmatpush1.msra.mxu0 0.0
    %1508 = vmatprep.subr.mxu0 0.0
    %1509 = vmatpush1.msra.mxu0 0.0
    %1510 = vmatprep.subr.mxu0 0.0
    %1511 = vmatpush1.msra.mxu0 0.0
    %1512 = vmatprep.subr.mxu0 0.0
    %1513 = vmatpush1.msra.mxu0 0.0
    %1514 = vmatprep.subr.mxu0 0.0
    %1515 = vmatpush1.msra.mxu0 0.0
    %1516 = vmatprep.subr.mxu0 0.0
    %1517 = vmatpush1.msra.mxu0 0.0
    %1518 = vmatprep.subr.mxu0 0.0
    %1519 = vmatpush1.msra.mxu0 0.0
    %1520 = vmatprep.subr.mxu0 0.0
    %1521 = vmatpush1.msra.mxu0 0.0
    %1522 = vmatprep.subr.mxu0 0.0
    %1523 = vmatpush1.msra.mxu0 0.0
    %1524 = vmatprep.subr.mxu0 0.0
    %1525 = vmatpush1.msra.mxu0 0.0
    %1526 = vmatprep.subr.mxu0 0.0
    %v1527 = vand.u32 %v1143, 4294901760
    %v1528 = vsub.f32 %v1143, %v1527
    %v1529 = vand.u32 %v1528, 4294901760
    %1530 = vmatpush1.msra.mxu0 %v1529
    %1531 = vmatprep.subr.mxu0 0.0
    %v1532 = vand.u32 %v1142, 4294901760
    %v1533 = vsub.f32 %v1142, %v1532
    %v1534 = vand.u32 %v1533, 4294901760
    %1535 = vmatpush1.msra.mxu0 %v1534
    %1536 = vmatprep.subr.mxu0 0.0
    %v1537 = vand.u32 %v1141, 4294901760
    %v1538 = vsub.f32 %v1141, %v1537
    %v1539 = vand.u32 %v1538, 4294901760
    %1540 = vmatpush1.msra.mxu0 %v1539
    %1541 = vmatprep.subr.mxu0 0.0
    %v1542 = vand.u32 %v1140, 4294901760
    %v1543 = vsub.f32 %v1140, %v1542
    %v1544 = vand.u32 %v1543, 4294901760
    %1545 = vmatpush1.msra.mxu0 %v1544
    %1546 = vmatprep.subr.mxu0 0.0
    %1547 = vmatpush2.msra.mxu0 0.0
    %1548 = vmatprep.subr.mxu0 0.0
    %1549 = vmatpush2.msra.mxu0 0.0
    %1550 = vmatprep.subr.mxu0 0.0
    %1551 = vmatpush2.msra.mxu0 0.0
    %1552 = vmatprep.subr.mxu0 0.0
    %1553 = vmatpush2.msra.mxu0 0.0
    %1554 = vmatprep.subr.mxu0 0.0
    %1555 = vmatpush2.msra.mxu0 0.0
    %1556 = vmatprep.subr.mxu0 0.0
    %1557 = vmatpush2.msra.mxu0 0.0
    %1558 = vmatprep.subr.mxu0 0.0
    %1559 = vmatpush2.msra.mxu0 0.0
    %1560 = vmatprep.subr.mxu0 0.0
    %1561 = vmatpush2.msra.mxu0 0.0
    %1562 = vmatprep.subr.mxu0 0.0
    %1563 = vmatpush2.msra.mxu0 0.0
    %1564 = vmatprep.subr.mxu0 0.0
    %1565 = vmatpush2.msra.mxu0 0.0
    %1566 = vmatprep.subr.mxu0 0.0
    %1567 = vmatpush2.msra.mxu0 0.0
    %1568 = vmatprep.subr.mxu0 0.0
    %1569 = vmatpush2.msra.mxu0 0.0
    %1570 = vmatprep.subr.mxu0 0.0
    %1571 = vmatpush2.msra.mxu0 0.0
    %1572 = vmatprep.subr.mxu0 0.0
    %1573 = vmatpush2.msra.mxu0 0.0
    %1574 = vmatprep.subr.mxu0 0.0
    %1575 = vmatpush2.msra.mxu0 0.0
    %1576 = vmatprep.subr.mxu0 0.0
    %1577 = vmatpush2.msra.mxu0 0.0
    %1578 = vmatprep.mubr.f32.mxu0 0.0
    %v1579 = vand.u32 %v75, 4294901760
    %1580 = vmatmul.mubr.f32.gmra.mxu0 %v1579
    %v1581 = vpop.f32.mrf.mxu0
    %v1582 = vadd.f32 %v1491, %v1581
    %v1583 = vpop.f32.mrf.mxu0
    %1584 = vmatprep.mubr.f32.mxu0 0.0
    %v1585 = vand.u32 %v78, 4294901760
    %1586 = vmatmul.mubr.f32.gmra.mxu0 %v1585
    %v1587 = vpop.f32.mrf.mxu0
    %v1588 = vadd.f32 %v1499, %v1587
    %v1589 = vpop.f32.mrf.mxu0
    %1590 = vdwg.mxu0
    %1591 = vmatprep.subr.mxu0 0.0
    %1592 = vmatpush1.msra.mxu0 0.0
    %1593 = vmatprep.subr.mxu0 0.0
    %1594 = vmatpush1.msra.mxu0 0.0
    %1595 = vmatprep.subr.mxu0 0.0
    %1596 = vmatpush1.msra.mxu0 0.0
    %1597 = vmatprep.subr.mxu0 0.0
    %1598 = vmatpush1.msra.mxu0 0.0
    %1599 = vmatprep.subr.mxu0 0.0
    %1600 = vmatpush1.msra.mxu0 0.0
    %1601 = vmatprep.subr.mxu0 0.0
    %1602 = vmatpush1.msra.mxu0 0.0
    %1603 = vmatprep.subr.mxu0 0.0
    %1604 = vmatpush1.msra.mxu0 0.0
    %1605 = vmatprep.subr.mxu0 0.0
    %1606 = vmatpush1.msra.mxu0 0.0
    %1607 = vmatprep.subr.mxu0 0.0
    %1608 = vmatpush1.msra.mxu0 0.0
    %1609 = vmatprep.subr.mxu0 0.0
    %1610 = vmatpush1.msra.mxu0 0.0
    %1611 = vmatprep.subr.mxu0 0.0
    %1612 = vmatpush1.msra.mxu0 0.0
    %1613 = vmatprep.subr.mxu0 0.0
    %1614 = vmatpush1.msra.mxu0 0.0
    %1615 = vmatprep.subr.mxu0 0.0
    %v1616 = vand.u32 %v1143, 4294901760
    %1617 = vmatpush1.msra.mxu0 %v1616
    %1618 = vmatprep.subr.mxu0 0.0
    %v1619 = vand.u32 %v1142, 4294901760
    %1620 = vmatpush1.msra.mxu0 %v1619
    %1621 = vmatprep.subr.mxu0 0.0
    %v1622 = vand.u32 %v1141, 4294901760
    %1623 = vmatpush1.msra.mxu0 %v1622
    %1624 = vmatprep.subr.mxu0 0.0
    %v1625 = vand.u32 %v1140, 4294901760
    %1626 = vmatpush1.msra.mxu0 %v1625
    %1627 = vmatprep.subr.mxu0 0.0
    %1628 = vmatpush2.msra.mxu0 0.0
    %1629 = vmatprep.subr.mxu0 0.0
    %1630 = vmatpush2.msra.mxu0 0.0
    %1631 = vmatprep.subr.mxu0 0.0
    %1632 = vmatpush2.msra.mxu0 0.0
    %1633 = vmatprep.subr.mxu0 0.0
    %1634 = vmatpush2.msra.mxu0 0.0
    %1635 = vmatprep.subr.mxu0 0.0
    %1636 = vmatpush2.msra.mxu0 0.0
    %1637 = vmatprep.subr.mxu0 0.0
    %1638 = vmatpush2.msra.mxu0 0.0
    %1639 = vmatprep.subr.mxu0 0.0
    %1640 = vmatpush2.msra.mxu0 0.0
    %1641 = vmatprep.subr.mxu0 0.0
    %1642 = vmatpush2.msra.mxu0 0.0
    %1643 = vmatprep.subr.mxu0 0.0
    %1644 = vmatpush2.msra.mxu0 0.0
    %1645 = vmatprep.subr.mxu0 0.0
    %1646 = vmatpush2.msra.mxu0 0.0
    %1647 = vmatprep.subr.mxu0 0.0
    %1648 = vmatpush2.msra.mxu0 0.0
    %1649 = vmatprep.subr.mxu0 0.0
    %1650 = vmatpush2.msra.mxu0 0.0
    %1651 = vmatprep.subr.mxu0 0.0
    %1652 = vmatpush2.msra.mxu0 0.0
    %1653 = vmatprep.subr.mxu0 0.0
    %1654 = vmatpush2.msra.mxu0 0.0
    %1655 = vmatprep.subr.mxu0 0.0
    %1656 = vmatpush2.msra.mxu0 0.0
    %1657 = vmatprep.subr.mxu0 0.0
    %1658 = vmatpush2.msra.mxu0 0.0
    %1659 = vmatprep.mubr.f32.mxu0 0.0
    %v1660 = vand.u32 %v75, 4294901760
    %1661 = vmatmul.mubr.f32.gmra.mxu0 %v1660
    %v1662 = vpop.f32.mrf.mxu0
    %v1663 = vadd.f32 %v1582, %v1662
    %v1664 = vpop.f32.mrf.mxu0
    %1665 = vmatprep.mubr.f32.mxu0 0.0
    %v1666 = vand.u32 %v78, 4294901760
    %1667 = vmatmul.mubr.f32.gmra.mxu0 %v1666
    %v1668 = vpop.f32.mrf.mxu0
    %v1669 = vadd.f32 %v1588, %v1668
    %v1670 = vpop.f32.mrf.mxu0
    %1671 = vdwg.mxu0
    %v1673 = vsel %vm39, %v60, 0
    %1675 = vmatprep.subr.mxu0 0.0
    %1676 = vmatpush1.msra.mxu0 0.0
    %1677 = vmatprep.subr.mxu0 0.0
    %1678 = vmatpush1.msra.mxu0 0.0
    %1679 = vmatprep.subr.mxu0 0.0
    %1680 = vmatpush1.msra.mxu0 0.0
    %1681 = vmatprep.subr.mxu0 0.0
    %1682 = vmatpush1.msra.mxu0 0.0
    %1683 = vmatprep.subr.mxu0 0.0
    %1684 = vmatpush1.msra.mxu0 0.0
    %1685 = vmatprep.subr.mxu0 0.0
    %1686 = vmatpush1.msra.mxu0 0.0
    %1687 = vmatprep.subr.mxu0 0.0
    %1688 = vmatpush1.msra.mxu0 0.0
    %1689 = vmatprep.subr.mxu0 0.0
    %1690 = vmatpush1.msra.mxu0 0.0
    %1691 = vmatprep.subr.mxu0 0.0
    %1692 = vmatpush1.msra.mxu0 0.0
    %1693 = vmatprep.subr.mxu0 0.0
    %1694 = vmatpush1.msra.mxu0 0.0
    %1695 = vmatprep.subr.mxu0 0.0
    %1696 = vmatpush1.msra.mxu0 0.0
    %1697 = vmatprep.subr.mxu0 0.0
    %1698 = vmatpush1.msra.mxu0 0.0
    %1699 = vmatprep.subr.mxu0 0.0
    %1700 = vmatpush1.msra.mxu0 0.0
    %1701 = vmatprep.subr.mxu0 0.0
    %1702 = vmatpush1.msra.mxu0 0.0
    %1703 = vmatprep.subr.mxu0 0.0
    %1704 = vmatpush1.msra.mxu0 0.0
    %1705 = vmatprep.subr.mxu0 0.0
    %v1706 = vand.u32 %v1131, 4294901760
    %1707 = vmatpush1.msra.mxu0 %v1706
    %1708 = vmatprep.subr.mxu0 0.0
    %1709 = vmatpush2.msra.mxu0 0.0
    %1710 = vmatprep.subr.mxu0 0.0
    %1711 = vmatpush2.msra.mxu0 0.0
    %1712 = vmatprep.subr.mxu0 0.0
    %1713 = vmatpush2.msra.mxu0 0.0
    %1714 = vmatprep.subr.mxu0 0.0
    %1715 = vmatpush2.msra.mxu0 0.0
    %1716 = vmatprep.subr.mxu0 0.0
    %1717 = vmatpush2.msra.mxu0 0.0
    %1718 = vmatprep.subr.mxu0 0.0
    %1719 = vmatpush2.msra.mxu0 0.0
    %1720 = vmatprep.subr.mxu0 0.0
    %1721 = vmatpush2.msra.mxu0 0.0
    %1722 = vmatprep.subr.mxu0 0.0
    %1723 = vmatpush2.msra.mxu0 0.0
    %1724 = vmatprep.subr.mxu0 0.0
    %1725 = vmatpush2.msra.mxu0 0.0
    %1726 = vmatprep.subr.mxu0 0.0
    %1727 = vmatpush2.msra.mxu0 0.0
    %1728 = vmatprep.subr.mxu0 0.0
    %1729 = vmatpush2.msra.mxu0 0.0
    %1730 = vmatprep.subr.mxu0 0.0
    %1731 = vmatpush2.msra.mxu0 0.0
    %1732 = vmatprep.subr.mxu0 0.0
    %1733 = vmatpush2.msra.mxu0 0.0
    %1734 = vmatprep.subr.mxu0 0.0
    %1735 = vmatpush2.msra.mxu0 0.0
    %1736 = vmatprep.subr.mxu0 0.0
    %1737 = vmatpush2.msra.mxu0 0.0
    %1738 = vmatprep.subr.mxu0 0.0
    %1739 = vmatpush2.msra.mxu0 0.0
    %1740 = vmatprep.mubr.f32.mxu0 0.0
    %v1741 = vand.u32 %v1673, 4294901760
    %v1742 = vsub.f32 %v1673, %v1741
    %v1743 = vand.u32 %v1742, 4294901760
    %v1744 = vsub.f32 %v1742, %v1743
    %v1745 = vand.u32 %v1744, 4294901760
    %1746 = vmatmul.mubr.f32.gmra.mxu0 %v1745
    %v1747 = vpop.f32.mrf.mxu0
    %v1748 = vadd.f32 0.0, %v1747
    %v1749 = vpop.f32.mrf.mxu0
    %1750 = vdwg.mxu0
    %1751 = vmatprep.subr.mxu0 0.0
    %1752 = vmatpush1.msra.mxu0 0.0
    %1753 = vmatprep.subr.mxu0 0.0
    %1754 = vmatpush1.msra.mxu0 0.0
    %1755 = vmatprep.subr.mxu0 0.0
    %1756 = vmatpush1.msra.mxu0 0.0
    %1757 = vmatprep.subr.mxu0 0.0
    %1758 = vmatpush1.msra.mxu0 0.0
    %1759 = vmatprep.subr.mxu0 0.0
    %1760 = vmatpush1.msra.mxu0 0.0
    %1761 = vmatprep.subr.mxu0 0.0
    %1762 = vmatpush1.msra.mxu0 0.0
    %1763 = vmatprep.subr.mxu0 0.0
    %1764 = vmatpush1.msra.mxu0 0.0
    %1765 = vmatprep.subr.mxu0 0.0
    %1766 = vmatpush1.msra.mxu0 0.0
    %1767 = vmatprep.subr.mxu0 0.0
    %1768 = vmatpush1.msra.mxu0 0.0
    %1769 = vmatprep.subr.mxu0 0.0
    %1770 = vmatpush1.msra.mxu0 0.0
    %1771 = vmatprep.subr.mxu0 0.0
    %1772 = vmatpush1.msra.mxu0 0.0
    %1773 = vmatprep.subr.mxu0 0.0
    %1774 = vmatpush1.msra.mxu0 0.0
    %1775 = vmatprep.subr.mxu0 0.0
    %1776 = vmatpush1.msra.mxu0 0.0
    %1777 = vmatprep.subr.mxu0 0.0
    %1778 = vmatpush1.msra.mxu0 0.0
    %1779 = vmatprep.subr.mxu0 0.0
    %1780 = vmatpush1.msra.mxu0 0.0
    %1781 = vmatprep.subr.mxu0 0.0
    %v1782 = vand.u32 %v1131, 4294901760
    %v1783 = vsub.f32 %v1131, %v1782
    %v1784 = vand.u32 %v1783, 4294901760
    %v1785 = vsub.f32 %v1783, %v1784
    %v1786 = vand.u32 %v1785, 4294901760
    %1787 = vmatpush1.msra.mxu0 %v1786
    %1788 = vmatprep.subr.mxu0 0.0
    %1789 = vmatpush2.msra.mxu0 0.0
    %1790 = vmatprep.subr.mxu0 0.0
    %1791 = vmatpush2.msra.mxu0 0.0
    %1792 = vmatprep.subr.mxu0 0.0
    %1793 = vmatpush2.msra.mxu0 0.0
    %1794 = vmatprep.subr.mxu0 0.0
    %1795 = vmatpush2.msra.mxu0 0.0
    %1796 = vmatprep.subr.mxu0 0.0
    %1797 = vmatpush2.msra.mxu0 0.0
    %1798 = vmatprep.subr.mxu0 0.0
    %1799 = vmatpush2.msra.mxu0 0.0
    %1800 = vmatprep.subr.mxu0 0.0
    %1801 = vmatpush2.msra.mxu0 0.0
    %1802 = vmatprep.subr.mxu0 0.0
    %1803 = vmatpush2.msra.mxu0 0.0
    %1804 = vmatprep.subr.mxu0 0.0
    %1805 = vmatpush2.msra.mxu0 0.0
    %1806 = vmatprep.subr.mxu0 0.0
    %1807 = vmatpush2.msra.mxu0 0.0
    %1808 = vmatprep.subr.mxu0 0.0
    %1809 = vmatpush2.msra.mxu0 0.0
    %1810 = vmatprep.subr.mxu0 0.0
    %1811 = vmatpush2.msra.mxu0 0.0
    %1812 = vmatprep.subr.mxu0 0.0
    %1813 = vmatpush2.msra.mxu0 0.0
    %1814 = vmatprep.subr.mxu0 0.0
    %1815 = vmatpush2.msra.mxu0 0.0
    %1816 = vmatprep.subr.mxu0 0.0
    %1817 = vmatpush2.msra.mxu0 0.0
    %1818 = vmatprep.subr.mxu0 0.0
    %1819 = vmatpush2.msra.mxu0 0.0
    %1820 = vmatprep.mubr.f32.mxu0 0.0
    %v1821 = vand.u32 %v1673, 4294901760
    %1822 = vmatmul.mubr.f32.gmra.mxu0 %v1821
    %v1823 = vpop.f32.mrf.mxu0
    %v1824 = vadd.f32 %v1748, %v1823
    %v1825 = vpop.f32.mrf.mxu0
    %1826 = vdwg.mxu0
    %1827 = vmatprep.subr.mxu0 0.0
    %1828 = vmatpush1.msra.mxu0 0.0
    %1829 = vmatprep.subr.mxu0 0.0
    %1830 = vmatpush1.msra.mxu0 0.0
    %1831 = vmatprep.subr.mxu0 0.0
    %1832 = vmatpush1.msra.mxu0 0.0
    %1833 = vmatprep.subr.mxu0 0.0
    %1834 = vmatpush1.msra.mxu0 0.0
    %1835 = vmatprep.subr.mxu0 0.0
    %1836 = vmatpush1.msra.mxu0 0.0
    %1837 = vmatprep.subr.mxu0 0.0
    %1838 = vmatpush1.msra.mxu0 0.0
    %1839 = vmatprep.subr.mxu0 0.0
    %1840 = vmatpush1.msra.mxu0 0.0
    %1841 = vmatprep.subr.mxu0 0.0
    %1842 = vmatpush1.msra.mxu0 0.0
    %1843 = vmatprep.subr.mxu0 0.0
    %1844 = vmatpush1.msra.mxu0 0.0
    %1845 = vmatprep.subr.mxu0 0.0
    %1846 = vmatpush1.msra.mxu0 0.0
    %1847 = vmatprep.subr.mxu0 0.0
    %1848 = vmatpush1.msra.mxu0 0.0
    %1849 = vmatprep.subr.mxu0 0.0
    %1850 = vmatpush1.msra.mxu0 0.0
    %1851 = vmatprep.subr.mxu0 0.0
    %1852 = vmatpush1.msra.mxu0 0.0
    %1853 = vmatprep.subr.mxu0 0.0
    %1854 = vmatpush1.msra.mxu0 0.0
    %1855 = vmatprep.subr.mxu0 0.0
    %1856 = vmatpush1.msra.mxu0 0.0
    %1857 = vmatprep.subr.mxu0 0.0
    %v1858 = vand.u32 %v1131, 4294901760
    %v1859 = vsub.f32 %v1131, %v1858
    %1860 = vmatpush1.msra.mxu0 %v1859
    %1861 = vmatprep.subr.mxu0 0.0
    %1862 = vmatpush2.msra.mxu0 0.0
    %1863 = vmatprep.subr.mxu0 0.0
    %1864 = vmatpush2.msra.mxu0 0.0
    %1865 = vmatprep.subr.mxu0 0.0
    %1866 = vmatpush2.msra.mxu0 0.0
    %1867 = vmatprep.subr.mxu0 0.0
    %1868 = vmatpush2.msra.mxu0 0.0
    %1869 = vmatprep.subr.mxu0 0.0
    %1870 = vmatpush2.msra.mxu0 0.0
    %1871 = vmatprep.subr.mxu0 0.0
    %1872 = vmatpush2.msra.mxu0 0.0
    %1873 = vmatprep.subr.mxu0 0.0
    %1874 = vmatpush2.msra.mxu0 0.0
    %1875 = vmatprep.subr.mxu0 0.0
    %1876 = vmatpush2.msra.mxu0 0.0
    %1877 = vmatprep.subr.mxu0 0.0
    %1878 = vmatpush2.msra.mxu0 0.0
    %1879 = vmatprep.subr.mxu0 0.0
    %1880 = vmatpush2.msra.mxu0 0.0
    %1881 = vmatprep.subr.mxu0 0.0
    %1882 = vmatpush2.msra.mxu0 0.0
    %1883 = vmatprep.subr.mxu0 0.0
    %1884 = vmatpush2.msra.mxu0 0.0
    %1885 = vmatprep.subr.mxu0 0.0
    %1886 = vmatpush2.msra.mxu0 0.0
    %1887 = vmatprep.subr.mxu0 0.0
    %1888 = vmatpush2.msra.mxu0 0.0
    %1889 = vmatprep.subr.mxu0 0.0
    %1890 = vmatpush2.msra.mxu0 0.0
    %1891 = vmatprep.subr.mxu0 0.0
    %1892 = vmatpush2.msra.mxu0 0.0
    %1893 = vmatprep.mubr.f32.mxu0 0.0
    %v1894 = vand.u32 %v1673, 4294901760
    %v1895 = vsub.f32 %v1673, %v1894
    %1896 = vmatmul.mubr.f32.gmra.mxu0 %v1895
    %v1897 = vpop.f32.mrf.mxu0
    %v1898 = vadd.f32 %v1824, %v1897
    %v1899 = vpop.f32.mrf.mxu0
    %1900 = vdwg.mxu0
    %1901 = vmatprep.subr.mxu0 0.0
    %1902 = vmatpush1.msra.mxu0 0.0
    %1903 = vmatprep.subr.mxu0 0.0
    %1904 = vmatpush1.msra.mxu0 0.0
    %1905 = vmatprep.subr.mxu0 0.0
    %1906 = vmatpush1.msra.mxu0 0.0
    %1907 = vmatprep.subr.mxu0 0.0
    %1908 = vmatpush1.msra.mxu0 0.0
    %1909 = vmatprep.subr.mxu0 0.0
    %1910 = vmatpush1.msra.mxu0 0.0
    %1911 = vmatprep.subr.mxu0 0.0
    %1912 = vmatpush1.msra.mxu0 0.0
    %1913 = vmatprep.subr.mxu0 0.0
    %1914 = vmatpush1.msra.mxu0 0.0
    %1915 = vmatprep.subr.mxu0 0.0
    %1916 = vmatpush1.msra.mxu0 0.0
    %1917 = vmatprep.subr.mxu0 0.0
    %1918 = vmatpush1.msra.mxu0 0.0
    %1919 = vmatprep.subr.mxu0 0.0
    %1920 = vmatpush1.msra.mxu0 0.0
    %1921 = vmatprep.subr.mxu0 0.0
    %1922 = vmatpush1.msra.mxu0 0.0
    %1923 = vmatprep.subr.mxu0 0.0
    %1924 = vmatpush1.msra.mxu0 0.0
    %1925 = vmatprep.subr.mxu0 0.0
    %1926 = vmatpush1.msra.mxu0 0.0
    %1927 = vmatprep.subr.mxu0 0.0
    %1928 = vmatpush1.msra.mxu0 0.0
    %1929 = vmatprep.subr.mxu0 0.0
    %1930 = vmatpush1.msra.mxu0 0.0
    %1931 = vmatprep.subr.mxu0 0.0
    %v1932 = vand.u32 %v1131, 4294901760
    %1933 = vmatpush1.msra.mxu0 %v1932
    %1934 = vmatprep.subr.mxu0 0.0
    %1935 = vmatpush2.msra.mxu0 0.0
    %1936 = vmatprep.subr.mxu0 0.0
    %1937 = vmatpush2.msra.mxu0 0.0
    %1938 = vmatprep.subr.mxu0 0.0
    %1939 = vmatpush2.msra.mxu0 0.0
    %1940 = vmatprep.subr.mxu0 0.0
    %1941 = vmatpush2.msra.mxu0 0.0
    %1942 = vmatprep.subr.mxu0 0.0
    %1943 = vmatpush2.msra.mxu0 0.0
    %1944 = vmatprep.subr.mxu0 0.0
    %1945 = vmatpush2.msra.mxu0 0.0
    %1946 = vmatprep.subr.mxu0 0.0
    %1947 = vmatpush2.msra.mxu0 0.0
    %1948 = vmatprep.subr.mxu0 0.0
    %1949 = vmatpush2.msra.mxu0 0.0
    %1950 = vmatprep.subr.mxu0 0.0
    %1951 = vmatpush2.msra.mxu0 0.0
    %1952 = vmatprep.subr.mxu0 0.0
    %1953 = vmatpush2.msra.mxu0 0.0
    %1954 = vmatprep.subr.mxu0 0.0
    %1955 = vmatpush2.msra.mxu0 0.0
    %1956 = vmatprep.subr.mxu0 0.0
    %1957 = vmatpush2.msra.mxu0 0.0
    %1958 = vmatprep.subr.mxu0 0.0
    %1959 = vmatpush2.msra.mxu0 0.0
    %1960 = vmatprep.subr.mxu0 0.0
    %1961 = vmatpush2.msra.mxu0 0.0
    %1962 = vmatprep.subr.mxu0 0.0
    %1963 = vmatpush2.msra.mxu0 0.0
    %1964 = vmatprep.subr.mxu0 0.0
    %1965 = vmatpush2.msra.mxu0 0.0
    %1966 = vmatprep.mubr.f32.mxu0 0.0
    %v1967 = vand.u32 %v1673, 4294901760
    %v1968 = vsub.f32 %v1673, %v1967
    %v1969 = vand.u32 %v1968, 4294901760
    %1970 = vmatmul.mubr.f32.gmra.mxu0 %v1969
    %v1971 = vpop.f32.mrf.mxu0
    %v1972 = vadd.f32 %v1898, %v1971
    %v1973 = vpop.f32.mrf.mxu0
    %1974 = vdwg.mxu0
    %1975 = vmatprep.subr.mxu0 0.0
    %1976 = vmatpush1.msra.mxu0 0.0
    %1977 = vmatprep.subr.mxu0 0.0
    %1978 = vmatpush1.msra.mxu0 0.0
    %1979 = vmatprep.subr.mxu0 0.0
    %1980 = vmatpush1.msra.mxu0 0.0
    %1981 = vmatprep.subr.mxu0 0.0
    %1982 = vmatpush1.msra.mxu0 0.0
    %1983 = vmatprep.subr.mxu0 0.0
    %1984 = vmatpush1.msra.mxu0 0.0
    %1985 = vmatprep.subr.mxu0 0.0
    %1986 = vmatpush1.msra.mxu0 0.0
    %1987 = vmatprep.subr.mxu0 0.0
    %1988 = vmatpush1.msra.mxu0 0.0
    %1989 = vmatprep.subr.mxu0 0.0
    %1990 = vmatpush1.msra.mxu0 0.0
    %1991 = vmatprep.subr.mxu0 0.0
    %1992 = vmatpush1.msra.mxu0 0.0
    %1993 = vmatprep.subr.mxu0 0.0
    %1994 = vmatpush1.msra.mxu0 0.0
    %1995 = vmatprep.subr.mxu0 0.0
    %1996 = vmatpush1.msra.mxu0 0.0
    %1997 = vmatprep.subr.mxu0 0.0
    %1998 = vmatpush1.msra.mxu0 0.0
    %1999 = vmatprep.subr.mxu0 0.0
    %2000 = vmatpush1.msra.mxu0 0.0
    %2001 = vmatprep.subr.mxu0 0.0
    %2002 = vmatpush1.msra.mxu0 0.0
    %2003 = vmatprep.subr.mxu0 0.0
    %2004 = vmatpush1.msra.mxu0 0.0
    %2005 = vmatprep.subr.mxu0 0.0
    %v2006 = vand.u32 %v1131, 4294901760
    %v2007 = vsub.f32 %v1131, %v2006
    %v2008 = vand.u32 %v2007, 4294901760
    %2009 = vmatpush1.msra.mxu0 %v2008
    %2010 = vmatprep.subr.mxu0 0.0
    %2011 = vmatpush2.msra.mxu0 0.0
    %2012 = vmatprep.subr.mxu0 0.0
    %2013 = vmatpush2.msra.mxu0 0.0
    %2014 = vmatprep.subr.mxu0 0.0
    %2015 = vmatpush2.msra.mxu0 0.0
    %2016 = vmatprep.subr.mxu0 0.0
    %2017 = vmatpush2.msra.mxu0 0.0
    %2018 = vmatprep.subr.mxu0 0.0
    %2019 = vmatpush2.msra.mxu0 0.0
    %2020 = vmatprep.subr.mxu0 0.0
    %2021 = vmatpush2.msra.mxu0 0.0
    %2022 = vmatprep.subr.mxu0 0.0
    %2023 = vmatpush2.msra.mxu0 0.0
    %2024 = vmatprep.subr.mxu0 0.0
    %2025 = vmatpush2.msra.mxu0 0.0
    %2026 = vmatprep.subr.mxu0 0.0
    %2027 = vmatpush2.msra.mxu0 0.0
    %2028 = vmatprep.subr.mxu0 0.0
    %2029 = vmatpush2.msra.mxu0 0.0
    %2030 = vmatprep.subr.mxu0 0.0
    %2031 = vmatpush2.msra.mxu0 0.0
    %2032 = vmatprep.subr.mxu0 0.0
    %2033 = vmatpush2.msra.mxu0 0.0
    %2034 = vmatprep.subr.mxu0 0.0
    %2035 = vmatpush2.msra.mxu0 0.0
    %2036 = vmatprep.subr.mxu0 0.0
    %2037 = vmatpush2.msra.mxu0 0.0
    %2038 = vmatprep.subr.mxu0 0.0
    %2039 = vmatpush2.msra.mxu0 0.0
    %2040 = vmatprep.subr.mxu0 0.0
    %2041 = vmatpush2.msra.mxu0 0.0
    %2042 = vmatprep.mubr.f32.mxu0 0.0
    %v2043 = vand.u32 %v1673, 4294901760
    %2044 = vmatmul.mubr.f32.gmra.mxu0 %v2043
    %v2045 = vpop.f32.mrf.mxu0
    %v2046 = vadd.f32 %v1972, %v2045
    %v2047 = vpop.f32.mrf.mxu0
    %2048 = vdwg.mxu0
    %2049 = vmatprep.subr.mxu0 0.0
    %2050 = vmatpush1.msra.mxu0 0.0
    %2051 = vmatprep.subr.mxu0 0.0
    %2052 = vmatpush1.msra.mxu0 0.0
    %2053 = vmatprep.subr.mxu0 0.0
    %2054 = vmatpush1.msra.mxu0 0.0
    %2055 = vmatprep.subr.mxu0 0.0
    %2056 = vmatpush1.msra.mxu0 0.0
    %2057 = vmatprep.subr.mxu0 0.0
    %2058 = vmatpush1.msra.mxu0 0.0
    %2059 = vmatprep.subr.mxu0 0.0
    %2060 = vmatpush1.msra.mxu0 0.0
    %2061 = vmatprep.subr.mxu0 0.0
    %2062 = vmatpush1.msra.mxu0 0.0
    %2063 = vmatprep.subr.mxu0 0.0
    %2064 = vmatpush1.msra.mxu0 0.0
    %2065 = vmatprep.subr.mxu0 0.0
    %2066 = vmatpush1.msra.mxu0 0.0
    %2067 = vmatprep.subr.mxu0 0.0
    %2068 = vmatpush1.msra.mxu0 0.0
    %2069 = vmatprep.subr.mxu0 0.0
    %2070 = vmatpush1.msra.mxu0 0.0
    %2071 = vmatprep.subr.mxu0 0.0
    %2072 = vmatpush1.msra.mxu0 0.0
    %2073 = vmatprep.subr.mxu0 0.0
    %2074 = vmatpush1.msra.mxu0 0.0
    %2075 = vmatprep.subr.mxu0 0.0
    %2076 = vmatpush1.msra.mxu0 0.0
    %2077 = vmatprep.subr.mxu0 0.0
    %2078 = vmatpush1.msra.mxu0 0.0
    %2079 = vmatprep.subr.mxu0 0.0
    %v2080 = vand.u32 %v1131, 4294901760
    %2081 = vmatpush1.msra.mxu0 %v2080
    %2082 = vmatprep.subr.mxu0 0.0
    %2083 = vmatpush2.msra.mxu0 0.0
    %2084 = vmatprep.subr.mxu0 0.0
    %2085 = vmatpush2.msra.mxu0 0.0
    %2086 = vmatprep.subr.mxu0 0.0
    %2087 = vmatpush2.msra.mxu0 0.0
    %2088 = vmatprep.subr.mxu0 0.0
    %2089 = vmatpush2.msra.mxu0 0.0
    %2090 = vmatprep.subr.mxu0 0.0
    %2091 = vmatpush2.msra.mxu0 0.0
    %2092 = vmatprep.subr.mxu0 0.0
    %2093 = vmatpush2.msra.mxu0 0.0
    %2094 = vmatprep.subr.mxu0 0.0
    %2095 = vmatpush2.msra.mxu0 0.0
    %2096 = vmatprep.subr.mxu0 0.0
    %2097 = vmatpush2.msra.mxu0 0.0
    %2098 = vmatprep.subr.mxu0 0.0
    %2099 = vmatpush2.msra.mxu0 0.0
    %2100 = vmatprep.subr.mxu0 0.0
    %2101 = vmatpush2.msra.mxu0 0.0
    %2102 = vmatprep.subr.mxu0 0.0
    %2103 = vmatpush2.msra.mxu0 0.0
    %2104 = vmatprep.subr.mxu0 0.0
    %2105 = vmatpush2.msra.mxu0 0.0
    %2106 = vmatprep.subr.mxu0 0.0
    %2107 = vmatpush2.msra.mxu0 0.0
    %2108 = vmatprep.subr.mxu0 0.0
    %2109 = vmatpush2.msra.mxu0 0.0
    %2110 = vmatprep.subr.mxu0 0.0
    %2111 = vmatpush2.msra.mxu0 0.0
    %2112 = vmatprep.subr.mxu0 0.0
    %2113 = vmatpush2.msra.mxu0 0.0
    %2114 = vmatprep.mubr.f32.mxu0 0.0
    %v2115 = vand.u32 %v1673, 4294901760
    %2116 = vmatmul.mubr.f32.gmra.mxu0 %v2115
    %v2117 = vpop.f32.mrf.mxu0
    %v2118 = vadd.f32 %v2046, %v2117
    %v2119 = vpop.f32.mrf.mxu0
    %2120 = vdwg.mxu0
    %v2121 = vadd.f32 %v599, %v2118
    %v2123 = vsel %vm39, %v61, 0
    %2125 = vmatprep.subr.mxu0 0.0
    %2126 = vmatpush1.msra.mxu0 0.0
    %2127 = vmatprep.subr.mxu0 0.0
    %2128 = vmatpush1.msra.mxu0 0.0
    %2129 = vmatprep.subr.mxu0 0.0
    %2130 = vmatpush1.msra.mxu0 0.0
    %2131 = vmatprep.subr.mxu0 0.0
    %2132 = vmatpush1.msra.mxu0 0.0
    %2133 = vmatprep.subr.mxu0 0.0
    %2134 = vmatpush1.msra.mxu0 0.0
    %2135 = vmatprep.subr.mxu0 0.0
    %2136 = vmatpush1.msra.mxu0 0.0
    %2137 = vmatprep.subr.mxu0 0.0
    %2138 = vmatpush1.msra.mxu0 0.0
    %2139 = vmatprep.subr.mxu0 0.0
    %2140 = vmatpush1.msra.mxu0 0.0
    %2141 = vmatprep.subr.mxu0 0.0
    %2142 = vmatpush1.msra.mxu0 0.0
    %2143 = vmatprep.subr.mxu0 0.0
    %2144 = vmatpush1.msra.mxu0 0.0
    %2145 = vmatprep.subr.mxu0 0.0
    %2146 = vmatpush1.msra.mxu0 0.0
    %2147 = vmatprep.subr.mxu0 0.0
    %2148 = vmatpush1.msra.mxu0 0.0
    %2149 = vmatprep.subr.mxu0 0.0
    %2150 = vmatpush1.msra.mxu0 0.0
    %2151 = vmatprep.subr.mxu0 0.0
    %2152 = vmatpush1.msra.mxu0 0.0
    %2153 = vmatprep.subr.mxu0 0.0
    %2154 = vmatpush1.msra.mxu0 0.0
    %2155 = vmatprep.subr.mxu0 0.0
    %v2156 = vand.u32 %v1663, 4294901760
    %2157 = vmatpush1.msra.mxu0 %v2156
    %2158 = vmatprep.subr.mxu0 0.0
    %2159 = vmatpush2.msra.mxu0 0.0
    %2160 = vmatprep.subr.mxu0 0.0
    %2161 = vmatpush2.msra.mxu0 0.0
    %2162 = vmatprep.subr.mxu0 0.0
    %2163 = vmatpush2.msra.mxu0 0.0
    %2164 = vmatprep.subr.mxu0 0.0
    %2165 = vmatpush2.msra.mxu0 0.0
    %2166 = vmatprep.subr.mxu0 0.0
    %2167 = vmatpush2.msra.mxu0 0.0
    %2168 = vmatprep.subr.mxu0 0.0
    %2169 = vmatpush2.msra.mxu0 0.0
    %2170 = vmatprep.subr.mxu0 0.0
    %2171 = vmatpush2.msra.mxu0 0.0
    %2172 = vmatprep.subr.mxu0 0.0
    %2173 = vmatpush2.msra.mxu0 0.0
    %2174 = vmatprep.subr.mxu0 0.0
    %2175 = vmatpush2.msra.mxu0 0.0
    %2176 = vmatprep.subr.mxu0 0.0
    %2177 = vmatpush2.msra.mxu0 0.0
    %2178 = vmatprep.subr.mxu0 0.0
    %2179 = vmatpush2.msra.mxu0 0.0
    %2180 = vmatprep.subr.mxu0 0.0
    %2181 = vmatpush2.msra.mxu0 0.0
    %2182 = vmatprep.subr.mxu0 0.0
    %2183 = vmatpush2.msra.mxu0 0.0
    %2184 = vmatprep.subr.mxu0 0.0
    %2185 = vmatpush2.msra.mxu0 0.0
    %2186 = vmatprep.subr.mxu0 0.0
    %2187 = vmatpush2.msra.mxu0 0.0
    %2188 = vmatprep.subr.mxu0 0.0
    %2189 = vmatpush2.msra.mxu0 0.0
    %2190 = vmatprep.mubr.f32.mxu0 0.0
    %v2191 = vand.u32 %v2123, 4294901760
    %v2192 = vsub.f32 %v2123, %v2191
    %v2193 = vand.u32 %v2192, 4294901760
    %v2194 = vsub.f32 %v2192, %v2193
    %v2195 = vand.u32 %v2194, 4294901760
    %2196 = vmatmul.mubr.f32.gmra.mxu0 %v2195
    %v2197 = vpop.f32.mrf.mxu0
    %v2198 = vadd.f32 0.0, %v2197
    %v2199 = vpop.f32.mrf.mxu0
    %2200 = vdwg.mxu0
    %2201 = vmatprep.subr.mxu0 0.0
    %2202 = vmatpush1.msra.mxu0 0.0
    %2203 = vmatprep.subr.mxu0 0.0
    %2204 = vmatpush1.msra.mxu0 0.0
    %2205 = vmatprep.subr.mxu0 0.0
    %2206 = vmatpush1.msra.mxu0 0.0
    %2207 = vmatprep.subr.mxu0 0.0
    %2208 = vmatpush1.msra.mxu0 0.0
    %2209 = vmatprep.subr.mxu0 0.0
    %2210 = vmatpush1.msra.mxu0 0.0
    %2211 = vmatprep.subr.mxu0 0.0
    %2212 = vmatpush1.msra.mxu0 0.0
    %2213 = vmatprep.subr.mxu0 0.0
    %2214 = vmatpush1.msra.mxu0 0.0
    %2215 = vmatprep.subr.mxu0 0.0
    %2216 = vmatpush1.msra.mxu0 0.0
    %2217 = vmatprep.subr.mxu0 0.0
    %2218 = vmatpush1.msra.mxu0 0.0
    %2219 = vmatprep.subr.mxu0 0.0
    %2220 = vmatpush1.msra.mxu0 0.0
    %2221 = vmatprep.subr.mxu0 0.0
    %2222 = vmatpush1.msra.mxu0 0.0
    %2223 = vmatprep.subr.mxu0 0.0
    %2224 = vmatpush1.msra.mxu0 0.0
    %2225 = vmatprep.subr.mxu0 0.0
    %2226 = vmatpush1.msra.mxu0 0.0
    %2227 = vmatprep.subr.mxu0 0.0
    %2228 = vmatpush1.msra.mxu0 0.0
    %2229 = vmatprep.subr.mxu0 0.0
    %2230 = vmatpush1.msra.mxu0 0.0
    %2231 = vmatprep.subr.mxu0 0.0
    %v2232 = vand.u32 %v1663, 4294901760
    %v2233 = vsub.f32 %v1663, %v2232
    %v2234 = vand.u32 %v2233, 4294901760
    %v2235 = vsub.f32 %v2233, %v2234
    %v2236 = vand.u32 %v2235, 4294901760
    %2237 = vmatpush1.msra.mxu0 %v2236
    %2238 = vmatprep.subr.mxu0 0.0
    %2239 = vmatpush2.msra.mxu0 0.0
    %2240 = vmatprep.subr.mxu0 0.0
    %2241 = vmatpush2.msra.mxu0 0.0
    %2242 = vmatprep.subr.mxu0 0.0
    %2243 = vmatpush2.msra.mxu0 0.0
    %2244 = vmatprep.subr.mxu0 0.0
    %2245 = vmatpush2.msra.mxu0 0.0
    %2246 = vmatprep.subr.mxu0 0.0
    %2247 = vmatpush2.msra.mxu0 0.0
    %2248 = vmatprep.subr.mxu0 0.0
    %2249 = vmatpush2.msra.mxu0 0.0
    %2250 = vmatprep.subr.mxu0 0.0
    %2251 = vmatpush2.msra.mxu0 0.0
    %2252 = vmatprep.subr.mxu0 0.0
    %2253 = vmatpush2.msra.mxu0 0.0
    %2254 = vmatprep.subr.mxu0 0.0
    %2255 = vmatpush2.msra.mxu0 0.0
    %2256 = vmatprep.subr.mxu0 0.0
    %2257 = vmatpush2.msra.mxu0 0.0
    %2258 = vmatprep.subr.mxu0 0.0
    %2259 = vmatpush2.msra.mxu0 0.0
    %2260 = vmatprep.subr.mxu0 0.0
    %2261 = vmatpush2.msra.mxu0 0.0
    %2262 = vmatprep.subr.mxu0 0.0
    %2263 = vmatpush2.msra.mxu0 0.0
    %2264 = vmatprep.subr.mxu0 0.0
    %2265 = vmatpush2.msra.mxu0 0.0
    %2266 = vmatprep.subr.mxu0 0.0
    %2267 = vmatpush2.msra.mxu0 0.0
    %2268 = vmatprep.subr.mxu0 0.0
    %2269 = vmatpush2.msra.mxu0 0.0
    %2270 = vmatprep.mubr.f32.mxu0 0.0
    %v2271 = vand.u32 %v2123, 4294901760
    %2272 = vmatmul.mubr.f32.gmra.mxu0 %v2271
    %v2273 = vpop.f32.mrf.mxu0
    %v2274 = vadd.f32 %v2198, %v2273
    %v2275 = vpop.f32.mrf.mxu0
    %2276 = vdwg.mxu0
    %2277 = vmatprep.subr.mxu0 0.0
    %2278 = vmatpush1.msra.mxu0 0.0
    %2279 = vmatprep.subr.mxu0 0.0
    %2280 = vmatpush1.msra.mxu0 0.0
    %2281 = vmatprep.subr.mxu0 0.0
    %2282 = vmatpush1.msra.mxu0 0.0
    %2283 = vmatprep.subr.mxu0 0.0
    %2284 = vmatpush1.msra.mxu0 0.0
    %2285 = vmatprep.subr.mxu0 0.0
    %2286 = vmatpush1.msra.mxu0 0.0
    %2287 = vmatprep.subr.mxu0 0.0
    %2288 = vmatpush1.msra.mxu0 0.0
    %2289 = vmatprep.subr.mxu0 0.0
    %2290 = vmatpush1.msra.mxu0 0.0
    %2291 = vmatprep.subr.mxu0 0.0
    %2292 = vmatpush1.msra.mxu0 0.0
    %2293 = vmatprep.subr.mxu0 0.0
    %2294 = vmatpush1.msra.mxu0 0.0
    %2295 = vmatprep.subr.mxu0 0.0
    %2296 = vmatpush1.msra.mxu0 0.0
    %2297 = vmatprep.subr.mxu0 0.0
    %2298 = vmatpush1.msra.mxu0 0.0
    %2299 = vmatprep.subr.mxu0 0.0
    %2300 = vmatpush1.msra.mxu0 0.0
    %2301 = vmatprep.subr.mxu0 0.0
    %2302 = vmatpush1.msra.mxu0 0.0
    %2303 = vmatprep.subr.mxu0 0.0
    %2304 = vmatpush1.msra.mxu0 0.0
    %2305 = vmatprep.subr.mxu0 0.0
    %2306 = vmatpush1.msra.mxu0 0.0
    %2307 = vmatprep.subr.mxu0 0.0
    %v2308 = vand.u32 %v1663, 4294901760
    %v2309 = vsub.f32 %v1663, %v2308
    %2310 = vmatpush1.msra.mxu0 %v2309
    %2311 = vmatprep.subr.mxu0 0.0
    %2312 = vmatpush2.msra.mxu0 0.0
    %2313 = vmatprep.subr.mxu0 0.0
    %2314 = vmatpush2.msra.mxu0 0.0
    %2315 = vmatprep.subr.mxu0 0.0
    %2316 = vmatpush2.msra.mxu0 0.0
    %2317 = vmatprep.subr.mxu0 0.0
    %2318 = vmatpush2.msra.mxu0 0.0
    %2319 = vmatprep.subr.mxu0 0.0
    %2320 = vmatpush2.msra.mxu0 0.0
    %2321 = vmatprep.subr.mxu0 0.0
    %2322 = vmatpush2.msra.mxu0 0.0
    %2323 = vmatprep.subr.mxu0 0.0
    %2324 = vmatpush2.msra.mxu0 0.0
    %2325 = vmatprep.subr.mxu0 0.0
    %2326 = vmatpush2.msra.mxu0 0.0
    %2327 = vmatprep.subr.mxu0 0.0
    %2328 = vmatpush2.msra.mxu0 0.0
    %2329 = vmatprep.subr.mxu0 0.0
    %2330 = vmatpush2.msra.mxu0 0.0
    %2331 = vmatprep.subr.mxu0 0.0
    %2332 = vmatpush2.msra.mxu0 0.0
    %2333 = vmatprep.subr.mxu0 0.0
    %2334 = vmatpush2.msra.mxu0 0.0
    %2335 = vmatprep.subr.mxu0 0.0
    %2336 = vmatpush2.msra.mxu0 0.0
    %2337 = vmatprep.subr.mxu0 0.0
    %2338 = vmatpush2.msra.mxu0 0.0
    %2339 = vmatprep.subr.mxu0 0.0
    %2340 = vmatpush2.msra.mxu0 0.0
    %2341 = vmatprep.subr.mxu0 0.0
    %2342 = vmatpush2.msra.mxu0 0.0
    %2343 = vmatprep.mubr.f32.mxu0 0.0
    %v2344 = vand.u32 %v2123, 4294901760
    %v2345 = vsub.f32 %v2123, %v2344
    %2346 = vmatmul.mubr.f32.gmra.mxu0 %v2345
    %v2347 = vpop.f32.mrf.mxu0
    %v2348 = vadd.f32 %v2274, %v2347
    %v2349 = vpop.f32.mrf.mxu0
    %2350 = vdwg.mxu0
    %2351 = vmatprep.subr.mxu0 0.0
    %2352 = vmatpush1.msra.mxu0 0.0
    %2353 = vmatprep.subr.mxu0 0.0
    %2354 = vmatpush1.msra.mxu0 0.0
    %2355 = vmatprep.subr.mxu0 0.0
    %2356 = vmatpush1.msra.mxu0 0.0
    %2357 = vmatprep.subr.mxu0 0.0
    %2358 = vmatpush1.msra.mxu0 0.0
    %2359 = vmatprep.subr.mxu0 0.0
    %2360 = vmatpush1.msra.mxu0 0.0
    %2361 = vmatprep.subr.mxu0 0.0
    %2362 = vmatpush1.msra.mxu0 0.0
    %2363 = vmatprep.subr.mxu0 0.0
    %2364 = vmatpush1.msra.mxu0 0.0
    %2365 = vmatprep.subr.mxu0 0.0
    %2366 = vmatpush1.msra.mxu0 0.0
    %2367 = vmatprep.subr.mxu0 0.0
    %2368 = vmatpush1.msra.mxu0 0.0
    %2369 = vmatprep.subr.mxu0 0.0
    %2370 = vmatpush1.msra.mxu0 0.0
    %2371 = vmatprep.subr.mxu0 0.0
    %2372 = vmatpush1.msra.mxu0 0.0
    %2373 = vmatprep.subr.mxu0 0.0
    %2374 = vmatpush1.msra.mxu0 0.0
    %2375 = vmatprep.subr.mxu0 0.0
    %2376 = vmatpush1.msra.mxu0 0.0
    %2377 = vmatprep.subr.mxu0 0.0
    %2378 = vmatpush1.msra.mxu0 0.0
    %2379 = vmatprep.subr.mxu0 0.0
    %2380 = vmatpush1.msra.mxu0 0.0
    %2381 = vmatprep.subr.mxu0 0.0
    %v2382 = vand.u32 %v1663, 4294901760
    %2383 = vmatpush1.msra.mxu0 %v2382
    %2384 = vmatprep.subr.mxu0 0.0
    %2385 = vmatpush2.msra.mxu0 0.0
    %2386 = vmatprep.subr.mxu0 0.0
    %2387 = vmatpush2.msra.mxu0 0.0
    %2388 = vmatprep.subr.mxu0 0.0
    %2389 = vmatpush2.msra.mxu0 0.0
    %2390 = vmatprep.subr.mxu0 0.0
    %2391 = vmatpush2.msra.mxu0 0.0
    %2392 = vmatprep.subr.mxu0 0.0
    %2393 = vmatpush2.msra.mxu0 0.0
    %2394 = vmatprep.subr.mxu0 0.0
    %2395 = vmatpush2.msra.mxu0 0.0
    %2396 = vmatprep.subr.mxu0 0.0
    %2397 = vmatpush2.msra.mxu0 0.0
    %2398 = vmatprep.subr.mxu0 0.0
    %2399 = vmatpush2.msra.mxu0 0.0
    %2400 = vmatprep.subr.mxu0 0.0
    %2401 = vmatpush2.msra.mxu0 0.0
    %2402 = vmatprep.subr.mxu0 0.0
    %2403 = vmatpush2.msra.mxu0 0.0
    %2404 = vmatprep.subr.mxu0 0.0
    %2405 = vmatpush2.msra.mxu0 0.0
    %2406 = vmatprep.subr.mxu0 0.0
    %2407 = vmatpush2.msra.mxu0 0.0
    %2408 = vmatprep.subr.mxu0 0.0
    %2409 = vmatpush2.msra.mxu0 0.0
    %2410 = vmatprep.subr.mxu0 0.0
    %2411 = vmatpush2.msra.mxu0 0.0
    %2412 = vmatprep.subr.mxu0 0.0
    %2413 = vmatpush2.msra.mxu0 0.0
    %2414 = vmatprep.subr.mxu0 0.0
    %2415 = vmatpush2.msra.mxu0 0.0
    %2416 = vmatprep.mubr.f32.mxu0 0.0
    %v2417 = vand.u32 %v2123, 4294901760
    %v2418 = vsub.f32 %v2123, %v2417
    %v2419 = vand.u32 %v2418, 4294901760
    %2420 = vmatmul.mubr.f32.gmra.mxu0 %v2419
    %v2421 = vpop.f32.mrf.mxu0
    %v2422 = vadd.f32 %v2348, %v2421
    %v2423 = vpop.f32.mrf.mxu0
    %2424 = vdwg.mxu0
    %2425 = vmatprep.subr.mxu0 0.0
    %2426 = vmatpush1.msra.mxu0 0.0
    %2427 = vmatprep.subr.mxu0 0.0
    %2428 = vmatpush1.msra.mxu0 0.0
    %2429 = vmatprep.subr.mxu0 0.0
    %2430 = vmatpush1.msra.mxu0 0.0
    %2431 = vmatprep.subr.mxu0 0.0
    %2432 = vmatpush1.msra.mxu0 0.0
    %2433 = vmatprep.subr.mxu0 0.0
    %2434 = vmatpush1.msra.mxu0 0.0
    %2435 = vmatprep.subr.mxu0 0.0
    %2436 = vmatpush1.msra.mxu0 0.0
    %2437 = vmatprep.subr.mxu0 0.0
    %2438 = vmatpush1.msra.mxu0 0.0
    %2439 = vmatprep.subr.mxu0 0.0
    %2440 = vmatpush1.msra.mxu0 0.0
    %2441 = vmatprep.subr.mxu0 0.0
    %2442 = vmatpush1.msra.mxu0 0.0
    %2443 = vmatprep.subr.mxu0 0.0
    %2444 = vmatpush1.msra.mxu0 0.0
    %2445 = vmatprep.subr.mxu0 0.0
    %2446 = vmatpush1.msra.mxu0 0.0
    %2447 = vmatprep.subr.mxu0 0.0
    %2448 = vmatpush1.msra.mxu0 0.0
    %2449 = vmatprep.subr.mxu0 0.0
    %2450 = vmatpush1.msra.mxu0 0.0
    %2451 = vmatprep.subr.mxu0 0.0
    %2452 = vmatpush1.msra.mxu0 0.0
    %2453 = vmatprep.subr.mxu0 0.0
    %2454 = vmatpush1.msra.mxu0 0.0
    %2455 = vmatprep.subr.mxu0 0.0
    %v2456 = vand.u32 %v1663, 4294901760
    %v2457 = vsub.f32 %v1663, %v2456
    %v2458 = vand.u32 %v2457, 4294901760
    %2459 = vmatpush1.msra.mxu0 %v2458
    %2460 = vmatprep.subr.mxu0 0.0
    %2461 = vmatpush2.msra.mxu0 0.0
    %2462 = vmatprep.subr.mxu0 0.0
    %2463 = vmatpush2.msra.mxu0 0.0
    %2464 = vmatprep.subr.mxu0 0.0
    %2465 = vmatpush2.msra.mxu0 0.0
    %2466 = vmatprep.subr.mxu0 0.0
    %2467 = vmatpush2.msra.mxu0 0.0
    %2468 = vmatprep.subr.mxu0 0.0
    %2469 = vmatpush2.msra.mxu0 0.0
    %2470 = vmatprep.subr.mxu0 0.0
    %2471 = vmatpush2.msra.mxu0 0.0
    %2472 = vmatprep.subr.mxu0 0.0
    %2473 = vmatpush2.msra.mxu0 0.0
    %2474 = vmatprep.subr.mxu0 0.0
    %2475 = vmatpush2.msra.mxu0 0.0
    %2476 = vmatprep.subr.mxu0 0.0
    %2477 = vmatpush2.msra.mxu0 0.0
    %2478 = vmatprep.subr.mxu0 0.0
    %2479 = vmatpush2.msra.mxu0 0.0
    %2480 = vmatprep.subr.mxu0 0.0
    %2481 = vmatpush2.msra.mxu0 0.0
    %2482 = vmatprep.subr.mxu0 0.0
    %2483 = vmatpush2.msra.mxu0 0.0
    %2484 = vmatprep.subr.mxu0 0.0
    %2485 = vmatpush2.msra.mxu0 0.0
    %2486 = vmatprep.subr.mxu0 0.0
    %2487 = vmatpush2.msra.mxu0 0.0
    %2488 = vmatprep.subr.mxu0 0.0
    %2489 = vmatpush2.msra.mxu0 0.0
    %2490 = vmatprep.subr.mxu0 0.0
    %2491 = vmatpush2.msra.mxu0 0.0
    %2492 = vmatprep.mubr.f32.mxu0 0.0
    %v2493 = vand.u32 %v2123, 4294901760
    %2494 = vmatmul.mubr.f32.gmra.mxu0 %v2493
    %v2495 = vpop.f32.mrf.mxu0
    %v2496 = vadd.f32 %v2422, %v2495
    %v2497 = vpop.f32.mrf.mxu0
    %2498 = vdwg.mxu0
    %2499 = vmatprep.subr.mxu0 0.0
    %2500 = vmatpush1.msra.mxu0 0.0
    %2501 = vmatprep.subr.mxu0 0.0
    %2502 = vmatpush1.msra.mxu0 0.0
    %2503 = vmatprep.subr.mxu0 0.0
    %2504 = vmatpush1.msra.mxu0 0.0
    %2505 = vmatprep.subr.mxu0 0.0
    %2506 = vmatpush1.msra.mxu0 0.0
    %2507 = vmatprep.subr.mxu0 0.0
    %2508 = vmatpush1.msra.mxu0 0.0
    %2509 = vmatprep.subr.mxu0 0.0
    %2510 = vmatpush1.msra.mxu0 0.0
    %2511 = vmatprep.subr.mxu0 0.0
    %2512 = vmatpush1.msra.mxu0 0.0
    %2513 = vmatprep.subr.mxu0 0.0
    %2514 = vmatpush1.msra.mxu0 0.0
    %2515 = vmatprep.subr.mxu0 0.0
    %2516 = vmatpush1.msra.mxu0 0.0
    %2517 = vmatprep.subr.mxu0 0.0
    %2518 = vmatpush1.msra.mxu0 0.0
    %2519 = vmatprep.subr.mxu0 0.0
    %2520 = vmatpush1.msra.mxu0 0.0
    %2521 = vmatprep.subr.mxu0 0.0
    %2522 = vmatpush1.msra.mxu0 0.0
    %2523 = vmatprep.subr.mxu0 0.0
    %2524 = vmatpush1.msra.mxu0 0.0
    %2525 = vmatprep.subr.mxu0 0.0
    %2526 = vmatpush1.msra.mxu0 0.0
    %2527 = vmatprep.subr.mxu0 0.0
    %2528 = vmatpush1.msra.mxu0 0.0
    %2529 = vmatprep.subr.mxu0 0.0
    %v2530 = vand.u32 %v1663, 4294901760
    %2531 = vmatpush1.msra.mxu0 %v2530
    %2532 = vmatprep.subr.mxu0 0.0
    %2533 = vmatpush2.msra.mxu0 0.0
    %2534 = vmatprep.subr.mxu0 0.0
    %2535 = vmatpush2.msra.mxu0 0.0
    %2536 = vmatprep.subr.mxu0 0.0
    %2537 = vmatpush2.msra.mxu0 0.0
    %2538 = vmatprep.subr.mxu0 0.0
    %2539 = vmatpush2.msra.mxu0 0.0
    %2540 = vmatprep.subr.mxu0 0.0
    %2541 = vmatpush2.msra.mxu0 0.0
    %2542 = vmatprep.subr.mxu0 0.0
    %2543 = vmatpush2.msra.mxu0 0.0
    %2544 = vmatprep.subr.mxu0 0.0
    %2545 = vmatpush2.msra.mxu0 0.0
    %2546 = vmatprep.subr.mxu0 0.0
    %2547 = vmatpush2.msra.mxu0 0.0
    %2548 = vmatprep.subr.mxu0 0.0
    %2549 = vmatpush2.msra.mxu0 0.0
    %2550 = vmatprep.subr.mxu0 0.0
    %2551 = vmatpush2.msra.mxu0 0.0
    %2552 = vmatprep.subr.mxu0 0.0
    %2553 = vmatpush2.msra.mxu0 0.0
    %2554 = vmatprep.subr.mxu0 0.0
    %2555 = vmatpush2.msra.mxu0 0.0
    %2556 = vmatprep.subr.mxu0 0.0
    %2557 = vmatpush2.msra.mxu0 0.0
    %2558 = vmatprep.subr.mxu0 0.0
    %2559 = vmatpush2.msra.mxu0 0.0
    %2560 = vmatprep.subr.mxu0 0.0
    %2561 = vmatpush2.msra.mxu0 0.0
    %2562 = vmatprep.subr.mxu0 0.0
    %2563 = vmatpush2.msra.mxu0 0.0
    %2564 = vmatprep.mubr.f32.mxu0 0.0
    %v2565 = vand.u32 %v2123, 4294901760
    %2566 = vmatmul.mubr.f32.gmra.mxu0 %v2565
    %v2567 = vpop.f32.mrf.mxu0
    %v2568 = vadd.f32 %v2496, %v2567
    %v2569 = vpop.f32.mrf.mxu0
    %2570 = vdwg.mxu0
    %v2571 = vadd.f32 %v2121, %v2568
    %v2573 = vsel %vm39, %v62, 0
    %2575 = vmatprep.subr.mxu0 0.0
    %2576 = vmatpush1.msra.mxu0 0.0
    %2577 = vmatprep.subr.mxu0 0.0
    %2578 = vmatpush1.msra.mxu0 0.0
    %2579 = vmatprep.subr.mxu0 0.0
    %2580 = vmatpush1.msra.mxu0 0.0
    %2581 = vmatprep.subr.mxu0 0.0
    %2582 = vmatpush1.msra.mxu0 0.0
    %2583 = vmatprep.subr.mxu0 0.0
    %2584 = vmatpush1.msra.mxu0 0.0
    %2585 = vmatprep.subr.mxu0 0.0
    %2586 = vmatpush1.msra.mxu0 0.0
    %2587 = vmatprep.subr.mxu0 0.0
    %2588 = vmatpush1.msra.mxu0 0.0
    %2589 = vmatprep.subr.mxu0 0.0
    %2590 = vmatpush1.msra.mxu0 0.0
    %2591 = vmatprep.subr.mxu0 0.0
    %2592 = vmatpush1.msra.mxu0 0.0
    %2593 = vmatprep.subr.mxu0 0.0
    %2594 = vmatpush1.msra.mxu0 0.0
    %2595 = vmatprep.subr.mxu0 0.0
    %2596 = vmatpush1.msra.mxu0 0.0
    %2597 = vmatprep.subr.mxu0 0.0
    %2598 = vmatpush1.msra.mxu0 0.0
    %2599 = vmatprep.subr.mxu0 0.0
    %2600 = vmatpush1.msra.mxu0 0.0
    %2601 = vmatprep.subr.mxu0 0.0
    %2602 = vmatpush1.msra.mxu0 0.0
    %2603 = vmatprep.subr.mxu0 0.0
    %2604 = vmatpush1.msra.mxu0 0.0
    %2605 = vmatprep.subr.mxu0 0.0
    %v2606 = vand.u32 %v1137, 4294901760
    %2607 = vmatpush1.msra.mxu0 %v2606
    %2608 = vmatprep.subr.mxu0 0.0
    %2609 = vmatpush2.msra.mxu0 0.0
    %2610 = vmatprep.subr.mxu0 0.0
    %2611 = vmatpush2.msra.mxu0 0.0
    %2612 = vmatprep.subr.mxu0 0.0
    %2613 = vmatpush2.msra.mxu0 0.0
    %2614 = vmatprep.subr.mxu0 0.0
    %2615 = vmatpush2.msra.mxu0 0.0
    %2616 = vmatprep.subr.mxu0 0.0
    %2617 = vmatpush2.msra.mxu0 0.0
    %2618 = vmatprep.subr.mxu0 0.0
    %2619 = vmatpush2.msra.mxu0 0.0
    %2620 = vmatprep.subr.mxu0 0.0
    %2621 = vmatpush2.msra.mxu0 0.0
    %2622 = vmatprep.subr.mxu0 0.0
    %2623 = vmatpush2.msra.mxu0 0.0
    %2624 = vmatprep.subr.mxu0 0.0
    %2625 = vmatpush2.msra.mxu0 0.0
    %2626 = vmatprep.subr.mxu0 0.0
    %2627 = vmatpush2.msra.mxu0 0.0
    %2628 = vmatprep.subr.mxu0 0.0
    %2629 = vmatpush2.msra.mxu0 0.0
    %2630 = vmatprep.subr.mxu0 0.0
    %2631 = vmatpush2.msra.mxu0 0.0
    %2632 = vmatprep.subr.mxu0 0.0
    %2633 = vmatpush2.msra.mxu0 0.0
    %2634 = vmatprep.subr.mxu0 0.0
    %2635 = vmatpush2.msra.mxu0 0.0
    %2636 = vmatprep.subr.mxu0 0.0
    %2637 = vmatpush2.msra.mxu0 0.0
    %2638 = vmatprep.subr.mxu0 0.0
    %2639 = vmatpush2.msra.mxu0 0.0
    %2640 = vmatprep.mubr.f32.mxu0 0.0
    %v2641 = vand.u32 %v2573, 4294901760
    %v2642 = vsub.f32 %v2573, %v2641
    %v2643 = vand.u32 %v2642, 4294901760
    %v2644 = vsub.f32 %v2642, %v2643
    %v2645 = vand.u32 %v2644, 4294901760
    %2646 = vmatmul.mubr.f32.gmra.mxu0 %v2645
    %v2647 = vpop.f32.mrf.mxu0
    %v2648 = vadd.f32 0.0, %v2647
    %v2649 = vpop.f32.mrf.mxu0
    %2650 = vdwg.mxu0
    %2651 = vmatprep.subr.mxu0 0.0
    %2652 = vmatpush1.msra.mxu0 0.0
    %2653 = vmatprep.subr.mxu0 0.0
    %2654 = vmatpush1.msra.mxu0 0.0
    %2655 = vmatprep.subr.mxu0 0.0
    %2656 = vmatpush1.msra.mxu0 0.0
    %2657 = vmatprep.subr.mxu0 0.0
    %2658 = vmatpush1.msra.mxu0 0.0
    %2659 = vmatprep.subr.mxu0 0.0
    %2660 = vmatpush1.msra.mxu0 0.0
    %2661 = vmatprep.subr.mxu0 0.0
    %2662 = vmatpush1.msra.mxu0 0.0
    %2663 = vmatprep.subr.mxu0 0.0
    %2664 = vmatpush1.msra.mxu0 0.0
    %2665 = vmatprep.subr.mxu0 0.0
    %2666 = vmatpush1.msra.mxu0 0.0
    %2667 = vmatprep.subr.mxu0 0.0
    %2668 = vmatpush1.msra.mxu0 0.0
    %2669 = vmatprep.subr.mxu0 0.0
    %2670 = vmatpush1.msra.mxu0 0.0
    %2671 = vmatprep.subr.mxu0 0.0
    %2672 = vmatpush1.msra.mxu0 0.0
    %2673 = vmatprep.subr.mxu0 0.0
    %2674 = vmatpush1.msra.mxu0 0.0
    %2675 = vmatprep.subr.mxu0 0.0
    %2676 = vmatpush1.msra.mxu0 0.0
    %2677 = vmatprep.subr.mxu0 0.0
    %2678 = vmatpush1.msra.mxu0 0.0
    %2679 = vmatprep.subr.mxu0 0.0
    %2680 = vmatpush1.msra.mxu0 0.0
    %2681 = vmatprep.subr.mxu0 0.0
    %v2682 = vand.u32 %v1137, 4294901760
    %v2683 = vsub.f32 %v1137, %v2682
    %v2684 = vand.u32 %v2683, 4294901760
    %v2685 = vsub.f32 %v2683, %v2684
    %v2686 = vand.u32 %v2685, 4294901760
    %2687 = vmatpush1.msra.mxu0 %v2686
    %2688 = vmatprep.subr.mxu0 0.0
    %2689 = vmatpush2.msra.mxu0 0.0
    %2690 = vmatprep.subr.mxu0 0.0
    %2691 = vmatpush2.msra.mxu0 0.0
    %2692 = vmatprep.subr.mxu0 0.0
    %2693 = vmatpush2.msra.mxu0 0.0
    %2694 = vmatprep.subr.mxu0 0.0
    %2695 = vmatpush2.msra.mxu0 0.0
    %2696 = vmatprep.subr.mxu0 0.0
    %2697 = vmatpush2.msra.mxu0 0.0
    %2698 = vmatprep.subr.mxu0 0.0
    %2699 = vmatpush2.msra.mxu0 0.0
    %2700 = vmatprep.subr.mxu0 0.0
    %2701 = vmatpush2.msra.mxu0 0.0
    %2702 = vmatprep.subr.mxu0 0.0
    %2703 = vmatpush2.msra.mxu0 0.0
    %2704 = vmatprep.subr.mxu0 0.0
    %2705 = vmatpush2.msra.mxu0 0.0
    %2706 = vmatprep.subr.mxu0 0.0
    %2707 = vmatpush2.msra.mxu0 0.0
    %2708 = vmatprep.subr.mxu0 0.0
    %2709 = vmatpush2.msra.mxu0 0.0
    %2710 = vmatprep.subr.mxu0 0.0
    %2711 = vmatpush2.msra.mxu0 0.0
    %2712 = vmatprep.subr.mxu0 0.0
    %2713 = vmatpush2.msra.mxu0 0.0
    %2714 = vmatprep.subr.mxu0 0.0
    %2715 = vmatpush2.msra.mxu0 0.0
    %2716 = vmatprep.subr.mxu0 0.0
    %2717 = vmatpush2.msra.mxu0 0.0
    %2718 = vmatprep.subr.mxu0 0.0
    %2719 = vmatpush2.msra.mxu0 0.0
    %2720 = vmatprep.mubr.f32.mxu0 0.0
    %v2721 = vand.u32 %v2573, 4294901760
    %2722 = vmatmul.mubr.f32.gmra.mxu0 %v2721
    %v2723 = vpop.f32.mrf.mxu0
    %v2724 = vadd.f32 %v2648, %v2723
    %v2725 = vpop.f32.mrf.mxu0
    %2726 = vdwg.mxu0
    %2727 = vmatprep.subr.mxu0 0.0
    %2728 = vmatpush1.msra.mxu0 0.0
    %2729 = vmatprep.subr.mxu0 0.0
    %2730 = vmatpush1.msra.mxu0 0.0
    %2731 = vmatprep.subr.mxu0 0.0
    %2732 = vmatpush1.msra.mxu0 0.0
    %2733 = vmatprep.subr.mxu0 0.0
    %2734 = vmatpush1.msra.mxu0 0.0
    %2735 = vmatprep.subr.mxu0 0.0
    %2736 = vmatpush1.msra.mxu0 0.0
    %2737 = vmatprep.subr.mxu0 0.0
    %2738 = vmatpush1.msra.mxu0 0.0
    %2739 = vmatprep.subr.mxu0 0.0
    %2740 = vmatpush1.msra.mxu0 0.0
    %2741 = vmatprep.subr.mxu0 0.0
    %2742 = vmatpush1.msra.mxu0 0.0
    %2743 = vmatprep.subr.mxu0 0.0
    %2744 = vmatpush1.msra.mxu0 0.0
    %2745 = vmatprep.subr.mxu0 0.0
    %2746 = vmatpush1.msra.mxu0 0.0
    %2747 = vmatprep.subr.mxu0 0.0
    %2748 = vmatpush1.msra.mxu0 0.0
    %2749 = vmatprep.subr.mxu0 0.0
    %2750 = vmatpush1.msra.mxu0 0.0
    %2751 = vmatprep.subr.mxu0 0.0
    %2752 = vmatpush1.msra.mxu0 0.0
    %2753 = vmatprep.subr.mxu0 0.0
    %2754 = vmatpush1.msra.mxu0 0.0
    %2755 = vmatprep.subr.mxu0 0.0
    %2756 = vmatpush1.msra.mxu0 0.0
    %2757 = vmatprep.subr.mxu0 0.0
    %v2758 = vand.u32 %v1137, 4294901760
    %v2759 = vsub.f32 %v1137, %v2758
    %2760 = vmatpush1.msra.mxu0 %v2759
    %2761 = vmatprep.subr.mxu0 0.0
    %2762 = vmatpush2.msra.mxu0 0.0
    %2763 = vmatprep.subr.mxu0 0.0
    %2764 = vmatpush2.msra.mxu0 0.0
    %2765 = vmatprep.subr.mxu0 0.0
    %2766 = vmatpush2.msra.mxu0 0.0
    %2767 = vmatprep.subr.mxu0 0.0
    %2768 = vmatpush2.msra.mxu0 0.0
    %2769 = vmatprep.subr.mxu0 0.0
    %2770 = vmatpush2.msra.mxu0 0.0
    %2771 = vmatprep.subr.mxu0 0.0
    %2772 = vmatpush2.msra.mxu0 0.0
    %2773 = vmatprep.subr.mxu0 0.0
    %2774 = vmatpush2.msra.mxu0 0.0
    %2775 = vmatprep.subr.mxu0 0.0
    %2776 = vmatpush2.msra.mxu0 0.0
    %2777 = vmatprep.subr.mxu0 0.0
    %2778 = vmatpush2.msra.mxu0 0.0
    %2779 = vmatprep.subr.mxu0 0.0
    %2780 = vmatpush2.msra.mxu0 0.0
    %2781 = vmatprep.subr.mxu0 0.0
    %2782 = vmatpush2.msra.mxu0 0.0
    %2783 = vmatprep.subr.mxu0 0.0
    %2784 = vmatpush2.msra.mxu0 0.0
    %2785 = vmatprep.subr.mxu0 0.0
    %2786 = vmatpush2.msra.mxu0 0.0
    %2787 = vmatprep.subr.mxu0 0.0
    %2788 = vmatpush2.msra.mxu0 0.0
    %2789 = vmatprep.subr.mxu0 0.0
    %2790 = vmatpush2.msra.mxu0 0.0
    %2791 = vmatprep.subr.mxu0 0.0
    %2792 = vmatpush2.msra.mxu0 0.0
    %2793 = vmatprep.mubr.f32.mxu0 0.0
    %v2794 = vand.u32 %v2573, 4294901760
    %v2795 = vsub.f32 %v2573, %v2794
    %2796 = vmatmul.mubr.f32.gmra.mxu0 %v2795
    %v2797 = vpop.f32.mrf.mxu0
    %v2798 = vadd.f32 %v2724, %v2797
    %v2799 = vpop.f32.mrf.mxu0
    %2800 = vdwg.mxu0
    %2801 = vmatprep.subr.mxu0 0.0
    %2802 = vmatpush1.msra.mxu0 0.0
    %2803 = vmatprep.subr.mxu0 0.0
    %2804 = vmatpush1.msra.mxu0 0.0
    %2805 = vmatprep.subr.mxu0 0.0
    %2806 = vmatpush1.msra.mxu0 0.0
    %2807 = vmatprep.subr.mxu0 0.0
    %2808 = vmatpush1.msra.mxu0 0.0
    %2809 = vmatprep.subr.mxu0 0.0
    %2810 = vmatpush1.msra.mxu0 0.0
    %2811 = vmatprep.subr.mxu0 0.0
    %2812 = vmatpush1.msra.mxu0 0.0
    %2813 = vmatprep.subr.mxu0 0.0
    %2814 = vmatpush1.msra.mxu0 0.0
    %2815 = vmatprep.subr.mxu0 0.0
    %2816 = vmatpush1.msra.mxu0 0.0
    %2817 = vmatprep.subr.mxu0 0.0
    %2818 = vmatpush1.msra.mxu0 0.0
    %2819 = vmatprep.subr.mxu0 0.0
    %2820 = vmatpush1.msra.mxu0 0.0
    %2821 = vmatprep.subr.mxu0 0.0
    %2822 = vmatpush1.msra.mxu0 0.0
    %2823 = vmatprep.subr.mxu0 0.0
    %2824 = vmatpush1.msra.mxu0 0.0
    %2825 = vmatprep.subr.mxu0 0.0
    %2826 = vmatpush1.msra.mxu0 0.0
    %2827 = vmatprep.subr.mxu0 0.0
    %2828 = vmatpush1.msra.mxu0 0.0
    %2829 = vmatprep.subr.mxu0 0.0
    %2830 = vmatpush1.msra.mxu0 0.0
    %2831 = vmatprep.subr.mxu0 0.0
    %v2832 = vand.u32 %v1137, 4294901760
    %2833 = vmatpush1.msra.mxu0 %v2832
    %2834 = vmatprep.subr.mxu0 0.0
    %2835 = vmatpush2.msra.mxu0 0.0
    %2836 = vmatprep.subr.mxu0 0.0
    %2837 = vmatpush2.msra.mxu0 0.0
    %2838 = vmatprep.subr.mxu0 0.0
    %2839 = vmatpush2.msra.mxu0 0.0
    %2840 = vmatprep.subr.mxu0 0.0
    %2841 = vmatpush2.msra.mxu0 0.0
    %2842 = vmatprep.subr.mxu0 0.0
    %2843 = vmatpush2.msra.mxu0 0.0
    %2844 = vmatprep.subr.mxu0 0.0
    %2845 = vmatpush2.msra.mxu0 0.0
    %2846 = vmatprep.subr.mxu0 0.0
    %2847 = vmatpush2.msra.mxu0 0.0
    %2848 = vmatprep.subr.mxu0 0.0
    %2849 = vmatpush2.msra.mxu0 0.0
    %2850 = vmatprep.subr.mxu0 0.0
    %2851 = vmatpush2.msra.mxu0 0.0
    %2852 = vmatprep.subr.mxu0 0.0
    %2853 = vmatpush2.msra.mxu0 0.0
    %2854 = vmatprep.subr.mxu0 0.0
    %2855 = vmatpush2.msra.mxu0 0.0
    %2856 = vmatprep.subr.mxu0 0.0
    %2857 = vmatpush2.msra.mxu0 0.0
    %2858 = vmatprep.subr.mxu0 0.0
    %2859 = vmatpush2.msra.mxu0 0.0
    %2860 = vmatprep.subr.mxu0 0.0
    %2861 = vmatpush2.msra.mxu0 0.0
    %2862 = vmatprep.subr.mxu0 0.0
    %2863 = vmatpush2.msra.mxu0 0.0
    %2864 = vmatprep.subr.mxu0 0.0
    %2865 = vmatpush2.msra.mxu0 0.0
    %2866 = vmatprep.mubr.f32.mxu0 0.0
    %v2867 = vand.u32 %v2573, 4294901760
    %v2868 = vsub.f32 %v2573, %v2867
    %v2869 = vand.u32 %v2868, 4294901760
    %2870 = vmatmul.mubr.f32.gmra.mxu0 %v2869
    %v2871 = vpop.f32.mrf.mxu0
    %v2872 = vadd.f32 %v2798, %v2871
    %v2873 = vpop.f32.mrf.mxu0
    %2874 = vdwg.mxu0
    %2875 = vmatprep.subr.mxu0 0.0
    %2876 = vmatpush1.msra.mxu0 0.0
    %2877 = vmatprep.subr.mxu0 0.0
    %2878 = vmatpush1.msra.mxu0 0.0
    %2879 = vmatprep.subr.mxu0 0.0
    %2880 = vmatpush1.msra.mxu0 0.0
    %2881 = vmatprep.subr.mxu0 0.0
    %2882 = vmatpush1.msra.mxu0 0.0
    %2883 = vmatprep.subr.mxu0 0.0
    %2884 = vmatpush1.msra.mxu0 0.0
    %2885 = vmatprep.subr.mxu0 0.0
    %2886 = vmatpush1.msra.mxu0 0.0
    %2887 = vmatprep.subr.mxu0 0.0
    %2888 = vmatpush1.msra.mxu0 0.0
    %2889 = vmatprep.subr.mxu0 0.0
    %2890 = vmatpush1.msra.mxu0 0.0
    %2891 = vmatprep.subr.mxu0 0.0
    %2892 = vmatpush1.msra.mxu0 0.0
    %2893 = vmatprep.subr.mxu0 0.0
    %2894 = vmatpush1.msra.mxu0 0.0
    %2895 = vmatprep.subr.mxu0 0.0
    %2896 = vmatpush1.msra.mxu0 0.0
    %2897 = vmatprep.subr.mxu0 0.0
    %2898 = vmatpush1.msra.mxu0 0.0
    %2899 = vmatprep.subr.mxu0 0.0
    %2900 = vmatpush1.msra.mxu0 0.0
    %2901 = vmatprep.subr.mxu0 0.0
    %2902 = vmatpush1.msra.mxu0 0.0
    %2903 = vmatprep.subr.mxu0 0.0
    %2904 = vmatpush1.msra.mxu0 0.0
    %2905 = vmatprep.subr.mxu0 0.0
    %v2906 = vand.u32 %v1137, 4294901760
    %v2907 = vsub.f32 %v1137, %v2906
    %v2908 = vand.u32 %v2907, 4294901760
    %2909 = vmatpush1.msra.mxu0 %v2908
    %2910 = vmatprep.subr.mxu0 0.0
    %2911 = vmatpush2.msra.mxu0 0.0
    %2912 = vmatprep.subr.mxu0 0.0
    %2913 = vmatpush2.msra.mxu0 0.0
    %2914 = vmatprep.subr.mxu0 0.0
    %2915 = vmatpush2.msra.mxu0 0.0
    %2916 = vmatprep.subr.mxu0 0.0
    %2917 = vmatpush2.msra.mxu0 0.0
    %2918 = vmatprep.subr.mxu0 0.0
    %2919 = vmatpush2.msra.mxu0 0.0
    %2920 = vmatprep.subr.mxu0 0.0
    %2921 = vmatpush2.msra.mxu0 0.0
    %2922 = vmatprep.subr.mxu0 0.0
    %2923 = vmatpush2.msra.mxu0 0.0
    %2924 = vmatprep.subr.mxu0 0.0
    %2925 = vmatpush2.msra.mxu0 0.0
    %2926 = vmatprep.subr.mxu0 0.0
    %2927 = vmatpush2.msra.mxu0 0.0
    %2928 = vmatprep.subr.mxu0 0.0
    %2929 = vmatpush2.msra.mxu0 0.0
    %2930 = vmatprep.subr.mxu0 0.0
    %2931 = vmatpush2.msra.mxu0 0.0
    %2932 = vmatprep.subr.mxu0 0.0
    %2933 = vmatpush2.msra.mxu0 0.0
    %2934 = vmatprep.subr.mxu0 0.0
    %2935 = vmatpush2.msra.mxu0 0.0
    %2936 = vmatprep.subr.mxu0 0.0
    %2937 = vmatpush2.msra.mxu0 0.0
    %2938 = vmatprep.subr.mxu0 0.0
    %2939 = vmatpush2.msra.mxu0 0.0
    %2940 = vmatprep.subr.mxu0 0.0
    %2941 = vmatpush2.msra.mxu0 0.0
    %2942 = vmatprep.mubr.f32.mxu0 0.0
    %v2943 = vand.u32 %v2573, 4294901760
    %2944 = vmatmul.mubr.f32.gmra.mxu0 %v2943
    %v2945 = vpop.f32.mrf.mxu0
    %v2946 = vadd.f32 %v2872, %v2945
    %v2947 = vpop.f32.mrf.mxu0
    %2948 = vdwg.mxu0
    %2949 = vmatprep.subr.mxu0 0.0
    %2950 = vmatpush1.msra.mxu0 0.0
    %2951 = vmatprep.subr.mxu0 0.0
    %2952 = vmatpush1.msra.mxu0 0.0
    %2953 = vmatprep.subr.mxu0 0.0
    %2954 = vmatpush1.msra.mxu0 0.0
    %2955 = vmatprep.subr.mxu0 0.0
    %2956 = vmatpush1.msra.mxu0 0.0
    %2957 = vmatprep.subr.mxu0 0.0
    %2958 = vmatpush1.msra.mxu0 0.0
    %2959 = vmatprep.subr.mxu0 0.0
    %2960 = vmatpush1.msra.mxu0 0.0
    %2961 = vmatprep.subr.mxu0 0.0
    %2962 = vmatpush1.msra.mxu0 0.0
    %2963 = vmatprep.subr.mxu0 0.0
    %2964 = vmatpush1.msra.mxu0 0.0
    %2965 = vmatprep.subr.mxu0 0.0
    %2966 = vmatpush1.msra.mxu0 0.0
    %2967 = vmatprep.subr.mxu0 0.0
    %2968 = vmatpush1.msra.mxu0 0.0
    %2969 = vmatprep.subr.mxu0 0.0
    %2970 = vmatpush1.msra.mxu0 0.0
    %2971 = vmatprep.subr.mxu0 0.0
    %2972 = vmatpush1.msra.mxu0 0.0
    %2973 = vmatprep.subr.mxu0 0.0
    %2974 = vmatpush1.msra.mxu0 0.0
    %2975 = vmatprep.subr.mxu0 0.0
    %2976 = vmatpush1.msra.mxu0 0.0
    %2977 = vmatprep.subr.mxu0 0.0
    %2978 = vmatpush1.msra.mxu0 0.0
    %2979 = vmatprep.subr.mxu0 0.0
    %v2980 = vand.u32 %v1137, 4294901760
    %2981 = vmatpush1.msra.mxu0 %v2980
    %2982 = vmatprep.subr.mxu0 0.0
    %2983 = vmatpush2.msra.mxu0 0.0
    %2984 = vmatprep.subr.mxu0 0.0
    %2985 = vmatpush2.msra.mxu0 0.0
    %2986 = vmatprep.subr.mxu0 0.0
    %2987 = vmatpush2.msra.mxu0 0.0
    %2988 = vmatprep.subr.mxu0 0.0
    %2989 = vmatpush2.msra.mxu0 0.0
    %2990 = vmatprep.subr.mxu0 0.0
    %2991 = vmatpush2.msra.mxu0 0.0
    %2992 = vmatprep.subr.mxu0 0.0
    %2993 = vmatpush2.msra.mxu0 0.0
    %2994 = vmatprep.subr.mxu0 0.0
    %2995 = vmatpush2.msra.mxu0 0.0
    %2996 = vmatprep.subr.mxu0 0.0
    %2997 = vmatpush2.msra.mxu0 0.0
    %2998 = vmatprep.subr.mxu0 0.0
    %2999 = vmatpush2.msra.mxu0 0.0
    %3000 = vmatprep.subr.mxu0 0.0
    %3001 = vmatpush2.msra.mxu0 0.0
    %3002 = vmatprep.subr.mxu0 0.0
    %3003 = vmatpush2.msra.mxu0 0.0
    %3004 = vmatprep.subr.mxu0 0.0
    %3005 = vmatpush2.msra.mxu0 0.0
    %3006 = vmatprep.subr.mxu0 0.0
    %3007 = vmatpush2.msra.mxu0 0.0
    %3008 = vmatprep.subr.mxu0 0.0
    %3009 = vmatpush2.msra.mxu0 0.0
    %3010 = vmatprep.subr.mxu0 0.0
    %3011 = vmatpush2.msra.mxu0 0.0
    %3012 = vmatprep.subr.mxu0 0.0
    %3013 = vmatpush2.msra.mxu0 0.0
    %3014 = vmatprep.mubr.f32.mxu0 0.0
    %v3015 = vand.u32 %v2573, 4294901760
    %3016 = vmatmul.mubr.f32.gmra.mxu0 %v3015
    %v3017 = vpop.f32.mrf.mxu0
    %v3018 = vadd.f32 %v2946, %v3017
    %v3019 = vpop.f32.mrf.mxu0
    %3020 = vdwg.mxu0
    %v3021 = vadd.f32 %v605, %v3018
    %v3023 = vsel %vm39, %v63, 0
    %3025 = vmatprep.subr.mxu0 0.0
    %3026 = vmatpush1.msra.mxu0 0.0
    %3027 = vmatprep.subr.mxu0 0.0
    %3028 = vmatpush1.msra.mxu0 0.0
    %3029 = vmatprep.subr.mxu0 0.0
    %3030 = vmatpush1.msra.mxu0 0.0
    %3031 = vmatprep.subr.mxu0 0.0
    %3032 = vmatpush1.msra.mxu0 0.0
    %3033 = vmatprep.subr.mxu0 0.0
    %3034 = vmatpush1.msra.mxu0 0.0
    %3035 = vmatprep.subr.mxu0 0.0
    %3036 = vmatpush1.msra.mxu0 0.0
    %3037 = vmatprep.subr.mxu0 0.0
    %3038 = vmatpush1.msra.mxu0 0.0
    %3039 = vmatprep.subr.mxu0 0.0
    %3040 = vmatpush1.msra.mxu0 0.0
    %3041 = vmatprep.subr.mxu0 0.0
    %3042 = vmatpush1.msra.mxu0 0.0
    %3043 = vmatprep.subr.mxu0 0.0
    %3044 = vmatpush1.msra.mxu0 0.0
    %3045 = vmatprep.subr.mxu0 0.0
    %3046 = vmatpush1.msra.mxu0 0.0
    %3047 = vmatprep.subr.mxu0 0.0
    %3048 = vmatpush1.msra.mxu0 0.0
    %3049 = vmatprep.subr.mxu0 0.0
    %3050 = vmatpush1.msra.mxu0 0.0
    %3051 = vmatprep.subr.mxu0 0.0
    %3052 = vmatpush1.msra.mxu0 0.0
    %3053 = vmatprep.subr.mxu0 0.0
    %3054 = vmatpush1.msra.mxu0 0.0
    %3055 = vmatprep.subr.mxu0 0.0
    %v3056 = vand.u32 %v1669, 4294901760
    %3057 = vmatpush1.msra.mxu0 %v3056
    %3058 = vmatprep.subr.mxu0 0.0
    %3059 = vmatpush2.msra.mxu0 0.0
    %3060 = vmatprep.subr.mxu0 0.0
    %3061 = vmatpush2.msra.mxu0 0.0
    %3062 = vmatprep.subr.mxu0 0.0
    %3063 = vmatpush2.msra.mxu0 0.0
    %3064 = vmatprep.subr.mxu0 0.0
    %3065 = vmatpush2.msra.mxu0 0.0
    %3066 = vmatprep.subr.mxu0 0.0
    %3067 = vmatpush2.msra.mxu0 0.0
    %3068 = vmatprep.subr.mxu0 0.0
    %3069 = vmatpush2.msra.mxu0 0.0
    %3070 = vmatprep.subr.mxu0 0.0
    %3071 = vmatpush2.msra.mxu0 0.0
    %3072 = vmatprep.subr.mxu0 0.0
    %3073 = vmatpush2.msra.mxu0 0.0
    %3074 = vmatprep.subr.mxu0 0.0
    %3075 = vmatpush2.msra.mxu0 0.0
    %3076 = vmatprep.subr.mxu0 0.0
    %3077 = vmatpush2.msra.mxu0 0.0
    %3078 = vmatprep.subr.mxu0 0.0
    %3079 = vmatpush2.msra.mxu0 0.0
    %3080 = vmatprep.subr.mxu0 0.0
    %3081 = vmatpush2.msra.mxu0 0.0
    %3082 = vmatprep.subr.mxu0 0.0
    %3083 = vmatpush2.msra.mxu0 0.0
    %3084 = vmatprep.subr.mxu0 0.0
    %3085 = vmatpush2.msra.mxu0 0.0
    %3086 = vmatprep.subr.mxu0 0.0
    %3087 = vmatpush2.msra.mxu0 0.0
    %3088 = vmatprep.subr.mxu0 0.0
    %3089 = vmatpush2.msra.mxu0 0.0
    %3090 = vmatprep.mubr.f32.mxu0 0.0
    %v3091 = vand.u32 %v3023, 4294901760
    %v3092 = vsub.f32 %v3023, %v3091
    %v3093 = vand.u32 %v3092, 4294901760
    %v3094 = vsub.f32 %v3092, %v3093
    %v3095 = vand.u32 %v3094, 4294901760
    %3096 = vmatmul.mubr.f32.gmra.mxu0 %v3095
    %v3097 = vpop.f32.mrf.mxu0
    %v3098 = vadd.f32 0.0, %v3097
    %v3099 = vpop.f32.mrf.mxu0
    %3100 = vdwg.mxu0
    %3101 = vmatprep.subr.mxu0 0.0
    %3102 = vmatpush1.msra.mxu0 0.0
    %3103 = vmatprep.subr.mxu0 0.0
    %3104 = vmatpush1.msra.mxu0 0.0
    %3105 = vmatprep.subr.mxu0 0.0
    %3106 = vmatpush1.msra.mxu0 0.0
    %3107 = vmatprep.subr.mxu0 0.0
    %3108 = vmatpush1.msra.mxu0 0.0
    %3109 = vmatprep.subr.mxu0 0.0
    %3110 = vmatpush1.msra.mxu0 0.0
    %3111 = vmatprep.subr.mxu0 0.0
    %3112 = vmatpush1.msra.mxu0 0.0
    %3113 = vmatprep.subr.mxu0 0.0
    %3114 = vmatpush1.msra.mxu0 0.0
    %3115 = vmatprep.subr.mxu0 0.0
    %3116 = vmatpush1.msra.mxu0 0.0
    %3117 = vmatprep.subr.mxu0 0.0
    %3118 = vmatpush1.msra.mxu0 0.0
    %3119 = vmatprep.subr.mxu0 0.0
    %3120 = vmatpush1.msra.mxu0 0.0
    %3121 = vmatprep.subr.mxu0 0.0
    %3122 = vmatpush1.msra.mxu0 0.0
    %3123 = vmatprep.subr.mxu0 0.0
    %3124 = vmatpush1.msra.mxu0 0.0
    %3125 = vmatprep.subr.mxu0 0.0
    %3126 = vmatpush1.msra.mxu0 0.0
    %3127 = vmatprep.subr.mxu0 0.0
    %3128 = vmatpush1.msra.mxu0 0.0
    %3129 = vmatprep.subr.mxu0 0.0
    %3130 = vmatpush1.msra.mxu0 0.0
    %3131 = vmatprep.subr.mxu0 0.0
    %v3132 = vand.u32 %v1669, 4294901760
    %v3133 = vsub.f32 %v1669, %v3132
    %v3134 = vand.u32 %v3133, 4294901760
    %v3135 = vsub.f32 %v3133, %v3134
    %v3136 = vand.u32 %v3135, 4294901760
    %3137 = vmatpush1.msra.mxu0 %v3136
    %3138 = vmatprep.subr.mxu0 0.0
    %3139 = vmatpush2.msra.mxu0 0.0
    %3140 = vmatprep.subr.mxu0 0.0
    %3141 = vmatpush2.msra.mxu0 0.0
    %3142 = vmatprep.subr.mxu0 0.0
    %3143 = vmatpush2.msra.mxu0 0.0
    %3144 = vmatprep.subr.mxu0 0.0
    %3145 = vmatpush2.msra.mxu0 0.0
    %3146 = vmatprep.subr.mxu0 0.0
    %3147 = vmatpush2.msra.mxu0 0.0
    %3148 = vmatprep.subr.mxu0 0.0
    %3149 = vmatpush2.msra.mxu0 0.0
    %3150 = vmatprep.subr.mxu0 0.0
    %3151 = vmatpush2.msra.mxu0 0.0
    %3152 = vmatprep.subr.mxu0 0.0
    %3153 = vmatpush2.msra.mxu0 0.0
    %3154 = vmatprep.subr.mxu0 0.0
    %3155 = vmatpush2.msra.mxu0 0.0
    %3156 = vmatprep.subr.mxu0 0.0
    %3157 = vmatpush2.msra.mxu0 0.0
    %3158 = vmatprep.subr.mxu0 0.0
    %3159 = vmatpush2.msra.mxu0 0.0
    %3160 = vmatprep.subr.mxu0 0.0
    %3161 = vmatpush2.msra.mxu0 0.0
    %3162 = vmatprep.subr.mxu0 0.0
    %3163 = vmatpush2.msra.mxu0 0.0
    %3164 = vmatprep.subr.mxu0 0.0
    %3165 = vmatpush2.msra.mxu0 0.0
    %3166 = vmatprep.subr.mxu0 0.0
    %3167 = vmatpush2.msra.mxu0 0.0
    %3168 = vmatprep.subr.mxu0 0.0
    %3169 = vmatpush2.msra.mxu0 0.0
    %3170 = vmatprep.mubr.f32.mxu0 0.0
    %v3171 = vand.u32 %v3023, 4294901760
    %3172 = vmatmul.mubr.f32.gmra.mxu0 %v3171
    %v3173 = vpop.f32.mrf.mxu0
    %v3174 = vadd.f32 %v3098, %v3173
    %v3175 = vpop.f32.mrf.mxu0
    %3176 = vdwg.mxu0
    %3177 = vmatprep.subr.mxu0 0.0
    %3178 = vmatpush1.msra.mxu0 0.0
    %3179 = vmatprep.subr.mxu0 0.0
    %3180 = vmatpush1.msra.mxu0 0.0
    %3181 = vmatprep.subr.mxu0 0.0
    %3182 = vmatpush1.msra.mxu0 0.0
    %3183 = vmatprep.subr.mxu0 0.0
    %3184 = vmatpush1.msra.mxu0 0.0
    %3185 = vmatprep.subr.mxu0 0.0
    %3186 = vmatpush1.msra.mxu0 0.0
    %3187 = vmatprep.subr.mxu0 0.0
    %3188 = vmatpush1.msra.mxu0 0.0
    %3189 = vmatprep.subr.mxu0 0.0
    %3190 = vmatpush1.msra.mxu0 0.0
    %3191 = vmatprep.subr.mxu0 0.0
    %3192 = vmatpush1.msra.mxu0 0.0
    %3193 = vmatprep.subr.mxu0 0.0
    %3194 = vmatpush1.msra.mxu0 0.0
    %3195 = vmatprep.subr.mxu0 0.0
    %3196 = vmatpush1.msra.mxu0 0.0
    %3197 = vmatprep.subr.mxu0 0.0
    %3198 = vmatpush1.msra.mxu0 0.0
    %3199 = vmatprep.subr.mxu0 0.0
    %3200 = vmatpush1.msra.mxu0 0.0
    %3201 = vmatprep.subr.mxu0 0.0
    %3202 = vmatpush1.msra.mxu0 0.0
    %3203 = vmatprep.subr.mxu0 0.0
    %3204 = vmatpush1.msra.mxu0 0.0
    %3205 = vmatprep.subr.mxu0 0.0
    %3206 = vmatpush1.msra.mxu0 0.0
    %3207 = vmatprep.subr.mxu0 0.0
    %v3208 = vand.u32 %v1669, 4294901760
    %v3209 = vsub.f32 %v1669, %v3208
    %3210 = vmatpush1.msra.mxu0 %v3209
    %3211 = vmatprep.subr.mxu0 0.0
    %3212 = vmatpush2.msra.mxu0 0.0
    %3213 = vmatprep.subr.mxu0 0.0
    %3214 = vmatpush2.msra.mxu0 0.0
    %3215 = vmatprep.subr.mxu0 0.0
    %3216 = vmatpush2.msra.mxu0 0.0
    %3217 = vmatprep.subr.mxu0 0.0
    %3218 = vmatpush2.msra.mxu0 0.0
    %3219 = vmatprep.subr.mxu0 0.0
    %3220 = vmatpush2.msra.mxu0 0.0
    %3221 = vmatprep.subr.mxu0 0.0
    %3222 = vmatpush2.msra.mxu0 0.0
    %3223 = vmatprep.subr.mxu0 0.0
    %3224 = vmatpush2.msra.mxu0 0.0
    %3225 = vmatprep.subr.mxu0 0.0
    %3226 = vmatpush2.msra.mxu0 0.0
    %3227 = vmatprep.subr.mxu0 0.0
    %3228 = vmatpush2.msra.mxu0 0.0
    %3229 = vmatprep.subr.mxu0 0.0
    %3230 = vmatpush2.msra.mxu0 0.0
    %3231 = vmatprep.subr.mxu0 0.0
    %3232 = vmatpush2.msra.mxu0 0.0
    %3233 = vmatprep.subr.mxu0 0.0
    %3234 = vmatpush2.msra.mxu0 0.0
    %3235 = vmatprep.subr.mxu0 0.0
    %3236 = vmatpush2.msra.mxu0 0.0
    %3237 = vmatprep.subr.mxu0 0.0
    %3238 = vmatpush2.msra.mxu0 0.0
    %3239 = vmatprep.subr.mxu0 0.0
    %3240 = vmatpush2.msra.mxu0 0.0
    %3241 = vmatprep.subr.mxu0 0.0
    %3242 = vmatpush2.msra.mxu0 0.0
    %3243 = vmatprep.mubr.f32.mxu0 0.0
    %v3244 = vand.u32 %v3023, 4294901760
    %v3245 = vsub.f32 %v3023, %v3244
    %3246 = vmatmul.mubr.f32.gmra.mxu0 %v3245
    %v3247 = vpop.f32.mrf.mxu0
    %v3248 = vadd.f32 %v3174, %v3247
    %v3249 = vpop.f32.mrf.mxu0
    %3250 = vdwg.mxu0
    %3251 = vmatprep.subr.mxu0 0.0
    %3252 = vmatpush1.msra.mxu0 0.0
    %3253 = vmatprep.subr.mxu0 0.0
    %3254 = vmatpush1.msra.mxu0 0.0
    %3255 = vmatprep.subr.mxu0 0.0
    %3256 = vmatpush1.msra.mxu0 0.0
    %3257 = vmatprep.subr.mxu0 0.0
    %3258 = vmatpush1.msra.mxu0 0.0
    %3259 = vmatprep.subr.mxu0 0.0
    %3260 = vmatpush1.msra.mxu0 0.0
    %3261 = vmatprep.subr.mxu0 0.0
    %3262 = vmatpush1.msra.mxu0 0.0
    %3263 = vmatprep.subr.mxu0 0.0
    %3264 = vmatpush1.msra.mxu0 0.0
    %3265 = vmatprep.subr.mxu0 0.0
    %3266 = vmatpush1.msra.mxu0 0.0
    %3267 = vmatprep.subr.mxu0 0.0
    %3268 = vmatpush1.msra.mxu0 0.0
    %3269 = vmatprep.subr.mxu0 0.0
    %3270 = vmatpush1.msra.mxu0 0.0
    %3271 = vmatprep.subr.mxu0 0.0
    %3272 = vmatpush1.msra.mxu0 0.0
    %3273 = vmatprep.subr.mxu0 0.0
    %3274 = vmatpush1.msra.mxu0 0.0
    %3275 = vmatprep.subr.mxu0 0.0
    %3276 = vmatpush1.msra.mxu0 0.0
    %3277 = vmatprep.subr.mxu0 0.0
    %3278 = vmatpush1.msra.mxu0 0.0
    %3279 = vmatprep.subr.mxu0 0.0
    %3280 = vmatpush1.msra.mxu0 0.0
    %3281 = vmatprep.subr.mxu0 0.0
    %v3282 = vand.u32 %v1669, 4294901760
    %3283 = vmatpush1.msra.mxu0 %v3282
    %3284 = vmatprep.subr.mxu0 0.0
    %3285 = vmatpush2.msra.mxu0 0.0
    %3286 = vmatprep.subr.mxu0 0.0
    %3287 = vmatpush2.msra.mxu0 0.0
    %3288 = vmatprep.subr.mxu0 0.0
    %3289 = vmatpush2.msra.mxu0 0.0
    %3290 = vmatprep.subr.mxu0 0.0
    %3291 = vmatpush2.msra.mxu0 0.0
    %3292 = vmatprep.subr.mxu0 0.0
    %3293 = vmatpush2.msra.mxu0 0.0
    %3294 = vmatprep.subr.mxu0 0.0
    %3295 = vmatpush2.msra.mxu0 0.0
    %3296 = vmatprep.subr.mxu0 0.0
    %3297 = vmatpush2.msra.mxu0 0.0
    %3298 = vmatprep.subr.mxu0 0.0
    %3299 = vmatpush2.msra.mxu0 0.0
    %3300 = vmatprep.subr.mxu0 0.0
    %3301 = vmatpush2.msra.mxu0 0.0
    %3302 = vmatprep.subr.mxu0 0.0
    %3303 = vmatpush2.msra.mxu0 0.0
    %3304 = vmatprep.subr.mxu0 0.0
    %3305 = vmatpush2.msra.mxu0 0.0
    %3306 = vmatprep.subr.mxu0 0.0
    %3307 = vmatpush2.msra.mxu0 0.0
    %3308 = vmatprep.subr.mxu0 0.0
    %3309 = vmatpush2.msra.mxu0 0.0
    %3310 = vmatprep.subr.mxu0 0.0
    %3311 = vmatpush2.msra.mxu0 0.0
    %3312 = vmatprep.subr.mxu0 0.0
    %3313 = vmatpush2.msra.mxu0 0.0
    %3314 = vmatprep.subr.mxu0 0.0
    %3315 = vmatpush2.msra.mxu0 0.0
    %3316 = vmatprep.mubr.f32.mxu0 0.0
    %v3317 = vand.u32 %v3023, 4294901760
    %v3318 = vsub.f32 %v3023, %v3317
    %v3319 = vand.u32 %v3318, 4294901760
    %3320 = vmatmul.mubr.f32.gmra.mxu0 %v3319
    %v3321 = vpop.f32.mrf.mxu0
    %v3322 = vadd.f32 %v3248, %v3321
    %v3323 = vpop.f32.mrf.mxu0
    %3324 = vdwg.mxu0
    %3325 = vmatprep.subr.mxu0 0.0
    %3326 = vmatpush1.msra.mxu0 0.0
    %3327 = vmatprep.subr.mxu0 0.0
    %3328 = vmatpush1.msra.mxu0 0.0
    %3329 = vmatprep.subr.mxu0 0.0
    %3330 = vmatpush1.msra.mxu0 0.0
    %3331 = vmatprep.subr.mxu0 0.0
    %3332 = vmatpush1.msra.mxu0 0.0
    %3333 = vmatprep.subr.mxu0 0.0
    %3334 = vmatpush1.msra.mxu0 0.0
    %3335 = vmatprep.subr.mxu0 0.0
    %3336 = vmatpush1.msra.mxu0 0.0
    %3337 = vmatprep.subr.mxu0 0.0
    %3338 = vmatpush1.msra.mxu0 0.0
    %3339 = vmatprep.subr.mxu0 0.0
    %3340 = vmatpush1.msra.mxu0 0.0
    %3341 = vmatprep.subr.mxu0 0.0
    %3342 = vmatpush1.msra.mxu0 0.0
    %3343 = vmatprep.subr.mxu0 0.0
    %3344 = vmatpush1.msra.mxu0 0.0
    %3345 = vmatprep.subr.mxu0 0.0
    %3346 = vmatpush1.msra.mxu0 0.0
    %3347 = vmatprep.subr.mxu0 0.0
    %3348 = vmatpush1.msra.mxu0 0.0
    %3349 = vmatprep.subr.mxu0 0.0
    %3350 = vmatpush1.msra.mxu0 0.0
    %3351 = vmatprep.subr.mxu0 0.0
    %3352 = vmatpush1.msra.mxu0 0.0
    %3353 = vmatprep.subr.mxu0 0.0
    %3354 = vmatpush1.msra.mxu0 0.0
    %3355 = vmatprep.subr.mxu0 0.0
    %v3356 = vand.u32 %v1669, 4294901760
    %v3357 = vsub.f32 %v1669, %v3356
    %v3358 = vand.u32 %v3357, 4294901760
    %3359 = vmatpush1.msra.mxu0 %v3358
    %3360 = vmatprep.subr.mxu0 0.0
    %3361 = vmatpush2.msra.mxu0 0.0
    %3362 = vmatprep.subr.mxu0 0.0
    %3363 = vmatpush2.msra.mxu0 0.0
    %3364 = vmatprep.subr.mxu0 0.0
    %3365 = vmatpush2.msra.mxu0 0.0
    %3366 = vmatprep.subr.mxu0 0.0
    %3367 = vmatpush2.msra.mxu0 0.0
    %3368 = vmatprep.subr.mxu0 0.0
    %3369 = vmatpush2.msra.mxu0 0.0
    %3370 = vmatprep.subr.mxu0 0.0
    %3371 = vmatpush2.msra.mxu0 0.0
    %3372 = vmatprep.subr.mxu0 0.0
    %3373 = vmatpush2.msra.mxu0 0.0
    %3374 = vmatprep.subr.mxu0 0.0
    %3375 = vmatpush2.msra.mxu0 0.0
    %3376 = vmatprep.subr.mxu0 0.0
    %3377 = vmatpush2.msra.mxu0 0.0
    %3378 = vmatprep.subr.mxu0 0.0
    %3379 = vmatpush2.msra.mxu0 0.0
    %3380 = vmatprep.subr.mxu0 0.0
    %3381 = vmatpush2.msra.mxu0 0.0
    %3382 = vmatprep.subr.mxu0 0.0
    %3383 = vmatpush2.msra.mxu0 0.0
    %3384 = vmatprep.subr.mxu0 0.0
    %3385 = vmatpush2.msra.mxu0 0.0
    %3386 = vmatprep.subr.mxu0 0.0
    %3387 = vmatpush2.msra.mxu0 0.0
    %3388 = vmatprep.subr.mxu0 0.0
    %3389 = vmatpush2.msra.mxu0 0.0
    %3390 = vmatprep.subr.mxu0 0.0
    %3391 = vmatpush2.msra.mxu0 0.0
    %3392 = vmatprep.mubr.f32.mxu0 0.0
    %v3393 = vand.u32 %v3023, 4294901760
    %3394 = vmatmul.mubr.f32.gmra.mxu0 %v3393
    %v3395 = vpop.f32.mrf.mxu0
    %v3396 = vadd.f32 %v3322, %v3395
    %v3397 = vpop.f32.mrf.mxu0
    %3398 = vdwg.mxu0
    %3399 = vmatprep.subr.mxu0 0.0
    %3400 = vmatpush1.msra.mxu0 0.0
    %3401 = vmatprep.subr.mxu0 0.0
    %3402 = vmatpush1.msra.mxu0 0.0
    %3403 = vmatprep.subr.mxu0 0.0
    %3404 = vmatpush1.msra.mxu0 0.0
    %3405 = vmatprep.subr.mxu0 0.0
    %3406 = vmatpush1.msra.mxu0 0.0
    %3407 = vmatprep.subr.mxu0 0.0
    %3408 = vmatpush1.msra.mxu0 0.0
    %3409 = vmatprep.subr.mxu0 0.0
    %3410 = vmatpush1.msra.mxu0 0.0
    %3411 = vmatprep.subr.mxu0 0.0
    %3412 = vmatpush1.msra.mxu0 0.0
    %3413 = vmatprep.subr.mxu0 0.0
    %3414 = vmatpush1.msra.mxu0 0.0
    %3415 = vmatprep.subr.mxu0 0.0
    %3416 = vmatpush1.msra.mxu0 0.0
    %3417 = vmatprep.subr.mxu0 0.0
    %3418 = vmatpush1.msra.mxu0 0.0
    %3419 = vmatprep.subr.mxu0 0.0
    %3420 = vmatpush1.msra.mxu0 0.0
    %3421 = vmatprep.subr.mxu0 0.0
    %3422 = vmatpush1.msra.mxu0 0.0
    %3423 = vmatprep.subr.mxu0 0.0
    %3424 = vmatpush1.msra.mxu0 0.0
    %3425 = vmatprep.subr.mxu0 0.0
    %3426 = vmatpush1.msra.mxu0 0.0
    %3427 = vmatprep.subr.mxu0 0.0
    %3428 = vmatpush1.msra.mxu0 0.0
    %3429 = vmatprep.subr.mxu0 0.0
    %v3430 = vand.u32 %v1669, 4294901760
    %3431 = vmatpush1.msra.mxu0 %v3430
    %3432 = vmatprep.subr.mxu0 0.0
    %3433 = vmatpush2.msra.mxu0 0.0
    %3434 = vmatprep.subr.mxu0 0.0
    %3435 = vmatpush2.msra.mxu0 0.0
    %3436 = vmatprep.subr.mxu0 0.0
    %3437 = vmatpush2.msra.mxu0 0.0
    %3438 = vmatprep.subr.mxu0 0.0
    %3439 = vmatpush2.msra.mxu0 0.0
    %3440 = vmatprep.subr.mxu0 0.0
    %3441 = vmatpush2.msra.mxu0 0.0
    %3442 = vmatprep.subr.mxu0 0.0
    %3443 = vmatpush2.msra.mxu0 0.0
    %3444 = vmatprep.subr.mxu0 0.0
    %3445 = vmatpush2.msra.mxu0 0.0
    %3446 = vmatprep.subr.mxu0 0.0
    %3447 = vmatpush2.msra.mxu0 0.0
    %3448 = vmatprep.subr.mxu0 0.0
    %3449 = vmatpush2.msra.mxu0 0.0
    %3450 = vmatprep.subr.mxu0 0.0
    %3451 = vmatpush2.msra.mxu0 0.0
    %3452 = vmatprep.subr.mxu0 0.0
    %3453 = vmatpush2.msra.mxu0 0.0
    %3454 = vmatprep.subr.mxu0 0.0
    %3455 = vmatpush2.msra.mxu0 0.0
    %3456 = vmatprep.subr.mxu0 0.0
    %3457 = vmatpush2.msra.mxu0 0.0
    %3458 = vmatprep.subr.mxu0 0.0
    %3459 = vmatpush2.msra.mxu0 0.0
    %3460 = vmatprep.subr.mxu0 0.0
    %3461 = vmatpush2.msra.mxu0 0.0
    %3462 = vmatprep.subr.mxu0 0.0
    %3463 = vmatpush2.msra.mxu0 0.0
    %3464 = vmatprep.mubr.f32.mxu0 0.0
    %v3465 = vand.u32 %v3023, 4294901760
    %3466 = vmatmul.mubr.f32.gmra.mxu0 %v3465
    %v3467 = vpop.f32.mrf.mxu0
    %v3468 = vadd.f32 %v3396, %v3467
    %v3469 = vpop.f32.mrf.mxu0
    %3470 = vdwg.mxu0
    %v3471 = vadd.f32 %v3021, %v3468
    %v3472 = vmul.f32 %v2571, 0.01
    %v3473 = vmul.f32 %v3471, 0.01
    %v3474 = vmax.f32 %v2571, %v3472
    %v3475 = vmax.f32 %v3471, %v3473
    %v3476 = vld [vmem:[%s3] sm:$0xff]
    %v3477 = vld [vmem:[%s3 + $0x8] sm:$0xff]
    %v3478 = vld [vmem:[%s3 + $0x10] sm:$0xff]
    %v3479 = vld [vmem:[%s3 + $0x18] sm:$0xff]
    %v3480 = vld [vmem:[%s3 + $0x20] sm:$0xff]
    %v3481 = vld [vmem:[%s3 + $0x28] sm:$0xff]
    %v3482 = vld [vmem:[%s3 + $0x30] sm:$0xff]
    %v3483 = vld [vmem:[%s3 + $0x38] sm:$0xff]
    %v3484 = vld [vmem:[%s3 + $0x40] sm:$0x1]
    %v3485 = vlaneseq
    %v3486 = vshrl.u32 %v3485, 7
    %v3487 = vsub.s32 0, %v3486
    %v3488 = vrot.slane %v3484, %v3487
    %vm3489 = vcmask 523264
    %v3491 = vsel %vm3489, %v3474, 0
    %v3494 = vsel %vm3489, %v3475, 0
    %3496 = vmatprep.subr.mxu0 0.0
    %3497 = vmatpush1.msra.mxu0 0.0
    %3498 = vmatprep.subr.mxu0 0.0
    %3499 = vmatpush1.msra.mxu0 0.0
    %3500 = vmatprep.subr.mxu0 0.0
    %3501 = vmatpush1.msra.mxu0 0.0
    %3502 = vmatprep.subr.mxu0 0.0
    %3503 = vmatpush1.msra.mxu0 0.0
    %3504 = vmatprep.subr.mxu0 0.0
    %3505 = vmatpush1.msra.mxu0 0.0
    %3506 = vmatprep.subr.mxu0 0.0
    %3507 = vmatpush1.msra.mxu0 0.0
    %3508 = vmatprep.subr.mxu0 0.0
    %3509 = vmatpush1.msra.mxu0 0.0
    %3510 = vmatprep.subr.mxu0 0.0
    %3511 = vmatpush1.msra.mxu0 0.0
    %3512 = vmatprep.subr.mxu0 0.0
    %v3513 = vand.u32 %v3483, 4294901760
    %3514 = vmatpush1.msra.mxu0 %v3513
    %3515 = vmatprep.subr.mxu0 0.0
    %v3516 = vand.u32 %v3482, 4294901760
    %3517 = vmatpush1.msra.mxu0 %v3516
    %3518 = vmatprep.subr.mxu0 0.0
    %v3519 = vand.u32 %v3481, 4294901760
    %3520 = vmatpush1.msra.mxu0 %v3519
    %3521 = vmatprep.subr.mxu0 0.0
    %v3522 = vand.u32 %v3480, 4294901760
    %3523 = vmatpush1.msra.mxu0 %v3522
    %3524 = vmatprep.subr.mxu0 0.0
    %v3525 = vand.u32 %v3479, 4294901760
    %3526 = vmatpush1.msra.mxu0 %v3525
    %3527 = vmatprep.subr.mxu0 0.0
    %v3528 = vand.u32 %v3478, 4294901760
    %3529 = vmatpush1.msra.mxu0 %v3528
    %3530 = vmatprep.subr.mxu0 0.0
    %v3531 = vand.u32 %v3477, 4294901760
    %3532 = vmatpush1.msra.mxu0 %v3531
    %3533 = vmatprep.subr.mxu0 0.0
    %v3534 = vand.u32 %v3476, 4294901760
    %3535 = vmatpush1.msra.mxu0 %v3534
    %3536 = vmatprep.subr.mxu0 0.0
    %3537 = vmatpush2.msra.mxu0 0.0
    %3538 = vmatprep.subr.mxu0 0.0
    %3539 = vmatpush2.msra.mxu0 0.0
    %3540 = vmatprep.subr.mxu0 0.0
    %3541 = vmatpush2.msra.mxu0 0.0
    %3542 = vmatprep.subr.mxu0 0.0
    %3543 = vmatpush2.msra.mxu0 0.0
    %3544 = vmatprep.subr.mxu0 0.0
    %3545 = vmatpush2.msra.mxu0 0.0
    %3546 = vmatprep.subr.mxu0 0.0
    %3547 = vmatpush2.msra.mxu0 0.0
    %3548 = vmatprep.subr.mxu0 0.0
    %3549 = vmatpush2.msra.mxu0 0.0
    %3550 = vmatprep.subr.mxu0 0.0
    %3551 = vmatpush2.msra.mxu0 0.0
    %3552 = vmatprep.subr.mxu0 0.0
    %3553 = vmatpush2.msra.mxu0 0.0
    %3554 = vmatprep.subr.mxu0 0.0
    %3555 = vmatpush2.msra.mxu0 0.0
    %3556 = vmatprep.subr.mxu0 0.0
    %3557 = vmatpush2.msra.mxu0 0.0
    %3558 = vmatprep.subr.mxu0 0.0
    %3559 = vmatpush2.msra.mxu0 0.0
    %3560 = vmatprep.subr.mxu0 0.0
    %3561 = vmatpush2.msra.mxu0 0.0
    %3562 = vmatprep.subr.mxu0 0.0
    %3563 = vmatpush2.msra.mxu0 0.0
    %3564 = vmatprep.subr.mxu0 0.0
    %3565 = vmatpush2.msra.mxu0 0.0
    %3566 = vmatprep.subr.mxu0 0.0
    %3567 = vmatpush2.msra.mxu0 0.0
    %3568 = vmatprep.mubr.f32.mxu0 0.0
    %v3569 = vand.u32 %v3491, 4294901760
    %v3570 = vsub.f32 %v3491, %v3569
    %v3571 = vand.u32 %v3570, 4294901760
    %v3572 = vsub.f32 %v3570, %v3571
    %v3573 = vand.u32 %v3572, 4294901760
    %3574 = vmatmul.mubr.f32.gmra.mxu0 %v3573
    %v3575 = vpop.f32.mrf.mxu0
    %v3576 = vadd.f32 %v3488, %v3575
    %v3577 = vpop.f32.mrf.mxu0
    %3578 = vmatprep.mubr.f32.mxu0 0.0
    %v3579 = vand.u32 %v3494, 4294901760
    %v3580 = vsub.f32 %v3494, %v3579
    %v3581 = vand.u32 %v3580, 4294901760
    %v3582 = vsub.f32 %v3580, %v3581
    %v3583 = vand.u32 %v3582, 4294901760
    %3584 = vmatmul.mubr.f32.gmra.mxu0 %v3583
    %v3585 = vpop.f32.mrf.mxu0
    %v3586 = vadd.f32 %v3488, %v3585
    %v3587 = vpop.f32.mrf.mxu0
    %3588 = vdwg.mxu0
    %3589 = vmatprep.subr.mxu0 0.0
    %3590 = vmatpush1.msra.mxu0 0.0
    %3591 = vmatprep.subr.mxu0 0.0
    %3592 = vmatpush1.msra.mxu0 0.0
    %3593 = vmatprep.subr.mxu0 0.0
    %3594 = vmatpush1.msra.mxu0 0.0
    %3595 = vmatprep.subr.mxu0 0.0
    %3596 = vmatpush1.msra.mxu0 0.0
    %3597 = vmatprep.subr.mxu0 0.0
    %3598 = vmatpush1.msra.mxu0 0.0
    %3599 = vmatprep.subr.mxu0 0.0
    %3600 = vmatpush1.msra.mxu0 0.0
    %3601 = vmatprep.subr.mxu0 0.0
    %3602 = vmatpush1.msra.mxu0 0.0
    %3603 = vmatprep.subr.mxu0 0.0
    %3604 = vmatpush1.msra.mxu0 0.0
    %3605 = vmatprep.subr.mxu0 0.0
    %v3606 = vand.u32 %v3483, 4294901760
    %v3607 = vsub.f32 %v3483, %v3606
    %v3608 = vand.u32 %v3607, 4294901760
    %v3609 = vsub.f32 %v3607, %v3608
    %v3610 = vand.u32 %v3609, 4294901760
    %3611 = vmatpush1.msra.mxu0 %v3610
    %3612 = vmatprep.subr.mxu0 0.0
    %v3613 = vand.u32 %v3482, 4294901760
    %v3614 = vsub.f32 %v3482, %v3613
    %v3615 = vand.u32 %v3614, 4294901760
    %v3616 = vsub.f32 %v3614, %v3615
    %v3617 = vand.u32 %v3616, 4294901760
    %3618 = vmatpush1.msra.mxu0 %v3617
    %3619 = vmatprep.subr.mxu0 0.0
    %v3620 = vand.u32 %v3481, 4294901760
    %v3621 = vsub.f32 %v3481, %v3620
    %v3622 = vand.u32 %v3621, 4294901760
    %v3623 = vsub.f32 %v3621, %v3622
    %v3624 = vand.u32 %v3623, 4294901760
    %3625 = vmatpush1.msra.mxu0 %v3624
    %3626 = vmatprep.subr.mxu0 0.0
    %v3627 = vand.u32 %v3480, 4294901760
    %v3628 = vsub.f32 %v3480, %v3627
    %v3629 = vand.u32 %v3628, 4294901760
    %v3630 = vsub.f32 %v3628, %v3629
    %v3631 = vand.u32 %v3630, 4294901760
    %3632 = vmatpush1.msra.mxu0 %v3631
    %3633 = vmatprep.subr.mxu0 0.0
    %v3634 = vand.u32 %v3479, 4294901760
    %v3635 = vsub.f32 %v3479, %v3634
    %v3636 = vand.u32 %v3635, 4294901760
    %v3637 = vsub.f32 %v3635, %v3636
    %v3638 = vand.u32 %v3637, 4294901760
    %3639 = vmatpush1.msra.mxu0 %v3638
    %3640 = vmatprep.subr.mxu0 0.0
    %v3641 = vand.u32 %v3478, 4294901760
    %v3642 = vsub.f32 %v3478, %v3641
    %v3643 = vand.u32 %v3642, 4294901760
    %v3644 = vsub.f32 %v3642, %v3643
    %v3645 = vand.u32 %v3644, 4294901760
    %3646 = vmatpush1.msra.mxu0 %v3645
    %3647 = vmatprep.subr.mxu0 0.0
    %v3648 = vand.u32 %v3477, 4294901760
    %v3649 = vsub.f32 %v3477, %v3648
    %v3650 = vand.u32 %v3649, 4294901760
    %v3651 = vsub.f32 %v3649, %v3650
    %v3652 = vand.u32 %v3651, 4294901760
    %3653 = vmatpush1.msra.mxu0 %v3652
    %3654 = vmatprep.subr.mxu0 0.0
    %v3655 = vand.u32 %v3476, 4294901760
    %v3656 = vsub.f32 %v3476, %v3655
    %v3657 = vand.u32 %v3656, 4294901760
    %v3658 = vsub.f32 %v3656, %v3657
    %v3659 = vand.u32 %v3658, 4294901760
    %3660 = vmatpush1.msra.mxu0 %v3659
    %3661 = vmatprep.subr.mxu0 0.0
    %3662 = vmatpush2.msra.mxu0 0.0
    %3663 = vmatprep.subr.mxu0 0.0
    %3664 = vmatpush2.msra.mxu0 0.0
    %3665 = vmatprep.subr.mxu0 0.0
    %3666 = vmatpush2.msra.mxu0 0.0
    %3667 = vmatprep.subr.mxu0 0.0
    %3668 = vmatpush2.msra.mxu0 0.0
    %3669 = vmatprep.subr.mxu0 0.0
    %3670 = vmatpush2.msra.mxu0 0.0
    %3671 = vmatprep.subr.mxu0 0.0
    %3672 = vmatpush2.msra.mxu0 0.0
    %3673 = vmatprep.subr.mxu0 0.0
    %3674 = vmatpush2.msra.mxu0 0.0
    %3675 = vmatprep.subr.mxu0 0.0
    %3676 = vmatpush2.msra.mxu0 0.0
    %3677 = vmatprep.subr.mxu0 0.0
    %3678 = vmatpush2.msra.mxu0 0.0
    %3679 = vmatprep.subr.mxu0 0.0
    %3680 = vmatpush2.msra.mxu0 0.0
    %3681 = vmatprep.subr.mxu0 0.0
    %3682 = vmatpush2.msra.mxu0 0.0
    %3683 = vmatprep.subr.mxu0 0.0
    %3684 = vmatpush2.msra.mxu0 0.0
    %3685 = vmatprep.subr.mxu0 0.0
    %3686 = vmatpush2.msra.mxu0 0.0
    %3687 = vmatprep.subr.mxu0 0.0
    %3688 = vmatpush2.msra.mxu0 0.0
    %3689 = vmatprep.subr.mxu0 0.0
    %3690 = vmatpush2.msra.mxu0 0.0
    %3691 = vmatprep.subr.mxu0 0.0
    %3692 = vmatpush2.msra.mxu0 0.0
    %3693 = vmatprep.mubr.f32.mxu0 0.0
    %v3694 = vand.u32 %v3491, 4294901760
    %3695 = vmatmul.mubr.f32.gmra.mxu0 %v3694
    %v3696 = vpop.f32.mrf.mxu0
    %v3697 = vadd.f32 %v3576, %v3696
    %v3698 = vpop.f32.mrf.mxu0
    %3699 = vmatprep.mubr.f32.mxu0 0.0
    %v3700 = vand.u32 %v3494, 4294901760
    %3701 = vmatmul.mubr.f32.gmra.mxu0 %v3700
    %v3702 = vpop.f32.mrf.mxu0
    %v3703 = vadd.f32 %v3586, %v3702
    %v3704 = vpop.f32.mrf.mxu0
    %3705 = vdwg.mxu0
    %3706 = vmatprep.subr.mxu0 0.0
    %3707 = vmatpush1.msra.mxu0 0.0
    %3708 = vmatprep.subr.mxu0 0.0
    %3709 = vmatpush1.msra.mxu0 0.0
    %3710 = vmatprep.subr.mxu0 0.0
    %3711 = vmatpush1.msra.mxu0 0.0
    %3712 = vmatprep.subr.mxu0 0.0
    %3713 = vmatpush1.msra.mxu0 0.0
    %3714 = vmatprep.subr.mxu0 0.0
    %3715 = vmatpush1.msra.mxu0 0.0
    %3716 = vmatprep.subr.mxu0 0.0
    %3717 = vmatpush1.msra.mxu0 0.0
    %3718 = vmatprep.subr.mxu0 0.0
    %3719 = vmatpush1.msra.mxu0 0.0
    %3720 = vmatprep.subr.mxu0 0.0
    %3721 = vmatpush1.msra.mxu0 0.0
    %3722 = vmatprep.subr.mxu0 0.0
    %v3723 = vand.u32 %v3483, 4294901760
    %v3724 = vsub.f32 %v3483, %v3723
    %3725 = vmatpush1.msra.mxu0 %v3724
    %3726 = vmatprep.subr.mxu0 0.0
    %v3727 = vand.u32 %v3482, 4294901760
    %v3728 = vsub.f32 %v3482, %v3727
    %3729 = vmatpush1.msra.mxu0 %v3728
    %3730 = vmatprep.subr.mxu0 0.0
    %v3731 = vand.u32 %v3481, 4294901760
    %v3732 = vsub.f32 %v3481, %v3731
    %3733 = vmatpush1.msra.mxu0 %v3732
    %3734 = vmatprep.subr.mxu0 0.0
    %v3735 = vand.u32 %v3480, 4294901760
    %v3736 = vsub.f32 %v3480, %v3735
    %3737 = vmatpush1.msra.mxu0 %v3736
    %3738 = vmatprep.subr.mxu0 0.0
    %v3739 = vand.u32 %v3479, 4294901760
    %v3740 = vsub.f32 %v3479, %v3739
    %3741 = vmatpush1.msra.mxu0 %v3740
    %3742 = vmatprep.subr.mxu0 0.0
    %v3743 = vand.u32 %v3478, 4294901760
    %v3744 = vsub.f32 %v3478, %v3743
    %3745 = vmatpush1.msra.mxu0 %v3744
    %3746 = vmatprep.subr.mxu0 0.0
    %v3747 = vand.u32 %v3477, 4294901760
    %v3748 = vsub.f32 %v3477, %v3747
    %3749 = vmatpush1.msra.mxu0 %v3748
    %3750 = vmatprep.subr.mxu0 0.0
    %v3751 = vand.u32 %v3476, 4294901760
    %v3752 = vsub.f32 %v3476, %v3751
    %3753 = vmatpush1.msra.mxu0 %v3752
    %3754 = vmatprep.subr.mxu0 0.0
    %3755 = vmatpush2.msra.mxu0 0.0
    %3756 = vmatprep.subr.mxu0 0.0
    %3757 = vmatpush2.msra.mxu0 0.0
    %3758 = vmatprep.subr.mxu0 0.0
    %3759 = vmatpush2.msra.mxu0 0.0
    %3760 = vmatprep.subr.mxu0 0.0
    %3761 = vmatpush2.msra.mxu0 0.0
    %3762 = vmatprep.subr.mxu0 0.0
    %3763 = vmatpush2.msra.mxu0 0.0
    %3764 = vmatprep.subr.mxu0 0.0
    %3765 = vmatpush2.msra.mxu0 0.0
    %3766 = vmatprep.subr.mxu0 0.0
    %3767 = vmatpush2.msra.mxu0 0.0
    %3768 = vmatprep.subr.mxu0 0.0
    %3769 = vmatpush2.msra.mxu0 0.0
    %3770 = vmatprep.subr.mxu0 0.0
    %3771 = vmatpush2.msra.mxu0 0.0
    %3772 = vmatprep.subr.mxu0 0.0
    %3773 = vmatpush2.msra.mxu0 0.0
    %3774 = vmatprep.subr.mxu0 0.0
    %3775 = vmatpush2.msra.mxu0 0.0
    %3776 = vmatprep.subr.mxu0 0.0
    %3777 = vmatpush2.msra.mxu0 0.0
    %3778 = vmatprep.subr.mxu0 0.0
    %3779 = vmatpush2.msra.mxu0 0.0
    %3780 = vmatprep.subr.mxu0 0.0
    %3781 = vmatpush2.msra.mxu0 0.0
    %3782 = vmatprep.subr.mxu0 0.0
    %3783 = vmatpush2.msra.mxu0 0.0
    %3784 = vmatprep.subr.mxu0 0.0
    %3785 = vmatpush2.msra.mxu0 0.0
    %3786 = vmatprep.mubr.f32.mxu0 0.0
    %v3787 = vand.u32 %v3491, 4294901760
    %v3788 = vsub.f32 %v3491, %v3787
    %3789 = vmatmul.mubr.f32.gmra.mxu0 %v3788
    %v3790 = vpop.f32.mrf.mxu0
    %v3791 = vadd.f32 %v3697, %v3790
    %v3792 = vpop.f32.mrf.mxu0
    %3793 = vmatprep.mubr.f32.mxu0 0.0
    %v3794 = vand.u32 %v3494, 4294901760
    %v3795 = vsub.f32 %v3494, %v3794
    %3796 = vmatmul.mubr.f32.gmra.mxu0 %v3795
    %v3797 = vpop.f32.mrf.mxu0
    %v3798 = vadd.f32 %v3703, %v3797
    %v3799 = vpop.f32.mrf.mxu0
    %3800 = vdwg.mxu0
    %3801 = vmatprep.subr.mxu0 0.0
    %3802 = vmatpush1.msra.mxu0 0.0
    %3803 = vmatprep.subr.mxu0 0.0
    %3804 = vmatpush1.msra.mxu0 0.0
    %3805 = vmatprep.subr.mxu0 0.0
    %3806 = vmatpush1.msra.mxu0 0.0
    %3807 = vmatprep.subr.mxu0 0.0
    %3808 = vmatpush1.msra.mxu0 0.0
    %3809 = vmatprep.subr.mxu0 0.0
    %3810 = vmatpush1.msra.mxu0 0.0
    %3811 = vmatprep.subr.mxu0 0.0
    %3812 = vmatpush1.msra.mxu0 0.0
    %3813 = vmatprep.subr.mxu0 0.0
    %3814 = vmatpush1.msra.mxu0 0.0
    %3815 = vmatprep.subr.mxu0 0.0
    %3816 = vmatpush1.msra.mxu0 0.0
    %3817 = vmatprep.subr.mxu0 0.0
    %v3818 = vand.u32 %v3483, 4294901760
    %3819 = vmatpush1.msra.mxu0 %v3818
    %3820 = vmatprep.subr.mxu0 0.0
    %v3821 = vand.u32 %v3482, 4294901760
    %3822 = vmatpush1.msra.mxu0 %v3821
    %3823 = vmatprep.subr.mxu0 0.0
    %v3824 = vand.u32 %v3481, 4294901760
    %3825 = vmatpush1.msra.mxu0 %v3824
    %3826 = vmatprep.subr.mxu0 0.0
    %v3827 = vand.u32 %v3480, 4294901760
    %3828 = vmatpush1.msra.mxu0 %v3827
    %3829 = vmatprep.subr.mxu0 0.0
    %v3830 = vand.u32 %v3479, 4294901760
    %3831 = vmatpush1.msra.mxu0 %v3830
    %3832 = vmatprep.subr.mxu0 0.0
    %v3833 = vand.u32 %v3478, 4294901760
    %3834 = vmatpush1.msra.mxu0 %v3833
    %3835 = vmatprep.subr.mxu0 0.0
    %v3836 = vand.u32 %v3477, 4294901760
    %3837 = vmatpush1.msra.mxu0 %v3836
    %3838 = vmatprep.subr.mxu0 0.0
    %v3839 = vand.u32 %v3476, 4294901760
    %3840 = vmatpush1.msra.mxu0 %v3839
    %3841 = vmatprep.subr.mxu0 0.0
    %3842 = vmatpush2.msra.mxu0 0.0
    %3843 = vmatprep.subr.mxu0 0.0
    %3844 = vmatpush2.msra.mxu0 0.0
    %3845 = vmatprep.subr.mxu0 0.0
    %3846 = vmatpush2.msra.mxu0 0.0
    %3847 = vmatprep.subr.mxu0 0.0
    %3848 = vmatpush2.msra.mxu0 0.0
    %3849 = vmatprep.subr.mxu0 0.0
    %3850 = vmatpush2.msra.mxu0 0.0
    %3851 = vmatprep.subr.mxu0 0.0
    %3852 = vmatpush2.msra.mxu0 0.0
    %3853 = vmatprep.subr.mxu0 0.0
    %3854 = vmatpush2.msra.mxu0 0.0
    %3855 = vmatprep.subr.mxu0 0.0
    %3856 = vmatpush2.msra.mxu0 0.0
    %3857 = vmatprep.subr.mxu0 0.0
    %3858 = vmatpush2.msra.mxu0 0.0
    %3859 = vmatprep.subr.mxu0 0.0
    %3860 = vmatpush2.msra.mxu0 0.0
    %3861 = vmatprep.subr.mxu0 0.0
    %3862 = vmatpush2.msra.mxu0 0.0
    %3863 = vmatprep.subr.mxu0 0.0
    %3864 = vmatpush2.msra.mxu0 0.0
    %3865 = vmatprep.subr.mxu0 0.0
    %3866 = vmatpush2.msra.mxu0 0.0
    %3867 = vmatprep.subr.mxu0 0.0
    %3868 = vmatpush2.msra.mxu0 0.0
    %3869 = vmatprep.subr.mxu0 0.0
    %3870 = vmatpush2.msra.mxu0 0.0
    %3871 = vmatprep.subr.mxu0 0.0
    %3872 = vmatpush2.msra.mxu0 0.0
    %3873 = vmatprep.mubr.f32.mxu0 0.0
    %v3874 = vand.u32 %v3491, 4294901760
    %v3875 = vsub.f32 %v3491, %v3874
    %v3876 = vand.u32 %v3875, 4294901760
    %3877 = vmatmul.mubr.f32.gmra.mxu0 %v3876
    %v3878 = vpop.f32.mrf.mxu0
    %v3879 = vadd.f32 %v3791, %v3878
    %v3880 = vpop.f32.mrf.mxu0
    %3881 = vmatprep.mubr.f32.mxu0 0.0
    %v3882 = vand.u32 %v3494, 4294901760
    %v3883 = vsub.f32 %v3494, %v3882
    %v3884 = vand.u32 %v3883, 4294901760
    %3885 = vmatmul.mubr.f32.gmra.mxu0 %v3884
    %v3886 = vpop.f32.mrf.mxu0
    %v3887 = vadd.f32 %v3798, %v3886
    %v3888 = vpop.f32.mrf.mxu0
    %3889 = vdwg.mxu0
    %3890 = vmatprep.subr.mxu0 0.0
    %3891 = vmatpush1.msra.mxu0 0.0
    %3892 = vmatprep.subr.mxu0 0.0
    %3893 = vmatpush1.msra.mxu0 0.0
    %3894 = vmatprep.subr.mxu0 0.0
    %3895 = vmatpush1.msra.mxu0 0.0
    %3896 = vmatprep.subr.mxu0 0.0
    %3897 = vmatpush1.msra.mxu0 0.0
    %3898 = vmatprep.subr.mxu0 0.0
    %3899 = vmatpush1.msra.mxu0 0.0
    %3900 = vmatprep.subr.mxu0 0.0
    %3901 = vmatpush1.msra.mxu0 0.0
    %3902 = vmatprep.subr.mxu0 0.0
    %3903 = vmatpush1.msra.mxu0 0.0
    %3904 = vmatprep.subr.mxu0 0.0
    %3905 = vmatpush1.msra.mxu0 0.0
    %3906 = vmatprep.subr.mxu0 0.0
    %v3907 = vand.u32 %v3483, 4294901760
    %v3908 = vsub.f32 %v3483, %v3907
    %v3909 = vand.u32 %v3908, 4294901760
    %3910 = vmatpush1.msra.mxu0 %v3909
    %3911 = vmatprep.subr.mxu0 0.0
    %v3912 = vand.u32 %v3482, 4294901760
    %v3913 = vsub.f32 %v3482, %v3912
    %v3914 = vand.u32 %v3913, 4294901760
    %3915 = vmatpush1.msra.mxu0 %v3914
    %3916 = vmatprep.subr.mxu0 0.0
    %v3917 = vand.u32 %v3481, 4294901760
    %v3918 = vsub.f32 %v3481, %v3917
    %v3919 = vand.u32 %v3918, 4294901760
    %3920 = vmatpush1.msra.mxu0 %v3919
    %3921 = vmatprep.subr.mxu0 0.0
    %v3922 = vand.u32 %v3480, 4294901760
    %v3923 = vsub.f32 %v3480, %v3922
    %v3924 = vand.u32 %v3923, 4294901760
    %3925 = vmatpush1.msra.mxu0 %v3924
    %3926 = vmatprep.subr.mxu0 0.0
    %v3927 = vand.u32 %v3479, 4294901760
    %v3928 = vsub.f32 %v3479, %v3927
    %v3929 = vand.u32 %v3928, 4294901760
    %3930 = vmatpush1.msra.mxu0 %v3929
    %3931 = vmatprep.subr.mxu0 0.0
    %v3932 = vand.u32 %v3478, 4294901760
    %v3933 = vsub.f32 %v3478, %v3932
    %v3934 = vand.u32 %v3933, 4294901760
    %3935 = vmatpush1.msra.mxu0 %v3934
    %3936 = vmatprep.subr.mxu0 0.0
    %v3937 = vand.u32 %v3477, 4294901760
    %v3938 = vsub.f32 %v3477, %v3937
    %v3939 = vand.u32 %v3938, 4294901760
    %3940 = vmatpush1.msra.mxu0 %v3939
    %3941 = vmatprep.subr.mxu0 0.0
    %v3942 = vand.u32 %v3476, 4294901760
    %v3943 = vsub.f32 %v3476, %v3942
    %v3944 = vand.u32 %v3943, 4294901760
    %3945 = vmatpush1.msra.mxu0 %v3944
    %3946 = vmatprep.subr.mxu0 0.0
    %3947 = vmatpush2.msra.mxu0 0.0
    %3948 = vmatprep.subr.mxu0 0.0
    %3949 = vmatpush2.msra.mxu0 0.0
    %3950 = vmatprep.subr.mxu0 0.0
    %3951 = vmatpush2.msra.mxu0 0.0
    %3952 = vmatprep.subr.mxu0 0.0
    %3953 = vmatpush2.msra.mxu0 0.0
    %3954 = vmatprep.subr.mxu0 0.0
    %3955 = vmatpush2.msra.mxu0 0.0
    %3956 = vmatprep.subr.mxu0 0.0
    %3957 = vmatpush2.msra.mxu0 0.0
    %3958 = vmatprep.subr.mxu0 0.0
    %3959 = vmatpush2.msra.mxu0 0.0
    %3960 = vmatprep.subr.mxu0 0.0
    %3961 = vmatpush2.msra.mxu0 0.0
    %3962 = vmatprep.subr.mxu0 0.0
    %3963 = vmatpush2.msra.mxu0 0.0
    %3964 = vmatprep.subr.mxu0 0.0
    %3965 = vmatpush2.msra.mxu0 0.0
    %3966 = vmatprep.subr.mxu0 0.0
    %3967 = vmatpush2.msra.mxu0 0.0
    %3968 = vmatprep.subr.mxu0 0.0
    %3969 = vmatpush2.msra.mxu0 0.0
    %3970 = vmatprep.subr.mxu0 0.0
    %3971 = vmatpush2.msra.mxu0 0.0
    %3972 = vmatprep.subr.mxu0 0.0
    %3973 = vmatpush2.msra.mxu0 0.0
    %3974 = vmatprep.subr.mxu0 0.0
    %3975 = vmatpush2.msra.mxu0 0.0
    %3976 = vmatprep.subr.mxu0 0.0
    %3977 = vmatpush2.msra.mxu0 0.0
    %3978 = vmatprep.mubr.f32.mxu0 0.0
    %v3979 = vand.u32 %v3491, 4294901760
    %3980 = vmatmul.mubr.f32.gmra.mxu0 %v3979
    %v3981 = vpop.f32.mrf.mxu0
    %v3982 = vadd.f32 %v3879, %v3981
    %v3983 = vpop.f32.mrf.mxu0
    %3984 = vmatprep.mubr.f32.mxu0 0.0
    %v3985 = vand.u32 %v3494, 4294901760
    %3986 = vmatmul.mubr.f32.gmra.mxu0 %v3985
    %v3987 = vpop.f32.mrf.mxu0
    %v3988 = vadd.f32 %v3887, %v3987
    %v3989 = vpop.f32.mrf.mxu0
    %3990 = vdwg.mxu0
    %3991 = vmatprep.subr.mxu0 0.0
    %3992 = vmatpush1.msra.mxu0 0.0
    %3993 = vmatprep.subr.mxu0 0.0
    %3994 = vmatpush1.msra.mxu0 0.0
    %3995 = vmatprep.subr.mxu0 0.0
    %3996 = vmatpush1.msra.mxu0 0.0
    %3997 = vmatprep.subr.mxu0 0.0
    %3998 = vmatpush1.msra.mxu0 0.0
    %3999 = vmatprep.subr.mxu0 0.0
    %4000 = vmatpush1.msra.mxu0 0.0
    %4001 = vmatprep.subr.mxu0 0.0
    %4002 = vmatpush1.msra.mxu0 0.0
    %4003 = vmatprep.subr.mxu0 0.0
    %4004 = vmatpush1.msra.mxu0 0.0
    %4005 = vmatprep.subr.mxu0 0.0
    %4006 = vmatpush1.msra.mxu0 0.0
    %4007 = vmatprep.subr.mxu0 0.0
    %v4008 = vand.u32 %v3483, 4294901760
    %4009 = vmatpush1.msra.mxu0 %v4008
    %4010 = vmatprep.subr.mxu0 0.0
    %v4011 = vand.u32 %v3482, 4294901760
    %4012 = vmatpush1.msra.mxu0 %v4011
    %4013 = vmatprep.subr.mxu0 0.0
    %v4014 = vand.u32 %v3481, 4294901760
    %4015 = vmatpush1.msra.mxu0 %v4014
    %4016 = vmatprep.subr.mxu0 0.0
    %v4017 = vand.u32 %v3480, 4294901760
    %4018 = vmatpush1.msra.mxu0 %v4017
    %4019 = vmatprep.subr.mxu0 0.0
    %v4020 = vand.u32 %v3479, 4294901760
    %4021 = vmatpush1.msra.mxu0 %v4020
    %4022 = vmatprep.subr.mxu0 0.0
    %v4023 = vand.u32 %v3478, 4294901760
    %4024 = vmatpush1.msra.mxu0 %v4023
    %4025 = vmatprep.subr.mxu0 0.0
    %v4026 = vand.u32 %v3477, 4294901760
    %4027 = vmatpush1.msra.mxu0 %v4026
    %4028 = vmatprep.subr.mxu0 0.0
    %v4029 = vand.u32 %v3476, 4294901760
    %4030 = vmatpush1.msra.mxu0 %v4029
    %4031 = vmatprep.subr.mxu0 0.0
    %4032 = vmatpush2.msra.mxu0 0.0
    %4033 = vmatprep.subr.mxu0 0.0
    %4034 = vmatpush2.msra.mxu0 0.0
    %4035 = vmatprep.subr.mxu0 0.0
    %4036 = vmatpush2.msra.mxu0 0.0
    %4037 = vmatprep.subr.mxu0 0.0
    %4038 = vmatpush2.msra.mxu0 0.0
    %4039 = vmatprep.subr.mxu0 0.0
    %4040 = vmatpush2.msra.mxu0 0.0
    %4041 = vmatprep.subr.mxu0 0.0
    %4042 = vmatpush2.msra.mxu0 0.0
    %4043 = vmatprep.subr.mxu0 0.0
    %4044 = vmatpush2.msra.mxu0 0.0
    %4045 = vmatprep.subr.mxu0 0.0
    %4046 = vmatpush2.msra.mxu0 0.0
    %4047 = vmatprep.subr.mxu0 0.0
    %4048 = vmatpush2.msra.mxu0 0.0
    %4049 = vmatprep.subr.mxu0 0.0
    %4050 = vmatpush2.msra.mxu0 0.0
    %4051 = vmatprep.subr.mxu0 0.0
    %4052 = vmatpush2.msra.mxu0 0.0
    %4053 = vmatprep.subr.mxu0 0.0
    %4054 = vmatpush2.msra.mxu0 0.0
    %4055 = vmatprep.subr.mxu0 0.0
    %4056 = vmatpush2.msra.mxu0 0.0
    %4057 = vmatprep.subr.mxu0 0.0
    %4058 = vmatpush2.msra.mxu0 0.0
    %4059 = vmatprep.subr.mxu0 0.0
    %4060 = vmatpush2.msra.mxu0 0.0
    %4061 = vmatprep.subr.mxu0 0.0
    %4062 = vmatpush2.msra.mxu0 0.0
    %4063 = vmatprep.mubr.f32.mxu0 0.0
    %v4064 = vand.u32 %v3491, 4294901760
    %4065 = vmatmul.mubr.f32.gmra.mxu0 %v4064
    %v4066 = vpop.f32.mrf.mxu0
    %v4067 = vadd.f32 %v3982, %v4066
    %v4068 = vpop.f32.mrf.mxu0
    %4069 = vmatprep.mubr.f32.mxu0 0.0
    %v4070 = vand.u32 %v3494, 4294901760
    %4071 = vmatmul.mubr.f32.gmra.mxu0 %v4070
    %v4072 = vpop.f32.mrf.mxu0
    %v4073 = vadd.f32 %v3988, %v4072
    %v4074 = vpop.f32.mrf.mxu0
    %4075 = vdwg.mxu0
    %v4076 = vmul.f32 %v4067, 0.01
    %v4077 = vmul.f32 %v4073, 0.01
    %v4078 = vmax.f32 %v4067, %v4076
    %v4079 = vmax.f32 %v4073, %v4077
    %4080 = vst.msk [vmem:[#allocation2] sm:$0xff] %vm73, %v4078
    %4081 = vst.msk [vmem:[#allocation2 + $0x8] sm:$0xff] %vm73, %v4079
    // Predicated region
    $region18: #{object_node_update.1} parent=1 // pred_check
      _
    $region19: #{object_node_update.1} parent=1 // pred_check_branch
      %4083 = sbr.rel (0) target = $region21
    $region20: #{object_node_update.1} parent=1 // pred_region
      %s4085 = ssub.s32 256, 256
      %4086 = vsyncadd [#allocation3], %s4085
      %s4087 = sshll.u32 [#allocation2], 4
      %s4088 = int_to_ptr.vmem [resolvable:$true] %s4087
      %4093 = dma.vmem_to_hbm [thread:$0]  %s4088, 256, %s4, [#allocation3], 128, 128, 8
    $region21: #{object_node_update.1} parent=1 // pred_fallthru
      _
    // Predicated region
    $region22: #{object_node_update.1} parent=1 // pred_check
      _
    $region23: #{object_node_update.1} parent=1 // pred_check_branch
      %4095 = sbr.rel (0) target = $region25
    $region24: #{object_node_update.1} parent=1 // pred_region
      %4096 = dma.done [#allocation3], 256
    $region25: #{object_node_update.1} parent=1 // pred_fallthru
      _
    %4097 = vsyncpa [#allocation3], 1

</llo_original>
